<compile_context>
chip_gen: v5e
topology: v5e:2x2
jax: 0.10.0
libtpu: 0.0.40
codegen_flags: <defaults>
</compile_context>

<pallas_src>
import functools

import jax
import jax.numpy as jnp
from jax.experimental import pallas as pl
from jax.experimental.pallas import tpu as pltpu

K = 7      # conv kernel size
PAD = 3    # conv padding (kernel_size // 2)


def spatial_attention_kernel(x_ref, w_ref, b_ref, o_ref, *, B, C, H, W):
    """One grid step: B images.

    x_ref : (B, C, H*W)  VMEM  -- flattened NCHW input block (lane dim = H*W)
    w_ref : (2*K*K,)     SMEM  -- conv weight, OIHW order flattened (O=1)
    b_ref : (1,)         SMEM  -- conv bias
    o_ref : (B, H*W)     VMEM  -- sigmoid(conv([mean_c; max_c])) output block
    """
    HW = H * W
    MAXOFF = PAD * W + PAD          # largest |flattened shift| of any conv tap

    x = x_ref[...].astype(jnp.float32)          # (B, C, HW)

    # Channel-wise mean / max -> two lane-dense (B, HW) feature planes.
    avg = jnp.mean(x, axis=1)
    mx = jnp.max(x, axis=1)

    # Hoist all weight / bias scalar reads out of the tap loop (98 SMEM reads, once).
    w = [w_ref[i] for i in range(2 * K * K)]
    bias = b_ref[0]

    # Column-validity masks, one per horizontal tap offset dw in [-PAD, PAD].
    # Row validity needs no mask: with the MAXOFF zero padding below, any tap whose
    # source row is out of range either lands in the zero pad or also has an invalid
    # column, so padding + column mask already zero it.
    f_idx = jax.lax.broadcasted_iota(jnp.int32, (B, HW), 1)
    if W & (W - 1) == 0:
        w_idx = jnp.bitwise_and(f_idx, W - 1)          # f % W (W is a power of two)
    else:
        w_idx = jax.lax.rem(f_idx, W)
    one = jnp.float32(1.0)
    zero = jnp.float32(0.0)
    col_ok = [
        jnp.where((w_idx + (kj - PAD) >= 0) & (w_idx + (kj - PAD) < W), one, zero)
        for kj in range(K)
    ]

    # Zero-pad the flattened planes along the lane axis so every shifted tap is an
    # in-bounds static value slice (no scratch buffer, nothing to re-zero per step).
    zpad = jnp.zeros((B, MAXOFF), jnp.float32)
    planes = (jnp.concatenate([zpad, avg, zpad], axis=-1),
              jnp.concatenate([zpad, mx, zpad], axis=-1))   # (B, HW + 2*MAXOFF)

    # 2*7*7 shifted multiply-accumulate: lane shifts on the XLU, MACs on the VPU.
    acc = jnp.full((B, HW), bias, dtype=jnp.float32)
    for c in range(2):
        p = planes[c]
        for ki in range(K):
            dh = ki - PAD
            for kj in range(K):
                dw = kj - PAD
                start = MAXOFF + dh * W + dw
                shifted = p[:, start:start + HW]            # (B, HW) static slice
                acc = acc + shifted * col_ok[kj] * w[c * K * K + ki * K + kj]
    # TODO(synk): for large H*W, reformulate the W-direction taps as small MXU matmuls
    # against a banded Toeplitz weight matrix instead of VPU MACs.

    o_ref[...] = jax.nn.sigmoid(acc).astype(o_ref.dtype)


def spatial_attention(x, weight, bias, *, batch_block=None, vmem_budget_bytes=8 << 20):
    """x: (N, C, H, W) f32, weight: (1, 2, 7, 7) f32 (OIHW), bias: (1,) f32.

    Returns sigmoid(Conv2d(concat([mean_c(x), max_c(x)]), 7x7, padding=3)),
    shape (N, 1, H, W) -- identical to PyTorch SpatialAttentionModule.forward.
    """
    N, C, H, W = x.shape
    HW = H * W

    if batch_block is None:
        # Double-buffered input + output bytes per image per grid step; keep the
        # per-step footprint far below the scoped-VMEM default (and v7x's 64 MiB).
        per_image = 2 * (C + 1) * HW * 4
        batch_block = max(1, min(N, vmem_budget_bytes // max(per_image, 1)))
        while N % batch_block:
            batch_block -= 1
    B = batch_block
    assert N % B == 0

    x_flat = x.reshape(N, C, HW).astype(jnp.float32)     # lane-dense minor dim H*W
    w_flat = weight.reshape(-1).astype(jnp.float32)      # (2*K*K,), OIHW order
    b = bias.reshape(1).astype(jnp.float32)

    kernel = functools.partial(spatial_attention_kernel, B=B, C=C, H=H, W=W)

    out_flat = pl.pallas_call(
        kernel,
        out_shape=jax.ShapeDtypeStruct((N, HW), jnp.float32),
        grid_spec=pltpu.PrefetchScalarGridSpec(
            num_scalar_prefetch=0,
            grid=(N // B,),
            in_specs=[
                pl.BlockSpec((B, C, HW), lambda n: (n, 0, 0)),
                pl.BlockSpec(memory_space=pltpu.MemorySpace.SMEM),
                pl.BlockSpec(memory_space=pltpu.MemorySpace.SMEM),
            ],
            out_specs=pl.BlockSpec((B, HW), lambda n: (n, 0)),
        ),
        compiler_params=pltpu.CompilerParams(
            dimension_semantics=("parallel",)),
    )(x_flat, w_flat, b)

    return out_flat.reshape(N, 1, H, W)


if __name__ == "__main__":
    key = jax.random.PRNGKey(0)
    kx, kw, kb = jax.random.split(key, 3)

    N, C, H, W = 2, 4, 16, 16
    x = jax.random.normal(kx, (N, C, H, W), dtype=jnp.float32)
    # Deterministic synthetic conv parameters (Conv2d(2, 1, 7, padding=3)).
    weight = 0.1 * jax.random.normal(kw, (1, 2, K, K), dtype=jnp.float32)
    bias = 0.1 * jax.random.normal(kb, (1,), dtype=jnp.float32)

    out = spatial_attention(x, weight, bias)
    out = jax.block_until_ready(out)

    # Pure-JAX reference (matches PyTorch SpatialAttentionModule.forward).
    avg = jnp.mean(x, axis=1, keepdims=True)
    mx = jnp.max(x, axis=1, keepdims=True)
    feat = jnp.concatenate([avg, mx], axis=1)
    ref = jax.lax.conv_general_dilated(
        feat, weight, window_strides=(1, 1), padding=[(PAD, PAD), (PAD, PAD)],
        dimension_numbers=("NCHW", "OIHW", "NCHW")) + bias.reshape(1, 1, 1, 1)
    ref = jax.nn.sigmoid(ref)

    assert out.shape == (N, 1, H, W), out.shape
    assert jnp.allclose(out, ref, atol=1e-5), float(jnp.max(jnp.abs(out - ref)))
    print("KERNEL_OK")
</pallas_src>

<mosaic_0001>
module attributes {stable_mosaic.version = 11 : i64} {
  func.func @spatial_attention_kernel(%arg0: i32, %arg1: memref<2x4x256xf32, #tpu.memory_space<vmem>>, %arg2: memref<98xf32, #tpu.memory_space<smem>>, %arg3: memref<1xf32, #tpu.memory_space<smem>>, %arg4: memref<2x256xf32, #tpu.memory_space<vmem>>) attributes {dimension_semantics = [#tpu.dimension_semantics<parallel>], iteration_bounds = array<i64: 1>, scalar_prefetch = 0 : i64, scratch_operands = 0 : i64, tpu.core_type = #tpu.core_type<tc>, window_params = [{transform_indices = @transform_0, window_bounds = array<i64: 2, 4, 256>}, {transform_indices = @transform_1, window_bounds = array<i64: 98>}, {transform_indices = @transform_2, window_bounds = array<i64: 1>}, {transform_indices = @transform_3, window_bounds = array<i64: 2, 256>}]} {
    %c0 = arith.constant 0 : index
    %c0_0 = arith.constant 0 : index
    %c0_1 = arith.constant 0 : index
    %0 = vector.load %arg1[%c0, %c0_0, %c0_1] : memref<2x4x256xf32, #tpu.memory_space<vmem>>, vector<2x4x256xf32>
    %cst = arith.constant dense<0.000000e+00> : vector<2x256xf32>
    %1 = vector.multi_reduction <add>, %0, %cst [1] : vector<2x4x256xf32> to vector<2x256xf32>
    %cst_2 = arith.constant 4.000000e+00 : f32
    %2 = vector.broadcast %cst_2 : f32 to vector<2x256xf32>
    %3 = arith.divf %1, %2 : vector<2x256xf32>
    %cst_3 = arith.constant dense<0xFF800000> : vector<2x256xf32>
    %4 = vector.multi_reduction <maximumf>, %0, %cst_3 [1] : vector<2x4x256xf32> to vector<2x256xf32>
    %c0_4 = arith.constant 0 : index
    %5 = memref.load %arg2[%c0_4] : memref<98xf32, #tpu.memory_space<smem>>
    %c1 = arith.constant 1 : index
    %6 = memref.load %arg2[%c1] : memref<98xf32, #tpu.memory_space<smem>>
    %c2 = arith.constant 2 : index
    %7 = memref.load %arg2[%c2] : memref<98xf32, #tpu.memory_space<smem>>
    %c3 = arith.constant 3 : index
    %8 = memref.load %arg2[%c3] : memref<98xf32, #tpu.memory_space<smem>>
    %c4 = arith.constant 4 : index
    %9 = memref.load %arg2[%c4] : memref<98xf32, #tpu.memory_space<smem>>
    %c5 = arith.constant 5 : index
    %10 = memref.load %arg2[%c5] : memref<98xf32, #tpu.memory_space<smem>>
    %c6 = arith.constant 6 : index
    %11 = memref.load %arg2[%c6] : memref<98xf32, #tpu.memory_space<smem>>
    %c7 = arith.constant 7 : index
    %12 = memref.load %arg2[%c7] : memref<98xf32, #tpu.memory_space<smem>>
    %c8 = arith.constant 8 : index
    %13 = memref.load %arg2[%c8] : memref<98xf32, #tpu.memory_space<smem>>
    %c9 = arith.constant 9 : index
    %14 = memref.load %arg2[%c9] : memref<98xf32, #tpu.memory_space<smem>>
    %c10 = arith.constant 10 : index
    %15 = memref.load %arg2[%c10] : memref<98xf32, #tpu.memory_space<smem>>
    %c11 = arith.constant 11 : index
    %16 = memref.load %arg2[%c11] : memref<98xf32, #tpu.memory_space<smem>>
    %c12 = arith.constant 12 : index
    %17 = memref.load %arg2[%c12] : memref<98xf32, #tpu.memory_space<smem>>
    %c13 = arith.constant 13 : index
    %18 = memref.load %arg2[%c13] : memref<98xf32, #tpu.memory_space<smem>>
    %c14 = arith.constant 14 : index
    %19 = memref.load %arg2[%c14] : memref<98xf32, #tpu.memory_space<smem>>
    %c15 = arith.constant 15 : index
    %20 = memref.load %arg2[%c15] : memref<98xf32, #tpu.memory_space<smem>>
    %c16 = arith.constant 16 : index
    %21 = memref.load %arg2[%c16] : memref<98xf32, #tpu.memory_space<smem>>
    %c17 = arith.constant 17 : index
    %22 = memref.load %arg2[%c17] : memref<98xf32, #tpu.memory_space<smem>>
    %c18 = arith.constant 18 : index
    %23 = memref.load %arg2[%c18] : memref<98xf32, #tpu.memory_space<smem>>
    %c19 = arith.constant 19 : index
    %24 = memref.load %arg2[%c19] : memref<98xf32, #tpu.memory_space<smem>>
    %c20 = arith.constant 20 : index
    %25 = memref.load %arg2[%c20] : memref<98xf32, #tpu.memory_space<smem>>
    %c21 = arith.constant 21 : index
    %26 = memref.load %arg2[%c21] : memref<98xf32, #tpu.memory_space<smem>>
    %c22 = arith.constant 22 : index
    %27 = memref.load %arg2[%c22] : memref<98xf32, #tpu.memory_space<smem>>
    %c23 = arith.constant 23 : index
    %28 = memref.load %arg2[%c23] : memref<98xf32, #tpu.memory_space<smem>>
    %c24 = arith.constant 24 : index
    %29 = memref.load %arg2[%c24] : memref<98xf32, #tpu.memory_space<smem>>
    %c25 = arith.constant 25 : index
    %30 = memref.load %arg2[%c25] : memref<98xf32, #tpu.memory_space<smem>>
    %c26 = arith.constant 26 : index
    %31 = memref.load %arg2[%c26] : memref<98xf32, #tpu.memory_space<smem>>
    %c27 = arith.constant 27 : index
    %32 = memref.load %arg2[%c27] : memref<98xf32, #tpu.memory_space<smem>>
    %c28 = arith.constant 28 : index
    %33 = memref.load %arg2[%c28] : memref<98xf32, #tpu.memory_space<smem>>
    %c29 = arith.constant 29 : index
    %34 = memref.load %arg2[%c29] : memref<98xf32, #tpu.memory_space<smem>>
    %c30 = arith.constant 30 : index
    %35 = memref.load %arg2[%c30] : memref<98xf32, #tpu.memory_space<smem>>
    %c31 = arith.constant 31 : index
    %36 = memref.load %arg2[%c31] : memref<98xf32, #tpu.memory_space<smem>>
    %c32 = arith.constant 32 : index
    %37 = memref.load %arg2[%c32] : memref<98xf32, #tpu.memory_space<smem>>
    %c33 = arith.constant 33 : index
    %38 = memref.load %arg2[%c33] : memref<98xf32, #tpu.memory_space<smem>>
    %c34 = arith.constant 34 : index
    %39 = memref.load %arg2[%c34] : memref<98xf32, #tpu.memory_space<smem>>
    %c35 = arith.constant 35 : index
    %40 = memref.load %arg2[%c35] : memref<98xf32, #tpu.memory_space<smem>>
    %c36 = arith.constant 36 : index
    %41 = memref.load %arg2[%c36] : memref<98xf32, #tpu.memory_space<smem>>
    %c37 = arith.constant 37 : index
    %42 = memref.load %arg2[%c37] : memref<98xf32, #tpu.memory_space<smem>>
    %c38 = arith.constant 38 : index
    %43 = memref.load %arg2[%c38] : memref<98xf32, #tpu.memory_space<smem>>
    %c39 = arith.constant 39 : index
    %44 = memref.load %arg2[%c39] : memref<98xf32, #tpu.memory_space<smem>>
    %c40 = arith.constant 40 : index
    %45 = memref.load %arg2[%c40] : memref<98xf32, #tpu.memory_space<smem>>
    %c41 = arith.constant 41 : index
    %46 = memref.load %arg2[%c41] : memref<98xf32, #tpu.memory_space<smem>>
    %c42 = arith.constant 42 : index
    %47 = memref.load %arg2[%c42] : memref<98xf32, #tpu.memory_space<smem>>
    %c43 = arith.constant 43 : index
    %48 = memref.load %arg2[%c43] : memref<98xf32, #tpu.memory_space<smem>>
    %c44 = arith.constant 44 : index
    %49 = memref.load %arg2[%c44] : memref<98xf32, #tpu.memory_space<smem>>
    %c45 = arith.constant 45 : index
    %50 = memref.load %arg2[%c45] : memref<98xf32, #tpu.memory_space<smem>>
    %c46 = arith.constant 46 : index
    %51 = memref.load %arg2[%c46] : memref<98xf32, #tpu.memory_space<smem>>
    %c47 = arith.constant 47 : index
    %52 = memref.load %arg2[%c47] : memref<98xf32, #tpu.memory_space<smem>>
    %c48 = arith.constant 48 : index
    %53 = memref.load %arg2[%c48] : memref<98xf32, #tpu.memory_space<smem>>
    %c49 = arith.constant 49 : index
    %54 = memref.load %arg2[%c49] : memref<98xf32, #tpu.memory_space<smem>>
    %c50 = arith.constant 50 : index
    %55 = memref.load %arg2[%c50] : memref<98xf32, #tpu.memory_space<smem>>
    %c51 = arith.constant 51 : index
    %56 = memref.load %arg2[%c51] : memref<98xf32, #tpu.memory_space<smem>>
    %c52 = arith.constant 52 : index
    %57 = memref.load %arg2[%c52] : memref<98xf32, #tpu.memory_space<smem>>
    %c53 = arith.constant 53 : index
    %58 = memref.load %arg2[%c53] : memref<98xf32, #tpu.memory_space<smem>>
    %c54 = arith.constant 54 : index
    %59 = memref.load %arg2[%c54] : memref<98xf32, #tpu.memory_space<smem>>
    %c55 = arith.constant 55 : index
    %60 = memref.load %arg2[%c55] : memref<98xf32, #tpu.memory_space<smem>>
    %c56 = arith.constant 56 : index
    %61 = memref.load %arg2[%c56] : memref<98xf32, #tpu.memory_space<smem>>
    %c57 = arith.constant 57 : index
    %62 = memref.load %arg2[%c57] : memref<98xf32, #tpu.memory_space<smem>>
    %c58 = arith.constant 58 : index
    %63 = memref.load %arg2[%c58] : memref<98xf32, #tpu.memory_space<smem>>
    %c59 = arith.constant 59 : index
    %64 = memref.load %arg2[%c59] : memref<98xf32, #tpu.memory_space<smem>>
    %c60 = arith.constant 60 : index
    %65 = memref.load %arg2[%c60] : memref<98xf32, #tpu.memory_space<smem>>
    %c61 = arith.constant 61 : index
    %66 = memref.load %arg2[%c61] : memref<98xf32, #tpu.memory_space<smem>>
    %c62 = arith.constant 62 : index
    %67 = memref.load %arg2[%c62] : memref<98xf32, #tpu.memory_space<smem>>
    %c63 = arith.constant 63 : index
    %68 = memref.load %arg2[%c63] : memref<98xf32, #tpu.memory_space<smem>>
    %c64 = arith.constant 64 : index
    %69 = memref.load %arg2[%c64] : memref<98xf32, #tpu.memory_space<smem>>
    %c65 = arith.constant 65 : index
    %70 = memref.load %arg2[%c65] : memref<98xf32, #tpu.memory_space<smem>>
    %c66 = arith.constant 66 : index
    %71 = memref.load %arg2[%c66] : memref<98xf32, #tpu.memory_space<smem>>
    %c67 = arith.constant 67 : index
    %72 = memref.load %arg2[%c67] : memref<98xf32, #tpu.memory_space<smem>>
    %c68 = arith.constant 68 : index
    %73 = memref.load %arg2[%c68] : memref<98xf32, #tpu.memory_space<smem>>
    %c69 = arith.constant 69 : index
    %74 = memref.load %arg2[%c69] : memref<98xf32, #tpu.memory_space<smem>>
    %c70 = arith.constant 70 : index
    %75 = memref.load %arg2[%c70] : memref<98xf32, #tpu.memory_space<smem>>
    %c71 = arith.constant 71 : index
    %76 = memref.load %arg2[%c71] : memref<98xf32, #tpu.memory_space<smem>>
    %c72 = arith.constant 72 : index
    %77 = memref.load %arg2[%c72] : memref<98xf32, #tpu.memory_space<smem>>
    %c73 = arith.constant 73 : index
    %78 = memref.load %arg2[%c73] : memref<98xf32, #tpu.memory_space<smem>>
    %c74 = arith.constant 74 : index
    %79 = memref.load %arg2[%c74] : memref<98xf32, #tpu.memory_space<smem>>
    %c75 = arith.constant 75 : index
    %80 = memref.load %arg2[%c75] : memref<98xf32, #tpu.memory_space<smem>>
    %c76 = arith.constant 76 : index
    %81 = memref.load %arg2[%c76] : memref<98xf32, #tpu.memory_space<smem>>
    %c77 = arith.constant 77 : index
    %82 = memref.load %arg2[%c77] : memref<98xf32, #tpu.memory_space<smem>>
    %c78 = arith.constant 78 : index
    %83 = memref.load %arg2[%c78] : memref<98xf32, #tpu.memory_space<smem>>
    %c79 = arith.constant 79 : index
    %84 = memref.load %arg2[%c79] : memref<98xf32, #tpu.memory_space<smem>>
    %c80 = arith.constant 80 : index
    %85 = memref.load %arg2[%c80] : memref<98xf32, #tpu.memory_space<smem>>
    %c81 = arith.constant 81 : index
    %86 = memref.load %arg2[%c81] : memref<98xf32, #tpu.memory_space<smem>>
    %c82 = arith.constant 82 : index
    %87 = memref.load %arg2[%c82] : memref<98xf32, #tpu.memory_space<smem>>
    %c83 = arith.constant 83 : index
    %88 = memref.load %arg2[%c83] : memref<98xf32, #tpu.memory_space<smem>>
    %c84 = arith.constant 84 : index
    %89 = memref.load %arg2[%c84] : memref<98xf32, #tpu.memory_space<smem>>
    %c85 = arith.constant 85 : index
    %90 = memref.load %arg2[%c85] : memref<98xf32, #tpu.memory_space<smem>>
    %c86 = arith.constant 86 : index
    %91 = memref.load %arg2[%c86] : memref<98xf32, #tpu.memory_space<smem>>
    %c87 = arith.constant 87 : index
    %92 = memref.load %arg2[%c87] : memref<98xf32, #tpu.memory_space<smem>>
    %c88 = arith.constant 88 : index
    %93 = memref.load %arg2[%c88] : memref<98xf32, #tpu.memory_space<smem>>
    %c89 = arith.constant 89 : index
    %94 = memref.load %arg2[%c89] : memref<98xf32, #tpu.memory_space<smem>>
    %c90 = arith.constant 90 : index
    %95 = memref.load %arg2[%c90] : memref<98xf32, #tpu.memory_space<smem>>
    %c91 = arith.constant 91 : index
    %96 = memref.load %arg2[%c91] : memref<98xf32, #tpu.memory_space<smem>>
    %c92 = arith.constant 92 : index
    %97 = memref.load %arg2[%c92] : memref<98xf32, #tpu.memory_space<smem>>
    %c93 = arith.constant 93 : index
    %98 = memref.load %arg2[%c93] : memref<98xf32, #tpu.memory_space<smem>>
    %c94 = arith.constant 94 : index
    %99 = memref.load %arg2[%c94] : memref<98xf32, #tpu.memory_space<smem>>
    %c95 = arith.constant 95 : index
    %100 = memref.load %arg2[%c95] : memref<98xf32, #tpu.memory_space<smem>>
    %c96 = arith.constant 96 : index
    %101 = memref.load %arg2[%c96] : memref<98xf32, #tpu.memory_space<smem>>
    %c97 = arith.constant 97 : index
    %102 = memref.load %arg2[%c97] : memref<98xf32, #tpu.memory_space<smem>>
    %c0_5 = arith.constant 0 : index
    %103 = memref.load %arg3[%c0_5] : memref<1xf32, #tpu.memory_space<smem>>
    %104 = tpu.iota {dimensions = array<i32: 1>} : vector<2x256xi32>
    %c15_i32 = arith.constant 15 : i32
    %105 = vector.broadcast %c15_i32 : i32 to vector<2x256xi32>
    %106 = arith.andi %104, %105 : vector<2x256xi32>
    %c-3_i32 = arith.constant -3 : i32
    %107 = vector.broadcast %c-3_i32 : i32 to vector<2x256xi32>
    %108 = arith.addi %106, %107 : vector<2x256xi32>
    %c0_i32 = arith.constant 0 : i32
    %109 = vector.broadcast %c0_i32 : i32 to vector<2x256xi32>
    %110 = arith.cmpi sge, %108, %109 : vector<2x256xi32>
    %c-3_i32_6 = arith.constant -3 : i32
    %111 = vector.broadcast %c-3_i32_6 : i32 to vector<2x256xi32>
    %112 = arith.addi %106, %111 : vector<2x256xi32>
    %c16_i32 = arith.constant 16 : i32
    %113 = vector.broadcast %c16_i32 : i32 to vector<2x256xi32>
    %114 = arith.cmpi slt, %112, %113 : vector<2x256xi32>
    %115 = arith.andi %110, %114 : vector<2x256xi1>
    %cst_7 = arith.constant 1.000000e+00 : f32
    %cst_8 = arith.constant 0.000000e+00 : f32
    %116 = vector.broadcast %cst_7 : f32 to vector<2x256xf32>
    %117 = vector.broadcast %cst_8 : f32 to vector<2x256xf32>
    %118 = arith.select %115, %116, %117 : vector<2x256xi1>, vector<2x256xf32>
    %c-2_i32 = arith.constant -2 : i32
    %119 = vector.broadcast %c-2_i32 : i32 to vector<2x256xi32>
    %120 = arith.addi %106, %119 : vector<2x256xi32>
    %c0_i32_9 = arith.constant 0 : i32
    %121 = vector.broadcast %c0_i32_9 : i32 to vector<2x256xi32>
    %122 = arith.cmpi sge, %120, %121 : vector<2x256xi32>
    %c-2_i32_10 = arith.constant -2 : i32
    %123 = vector.broadcast %c-2_i32_10 : i32 to vector<2x256xi32>
    %124 = arith.addi %106, %123 : vector<2x256xi32>
    %c16_i32_11 = arith.constant 16 : i32
    %125 = vector.broadcast %c16_i32_11 : i32 to vector<2x256xi32>
    %126 = arith.cmpi slt, %124, %125 : vector<2x256xi32>
    %127 = arith.andi %122, %126 : vector<2x256xi1>
    %cst_12 = arith.constant 1.000000e+00 : f32
    %cst_13 = arith.constant 0.000000e+00 : f32
    %128 = vector.broadcast %cst_12 : f32 to vector<2x256xf32>
    %129 = vector.broadcast %cst_13 : f32 to vector<2x256xf32>
    %130 = arith.select %127, %128, %129 : vector<2x256xi1>, vector<2x256xf32>
    %c-1_i32 = arith.constant -1 : i32
    %131 = vector.broadcast %c-1_i32 : i32 to vector<2x256xi32>
    %132 = arith.addi %106, %131 : vector<2x256xi32>
    %c0_i32_14 = arith.constant 0 : i32
    %133 = vector.broadcast %c0_i32_14 : i32 to vector<2x256xi32>
    %134 = arith.cmpi sge, %132, %133 : vector<2x256xi32>
    %c-1_i32_15 = arith.constant -1 : i32
    %135 = vector.broadcast %c-1_i32_15 : i32 to vector<2x256xi32>
    %136 = arith.addi %106, %135 : vector<2x256xi32>
    %c16_i32_16 = arith.constant 16 : i32
    %137 = vector.broadcast %c16_i32_16 : i32 to vector<2x256xi32>
    %138 = arith.cmpi slt, %136, %137 : vector<2x256xi32>
    %139 = arith.andi %134, %138 : vector<2x256xi1>
    %cst_17 = arith.constant 1.000000e+00 : f32
    %cst_18 = arith.constant 0.000000e+00 : f32
    %140 = vector.broadcast %cst_17 : f32 to vector<2x256xf32>
    %141 = vector.broadcast %cst_18 : f32 to vector<2x256xf32>
    %142 = arith.select %139, %140, %141 : vector<2x256xi1>, vector<2x256xf32>
    %c0_i32_19 = arith.constant 0 : i32
    %143 = vector.broadcast %c0_i32_19 : i32 to vector<2x256xi32>
    %144 = arith.addi %106, %143 : vector<2x256xi32>
    %c0_i32_20 = arith.constant 0 : i32
    %145 = vector.broadcast %c0_i32_20 : i32 to vector<2x256xi32>
    %146 = arith.cmpi sge, %144, %145 : vector<2x256xi32>
    %c0_i32_21 = arith.constant 0 : i32
    %147 = vector.broadcast %c0_i32_21 : i32 to vector<2x256xi32>
    %148 = arith.addi %106, %147 : vector<2x256xi32>
    %c16_i32_22 = arith.constant 16 : i32
    %149 = vector.broadcast %c16_i32_22 : i32 to vector<2x256xi32>
    %150 = arith.cmpi slt, %148, %149 : vector<2x256xi32>
    %151 = arith.andi %146, %150 : vector<2x256xi1>
    %cst_23 = arith.constant 1.000000e+00 : f32
    %cst_24 = arith.constant 0.000000e+00 : f32
    %152 = vector.broadcast %cst_23 : f32 to vector<2x256xf32>
    %153 = vector.broadcast %cst_24 : f32 to vector<2x256xf32>
    %154 = arith.select %151, %152, %153 : vector<2x256xi1>, vector<2x256xf32>
    %c1_i32 = arith.constant 1 : i32
    %155 = vector.broadcast %c1_i32 : i32 to vector<2x256xi32>
    %156 = arith.addi %106, %155 : vector<2x256xi32>
    %c0_i32_25 = arith.constant 0 : i32
    %157 = vector.broadcast %c0_i32_25 : i32 to vector<2x256xi32>
    %158 = arith.cmpi sge, %156, %157 : vector<2x256xi32>
    %c1_i32_26 = arith.constant 1 : i32
    %159 = vector.broadcast %c1_i32_26 : i32 to vector<2x256xi32>
    %160 = arith.addi %106, %159 : vector<2x256xi32>
    %c16_i32_27 = arith.constant 16 : i32
    %161 = vector.broadcast %c16_i32_27 : i32 to vector<2x256xi32>
    %162 = arith.cmpi slt, %160, %161 : vector<2x256xi32>
    %163 = arith.andi %158, %162 : vector<2x256xi1>
    %cst_28 = arith.constant 1.000000e+00 : f32
    %cst_29 = arith.constant 0.000000e+00 : f32
    %164 = vector.broadcast %cst_28 : f32 to vector<2x256xf32>
    %165 = vector.broadcast %cst_29 : f32 to vector<2x256xf32>
    %166 = arith.select %163, %164, %165 : vector<2x256xi1>, vector<2x256xf32>
    %c2_i32 = arith.constant 2 : i32
    %167 = vector.broadcast %c2_i32 : i32 to vector<2x256xi32>
    %168 = arith.addi %106, %167 : vector<2x256xi32>
    %c0_i32_30 = arith.constant 0 : i32
    %169 = vector.broadcast %c0_i32_30 : i32 to vector<2x256xi32>
    %170 = arith.cmpi sge, %168, %169 : vector<2x256xi32>
    %c2_i32_31 = arith.constant 2 : i32
    %171 = vector.broadcast %c2_i32_31 : i32 to vector<2x256xi32>
    %172 = arith.addi %106, %171 : vector<2x256xi32>
    %c16_i32_32 = arith.constant 16 : i32
    %173 = vector.broadcast %c16_i32_32 : i32 to vector<2x256xi32>
    %174 = arith.cmpi slt, %172, %173 : vector<2x256xi32>
    %175 = arith.andi %170, %174 : vector<2x256xi1>
    %cst_33 = arith.constant 1.000000e+00 : f32
    %cst_34 = arith.constant 0.000000e+00 : f32
    %176 = vector.broadcast %cst_33 : f32 to vector<2x256xf32>
    %177 = vector.broadcast %cst_34 : f32 to vector<2x256xf32>
    %178 = arith.select %175, %176, %177 : vector<2x256xi1>, vector<2x256xf32>
    %c3_i32 = arith.constant 3 : i32
    %179 = vector.broadcast %c3_i32 : i32 to vector<2x256xi32>
    %180 = arith.addi %106, %179 : vector<2x256xi32>
    %c0_i32_35 = arith.constant 0 : i32
    %181 = vector.broadcast %c0_i32_35 : i32 to vector<2x256xi32>
    %182 = arith.cmpi sge, %180, %181 : vector<2x256xi32>
    %c3_i32_36 = arith.constant 3 : i32
    %183 = vector.broadcast %c3_i32_36 : i32 to vector<2x256xi32>
    %184 = arith.addi %106, %183 : vector<2x256xi32>
    %c16_i32_37 = arith.constant 16 : i32
    %185 = vector.broadcast %c16_i32_37 : i32 to vector<2x256xi32>
    %186 = arith.cmpi slt, %184, %185 : vector<2x256xi32>
    %187 = arith.andi %182, %186 : vector<2x256xi1>
    %cst_38 = arith.constant 1.000000e+00 : f32
    %cst_39 = arith.constant 0.000000e+00 : f32
    %188 = vector.broadcast %cst_38 : f32 to vector<2x256xf32>
    %189 = vector.broadcast %cst_39 : f32 to vector<2x256xf32>
    %190 = arith.select %187, %188, %189 : vector<2x256xi1>, vector<2x256xf32>
    %cst_40 = arith.constant 0.000000e+00 : f32
    %191 = vector.broadcast %cst_40 : f32 to vector<2x51xf32>
    %192 = tpu.concatenate %191, %3, %191 in 1 : vector<2x51xf32>, vector<2x256xf32>, vector<2x51xf32> -> vector<2x358xf32>
    %193 = tpu.concatenate %191, %4, %191 in 1 : vector<2x51xf32>, vector<2x256xf32>, vector<2x51xf32> -> vector<2x358xf32>
    %194 = vector.broadcast %103 : f32 to vector<2x256xf32>
    %195 = vector.extract_strided_slice %192 {offsets = [0, 0], sizes = [2, 256], strides = [1, 1]} : vector<2x358xf32> to vector<2x256xf32>
    %196 = arith.mulf %195, %118 : vector<2x256xf32>
    %197 = vector.broadcast %5 : f32 to vector<2x256xf32>
    %198 = arith.mulf %196, %197 : vector<2x256xf32>
    %199 = arith.addf %194, %198 : vector<2x256xf32>
    %200 = vector.extract_strided_slice %192 {offsets = [0, 1], sizes = [2, 256], strides = [1, 1]} : vector<2x358xf32> to vector<2x256xf32>
    %201 = arith.mulf %200, %130 : vector<2x256xf32>
    %202 = vector.broadcast %6 : f32 to vector<2x256xf32>
    %203 = arith.mulf %201, %202 : vector<2x256xf32>
    %204 = arith.addf %199, %203 : vector<2x256xf32>
    %205 = vector.extract_strided_slice %192 {offsets = [0, 2], sizes = [2, 256], strides = [1, 1]} : vector<2x358xf32> to vector<2x256xf32>
    %206 = arith.mulf %205, %142 : vector<2x256xf32>
    %207 = vector.broadcast %7 : f32 to vector<2x256xf32>
    %208 = arith.mulf %206, %207 : vector<2x256xf32>
    %209 = arith.addf %204, %208 : vector<2x256xf32>
    %210 = vector.extract_strided_slice %192 {offsets = [0, 3], sizes = [2, 256], strides = [1, 1]} : vector<2x358xf32> to vector<2x256xf32>
    %211 = arith.mulf %210, %154 : vector<2x256xf32>
    %212 = vector.broadcast %8 : f32 to vector<2x256xf32>
    %213 = arith.mulf %211, %212 : vector<2x256xf32>
    %214 = arith.addf %209, %213 : vector<2x256xf32>
    %215 = vector.extract_strided_slice %192 {offsets = [0, 4], sizes = [2, 256], strides = [1, 1]} : vector<2x358xf32> to vector<2x256xf32>
    %216 = arith.mulf %215, %166 : vector<2x256xf32>
    %217 = vector.broadcast %9 : f32 to vector<2x256xf32>
    %218 = arith.mulf %216, %217 : vector<2x256xf32>
    %219 = arith.addf %214, %218 : vector<2x256xf32>
    %220 = vector.extract_strided_slice %192 {offsets = [0, 5], sizes = [2, 256], strides = [1, 1]} : vector<2x358xf32> to vector<2x256xf32>
    %221 = arith.mulf %220, %178 : vector<2x256xf32>
    %222 = vector.broadcast %10 : f32 to vector<2x256xf32>
    %223 = arith.mulf %221, %222 : vector<2x256xf32>
    %224 = arith.addf %219, %223 : vector<2x256xf32>
    %225 = vector.extract_strided_slice %192 {offsets = [0, 6], sizes = [2, 256], strides = [1, 1]} : vector<2x358xf32> to vector<2x256xf32>
    %226 = arith.mulf %225, %190 : vector<2x256xf32>
    %227 = vector.broadcast %11 : f32 to vector<2x256xf32>
    %228 = arith.mulf %226, %227 : vector<2x256xf32>
    %229 = arith.addf %224, %228 : vector<2x256xf32>
    %230 = vector.extract_strided_slice %192 {offsets = [0, 16], sizes = [2, 256], strides = [1, 1]} : vector<2x358xf32> to vector<2x256xf32>
    %231 = arith.mulf %230, %118 : vector<2x256xf32>
    %232 = vector.broadcast %12 : f32 to vector<2x256xf32>
    %233 = arith.mulf %231, %232 : vector<2x256xf32>
    %234 = arith.addf %229, %233 : vector<2x256xf32>
    %235 = vector.extract_strided_slice %192 {offsets = [0, 17], sizes = [2, 256], strides = [1, 1]} : vector<2x358xf32> to vector<2x256xf32>
    %236 = arith.mulf %235, %130 : vector<2x256xf32>
    %237 = vector.broadcast %13 : f32 to vector<2x256xf32>
    %238 = arith.mulf %236, %237 : vector<2x256xf32>
    %239 = arith.addf %234, %238 : vector<2x256xf32>
    %240 = vector.extract_strided_slice %192 {offsets = [0, 18], sizes = [2, 256], strides = [1, 1]} : vector<2x358xf32> to vector<2x256xf32>
    %241 = arith.mulf %240, %142 : vector<2x256xf32>
    %242 = vector.broadcast %14 : f32 to vector<2x256xf32>
    %243 = arith.mulf %241, %242 : vector<2x256xf32>
    %244 = arith.addf %239, %243 : vector<2x256xf32>
    %245 = vector.extract_strided_slice %192 {offsets = [0, 19], sizes = [2, 256], strides = [1, 1]} : vector<2x358xf32> to vector<2x256xf32>
    %246 = arith.mulf %245, %154 : vector<2x256xf32>
    %247 = vector.broadcast %15 : f32 to vector<2x256xf32>
    %248 = arith.mulf %246, %247 : vector<2x256xf32>
    %249 = arith.addf %244, %248 : vector<2x256xf32>
    %250 = vector.extract_strided_slice %192 {offsets = [0, 20], sizes = [2, 256], strides = [1, 1]} : vector<2x358xf32> to vector<2x256xf32>
    %251 = arith.mulf %250, %166 : vector<2x256xf32>
    %252 = vector.broadcast %16 : f32 to vector<2x256xf32>
    %253 = arith.mulf %251, %252 : vector<2x256xf32>
    %254 = arith.addf %249, %253 : vector<2x256xf32>
    %255 = vector.extract_strided_slice %192 {offsets = [0, 21], sizes = [2, 256], strides = [1, 1]} : vector<2x358xf32> to vector<2x256xf32>
    %256 = arith.mulf %255, %178 : vector<2x256xf32>
    %257 = vector.broadcast %17 : f32 to vector<2x256xf32>
    %258 = arith.mulf %256, %257 : vector<2x256xf32>
    %259 = arith.addf %254, %258 : vector<2x256xf32>
    %260 = vector.extract_strided_slice %192 {offsets = [0, 22], sizes = [2, 256], strides = [1, 1]} : vector<2x358xf32> to vector<2x256xf32>
    %261 = arith.mulf %260, %190 : vector<2x256xf32>
    %262 = vector.broadcast %18 : f32 to vector<2x256xf32>
    %263 = arith.mulf %261, %262 : vector<2x256xf32>
    %264 = arith.addf %259, %263 : vector<2x256xf32>
    %265 = vector.extract_strided_slice %192 {offsets = [0, 32], sizes = [2, 256], strides = [1, 1]} : vector<2x358xf32> to vector<2x256xf32>
    %266 = arith.mulf %265, %118 : vector<2x256xf32>
    %267 = vector.broadcast %19 : f32 to vector<2x256xf32>
    %268 = arith.mulf %266, %267 : vector<2x256xf32>
    %269 = arith.addf %264, %268 : vector<2x256xf32>
    %270 = vector.extract_strided_slice %192 {offsets = [0, 33], sizes = [2, 256], strides = [1, 1]} : vector<2x358xf32> to vector<2x256xf32>
    %271 = arith.mulf %270, %130 : vector<2x256xf32>
    %272 = vector.broadcast %20 : f32 to vector<2x256xf32>
    %273 = arith.mulf %271, %272 : vector<2x256xf32>
    %274 = arith.addf %269, %273 : vector<2x256xf32>
    %275 = vector.extract_strided_slice %192 {offsets = [0, 34], sizes = [2, 256], strides = [1, 1]} : vector<2x358xf32> to vector<2x256xf32>
    %276 = arith.mulf %275, %142 : vector<2x256xf32>
    %277 = vector.broadcast %21 : f32 to vector<2x256xf32>
    %278 = arith.mulf %276, %277 : vector<2x256xf32>
    %279 = arith.addf %274, %278 : vector<2x256xf32>
    %280 = vector.extract_strided_slice %192 {offsets = [0, 35], sizes = [2, 256], strides = [1, 1]} : vector<2x358xf32> to vector<2x256xf32>
    %281 = arith.mulf %280, %154 : vector<2x256xf32>
    %282 = vector.broadcast %22 : f32 to vector<2x256xf32>
    %283 = arith.mulf %281, %282 : vector<2x256xf32>
    %284 = arith.addf %279, %283 : vector<2x256xf32>
    %285 = vector.extract_strided_slice %192 {offsets = [0, 36], sizes = [2, 256], strides = [1, 1]} : vector<2x358xf32> to vector<2x256xf32>
    %286 = arith.mulf %285, %166 : vector<2x256xf32>
    %287 = vector.broadcast %23 : f32 to vector<2x256xf32>
    %288 = arith.mulf %286, %287 : vector<2x256xf32>
    %289 = arith.addf %284, %288 : vector<2x256xf32>
    %290 = vector.extract_strided_slice %192 {offsets = [0, 37], sizes = [2, 256], strides = [1, 1]} : vector<2x358xf32> to vector<2x256xf32>
    %291 = arith.mulf %290, %178 : vector<2x256xf32>
    %292 = vector.broadcast %24 : f32 to vector<2x256xf32>
    %293 = arith.mulf %291, %292 : vector<2x256xf32>
    %294 = arith.addf %289, %293 : vector<2x256xf32>
    %295 = vector.extract_strided_slice %192 {offsets = [0, 38], sizes = [2, 256], strides = [1, 1]} : vector<2x358xf32> to vector<2x256xf32>
    %296 = arith.mulf %295, %190 : vector<2x256xf32>
    %297 = vector.broadcast %25 : f32 to vector<2x256xf32>
    %298 = arith.mulf %296, %297 : vector<2x256xf32>
    %299 = arith.addf %294, %298 : vector<2x256xf32>
    %300 = vector.extract_strided_slice %192 {offsets = [0, 48], sizes = [2, 256], strides = [1, 1]} : vector<2x358xf32> to vector<2x256xf32>
    %301 = arith.mulf %300, %118 : vector<2x256xf32>
    %302 = vector.broadcast %26 : f32 to vector<2x256xf32>
    %303 = arith.mulf %301, %302 : vector<2x256xf32>
    %304 = arith.addf %299, %303 : vector<2x256xf32>
    %305 = vector.extract_strided_slice %192 {offsets = [0, 49], sizes = [2, 256], strides = [1, 1]} : vector<2x358xf32> to vector<2x256xf32>
    %306 = arith.mulf %305, %130 : vector<2x256xf32>
    %307 = vector.broadcast %27 : f32 to vector<2x256xf32>
    %308 = arith.mulf %306, %307 : vector<2x256xf32>
    %309 = arith.addf %304, %308 : vector<2x256xf32>
    %310 = vector.extract_strided_slice %192 {offsets = [0, 50], sizes = [2, 256], strides = [1, 1]} : vector<2x358xf32> to vector<2x256xf32>
    %311 = arith.mulf %310, %142 : vector<2x256xf32>
    %312 = vector.broadcast %28 : f32 to vector<2x256xf32>
    %313 = arith.mulf %311, %312 : vector<2x256xf32>
    %314 = arith.addf %309, %313 : vector<2x256xf32>
    %315 = vector.extract_strided_slice %192 {offsets = [0, 51], sizes = [2, 256], strides = [1, 1]} : vector<2x358xf32> to vector<2x256xf32>
    %316 = arith.mulf %315, %154 : vector<2x256xf32>
    %317 = vector.broadcast %29 : f32 to vector<2x256xf32>
    %318 = arith.mulf %316, %317 : vector<2x256xf32>
    %319 = arith.addf %314, %318 : vector<2x256xf32>
    %320 = vector.extract_strided_slice %192 {offsets = [0, 52], sizes = [2, 256], strides = [1, 1]} : vector<2x358xf32> to vector<2x256xf32>
    %321 = arith.mulf %320, %166 : vector<2x256xf32>
    %322 = vector.broadcast %30 : f32 to vector<2x256xf32>
    %323 = arith.mulf %321, %322 : vector<2x256xf32>
    %324 = arith.addf %319, %323 : vector<2x256xf32>
    %325 = vector.extract_strided_slice %192 {offsets = [0, 53], sizes = [2, 256], strides = [1, 1]} : vector<2x358xf32> to vector<2x256xf32>
    %326 = arith.mulf %325, %178 : vector<2x256xf32>
    %327 = vector.broadcast %31 : f32 to vector<2x256xf32>
    %328 = arith.mulf %326, %327 : vector<2x256xf32>
    %329 = arith.addf %324, %328 : vector<2x256xf32>
    %330 = vector.extract_strided_slice %192 {offsets = [0, 54], sizes = [2, 256], strides = [1, 1]} : vector<2x358xf32> to vector<2x256xf32>
    %331 = arith.mulf %330, %190 : vector<2x256xf32>
    %332 = vector.broadcast %32 : f32 to vector<2x256xf32>
    %333 = arith.mulf %331, %332 : vector<2x256xf32>
    %334 = arith.addf %329, %333 : vector<2x256xf32>
    %335 = vector.extract_strided_slice %192 {offsets = [0, 64], sizes = [2, 256], strides = [1, 1]} : vector<2x358xf32> to vector<2x256xf32>
    %336 = arith.mulf %335, %118 : vector<2x256xf32>
    %337 = vector.broadcast %33 : f32 to vector<2x256xf32>
    %338 = arith.mulf %336, %337 : vector<2x256xf32>
    %339 = arith.addf %334, %338 : vector<2x256xf32>
    %340 = vector.extract_strided_slice %192 {offsets = [0, 65], sizes = [2, 256], strides = [1, 1]} : vector<2x358xf32> to vector<2x256xf32>
    %341 = arith.mulf %340, %130 : vector<2x256xf32>
    %342 = vector.broadcast %34 : f32 to vector<2x256xf32>
    %343 = arith.mulf %341, %342 : vector<2x256xf32>
    %344 = arith.addf %339, %343 : vector<2x256xf32>
    %345 = vector.extract_strided_slice %192 {offsets = [0, 66], sizes = [2, 256], strides = [1, 1]} : vector<2x358xf32> to vector<2x256xf32>
    %346 = arith.mulf %345, %142 : vector<2x256xf32>
    %347 = vector.broadcast %35 : f32 to vector<2x256xf32>
    %348 = arith.mulf %346, %347 : vector<2x256xf32>
    %349 = arith.addf %344, %348 : vector<2x256xf32>
    %350 = vector.extract_strided_slice %192 {offsets = [0, 67], sizes = [2, 256], strides = [1, 1]} : vector<2x358xf32> to vector<2x256xf32>
    %351 = arith.mulf %350, %154 : vector<2x256xf32>
    %352 = vector.broadcast %36 : f32 to vector<2x256xf32>
    %353 = arith.mulf %351, %352 : vector<2x256xf32>
    %354 = arith.addf %349, %353 : vector<2x256xf32>
    %355 = vector.extract_strided_slice %192 {offsets = [0, 68], sizes = [2, 256], strides = [1, 1]} : vector<2x358xf32> to vector<2x256xf32>
    %356 = arith.mulf %355, %166 : vector<2x256xf32>
    %357 = vector.broadcast %37 : f32 to vector<2x256xf32>
    %358 = arith.mulf %356, %357 : vector<2x256xf32>
    %359 = arith.addf %354, %358 : vector<2x256xf32>
    %360 = vector.extract_strided_slice %192 {offsets = [0, 69], sizes = [2, 256], strides = [1, 1]} : vector<2x358xf32> to vector<2x256xf32>
    %361 = arith.mulf %360, %178 : vector<2x256xf32>
    %362 = vector.broadcast %38 : f32 to vector<2x256xf32>
    %363 = arith.mulf %361, %362 : vector<2x256xf32>
    %364 = arith.addf %359, %363 : vector<2x256xf32>
    %365 = vector.extract_strided_slice %192 {offsets = [0, 70], sizes = [2, 256], strides = [1, 1]} : vector<2x358xf32> to vector<2x256xf32>
    %366 = arith.mulf %365, %190 : vector<2x256xf32>
    %367 = vector.broadcast %39 : f32 to vector<2x256xf32>
    %368 = arith.mulf %366, %367 : vector<2x256xf32>
    %369 = arith.addf %364, %368 : vector<2x256xf32>
    %370 = vector.extract_strided_slice %192 {offsets = [0, 80], sizes = [2, 256], strides = [1, 1]} : vector<2x358xf32> to vector<2x256xf32>
    %371 = arith.mulf %370, %118 : vector<2x256xf32>
    %372 = vector.broadcast %40 : f32 to vector<2x256xf32>
    %373 = arith.mulf %371, %372 : vector<2x256xf32>
    %374 = arith.addf %369, %373 : vector<2x256xf32>
    %375 = vector.extract_strided_slice %192 {offsets = [0, 81], sizes = [2, 256], strides = [1, 1]} : vector<2x358xf32> to vector<2x256xf32>
    %376 = arith.mulf %375, %130 : vector<2x256xf32>
    %377 = vector.broadcast %41 : f32 to vector<2x256xf32>
    %378 = arith.mulf %376, %377 : vector<2x256xf32>
    %379 = arith.addf %374, %378 : vector<2x256xf32>
    %380 = vector.extract_strided_slice %192 {offsets = [0, 82], sizes = [2, 256], strides = [1, 1]} : vector<2x358xf32> to vector<2x256xf32>
    %381 = arith.mulf %380, %142 : vector<2x256xf32>
    %382 = vector.broadcast %42 : f32 to vector<2x256xf32>
    %383 = arith.mulf %381, %382 : vector<2x256xf32>
    %384 = arith.addf %379, %383 : vector<2x256xf32>
    %385 = vector.extract_strided_slice %192 {offsets = [0, 83], sizes = [2, 256], strides = [1, 1]} : vector<2x358xf32> to vector<2x256xf32>
    %386 = arith.mulf %385, %154 : vector<2x256xf32>
    %387 = vector.broadcast %43 : f32 to vector<2x256xf32>
    %388 = arith.mulf %386, %387 : vector<2x256xf32>
    %389 = arith.addf %384, %388 : vector<2x256xf32>
    %390 = vector.extract_strided_slice %192 {offsets = [0, 84], sizes = [2, 256], strides = [1, 1]} : vector<2x358xf32> to vector<2x256xf32>
    %391 = arith.mulf %390, %166 : vector<2x256xf32>
    %392 = vector.broadcast %44 : f32 to vector<2x256xf32>
    %393 = arith.mulf %391, %392 : vector<2x256xf32>
    %394 = arith.addf %389, %393 : vector<2x256xf32>
    %395 = vector.extract_strided_slice %192 {offsets = [0, 85], sizes = [2, 256], strides = [1, 1]} : vector<2x358xf32> to vector<2x256xf32>
    %396 = arith.mulf %395, %178 : vector<2x256xf32>
    %397 = vector.broadcast %45 : f32 to vector<2x256xf32>
    %398 = arith.mulf %396, %397 : vector<2x256xf32>
    %399 = arith.addf %394, %398 : vector<2x256xf32>
    %400 = vector.extract_strided_slice %192 {offsets = [0, 86], sizes = [2, 256], strides = [1, 1]} : vector<2x358xf32> to vector<2x256xf32>
    %401 = arith.mulf %400, %190 : vector<2x256xf32>
    %402 = vector.broadcast %46 : f32 to vector<2x256xf32>
    %403 = arith.mulf %401, %402 : vector<2x256xf32>
    %404 = arith.addf %399, %403 : vector<2x256xf32>
    %405 = vector.extract_strided_slice %192 {offsets = [0, 96], sizes = [2, 256], strides = [1, 1]} : vector<2x358xf32> to vector<2x256xf32>
    %406 = arith.mulf %405, %118 : vector<2x256xf32>
    %407 = vector.broadcast %47 : f32 to vector<2x256xf32>
    %408 = arith.mulf %406, %407 : vector<2x256xf32>
    %409 = arith.addf %404, %408 : vector<2x256xf32>
    %410 = vector.extract_strided_slice %192 {offsets = [0, 97], sizes = [2, 256], strides = [1, 1]} : vector<2x358xf32> to vector<2x256xf32>
    %411 = arith.mulf %410, %130 : vector<2x256xf32>
    %412 = vector.broadcast %48 : f32 to vector<2x256xf32>
    %413 = arith.mulf %411, %412 : vector<2x256xf32>
    %414 = arith.addf %409, %413 : vector<2x256xf32>
    %415 = vector.extract_strided_slice %192 {offsets = [0, 98], sizes = [2, 256], strides = [1, 1]} : vector<2x358xf32> to vector<2x256xf32>
    %416 = arith.mulf %415, %142 : vector<2x256xf32>
    %417 = vector.broadcast %49 : f32 to vector<2x256xf32>
    %418 = arith.mulf %416, %417 : vector<2x256xf32>
    %419 = arith.addf %414, %418 : vector<2x256xf32>
    %420 = vector.extract_strided_slice %192 {offsets = [0, 99], sizes = [2, 256], strides = [1, 1]} : vector<2x358xf32> to vector<2x256xf32>
    %421 = arith.mulf %420, %154 : vector<2x256xf32>
    %422 = vector.broadcast %50 : f32 to vector<2x256xf32>
    %423 = arith.mulf %421, %422 : vector<2x256xf32>
    %424 = arith.addf %419, %423 : vector<2x256xf32>
    %425 = vector.extract_strided_slice %192 {offsets = [0, 100], sizes = [2, 256], strides = [1, 1]} : vector<2x358xf32> to vector<2x256xf32>
    %426 = arith.mulf %425, %166 : vector<2x256xf32>
    %427 = vector.broadcast %51 : f32 to vector<2x256xf32>
    %428 = arith.mulf %426, %427 : vector<2x256xf32>
    %429 = arith.addf %424, %428 : vector<2x256xf32>
    %430 = vector.extract_strided_slice %192 {offsets = [0, 101], sizes = [2, 256], strides = [1, 1]} : vector<2x358xf32> to vector<2x256xf32>
    %431 = arith.mulf %430, %178 : vector<2x256xf32>
    %432 = vector.broadcast %52 : f32 to vector<2x256xf32>
    %433 = arith.mulf %431, %432 : vector<2x256xf32>
    %434 = arith.addf %429, %433 : vector<2x256xf32>
    %435 = vector.extract_strided_slice %192 {offsets = [0, 102], sizes = [2, 256], strides = [1, 1]} : vector<2x358xf32> to vector<2x256xf32>
    %436 = arith.mulf %435, %190 : vector<2x256xf32>
    %437 = vector.broadcast %53 : f32 to vector<2x256xf32>
    %438 = arith.mulf %436, %437 : vector<2x256xf32>
    %439 = arith.addf %434, %438 : vector<2x256xf32>
    %440 = vector.extract_strided_slice %193 {offsets = [0, 0], sizes = [2, 256], strides = [1, 1]} : vector<2x358xf32> to vector<2x256xf32>
    %441 = arith.mulf %440, %118 : vector<2x256xf32>
    %442 = vector.broadcast %54 : f32 to vector<2x256xf32>
    %443 = arith.mulf %441, %442 : vector<2x256xf32>
    %444 = arith.addf %439, %443 : vector<2x256xf32>
    %445 = vector.extract_strided_slice %193 {offsets = [0, 1], sizes = [2, 256], strides = [1, 1]} : vector<2x358xf32> to vector<2x256xf32>
    %446 = arith.mulf %445, %130 : vector<2x256xf32>
    %447 = vector.broadcast %55 : f32 to vector<2x256xf32>
    %448 = arith.mulf %446, %447 : vector<2x256xf32>
    %449 = arith.addf %444, %448 : vector<2x256xf32>
    %450 = vector.extract_strided_slice %193 {offsets = [0, 2], sizes = [2, 256], strides = [1, 1]} : vector<2x358xf32> to vector<2x256xf32>
    %451 = arith.mulf %450, %142 : vector<2x256xf32>
    %452 = vector.broadcast %56 : f32 to vector<2x256xf32>
    %453 = arith.mulf %451, %452 : vector<2x256xf32>
    %454 = arith.addf %449, %453 : vector<2x256xf32>
    %455 = vector.extract_strided_slice %193 {offsets = [0, 3], sizes = [2, 256], strides = [1, 1]} : vector<2x358xf32> to vector<2x256xf32>
    %456 = arith.mulf %455, %154 : vector<2x256xf32>
    %457 = vector.broadcast %57 : f32 to vector<2x256xf32>
    %458 = arith.mulf %456, %457 : vector<2x256xf32>
    %459 = arith.addf %454, %458 : vector<2x256xf32>
    %460 = vector.extract_strided_slice %193 {offsets = [0, 4], sizes = [2, 256], strides = [1, 1]} : vector<2x358xf32> to vector<2x256xf32>
    %461 = arith.mulf %460, %166 : vector<2x256xf32>
    %462 = vector.broadcast %58 : f32 to vector<2x256xf32>
    %463 = arith.mulf %461, %462 : vector<2x256xf32>
    %464 = arith.addf %459, %463 : vector<2x256xf32>
    %465 = vector.extract_strided_slice %193 {offsets = [0, 5], sizes = [2, 256], strides = [1, 1]} : vector<2x358xf32> to vector<2x256xf32>
    %466 = arith.mulf %465, %178 : vector<2x256xf32>
    %467 = vector.broadcast %59 : f32 to vector<2x256xf32>
    %468 = arith.mulf %466, %467 : vector<2x256xf32>
    %469 = arith.addf %464, %468 : vector<2x256xf32>
    %470 = vector.extract_strided_slice %193 {offsets = [0, 6], sizes = [2, 256], strides = [1, 1]} : vector<2x358xf32> to vector<2x256xf32>
    %471 = arith.mulf %470, %190 : vector<2x256xf32>
    %472 = vector.broadcast %60 : f32 to vector<2x256xf32>
    %473 = arith.mulf %471, %472 : vector<2x256xf32>
    %474 = arith.addf %469, %473 : vector<2x256xf32>
    %475 = vector.extract_strided_slice %193 {offsets = [0, 16], sizes = [2, 256], strides = [1, 1]} : vector<2x358xf32> to vector<2x256xf32>
    %476 = arith.mulf %475, %118 : vector<2x256xf32>
    %477 = vector.broadcast %61 : f32 to vector<2x256xf32>
    %478 = arith.mulf %476, %477 : vector<2x256xf32>
    %479 = arith.addf %474, %478 : vector<2x256xf32>
    %480 = vector.extract_strided_slice %193 {offsets = [0, 17], sizes = [2, 256], strides = [1, 1]} : vector<2x358xf32> to vector<2x256xf32>
    %481 = arith.mulf %480, %130 : vector<2x256xf32>
    %482 = vector.broadcast %62 : f32 to vector<2x256xf32>
    %483 = arith.mulf %481, %482 : vector<2x256xf32>
    %484 = arith.addf %479, %483 : vector<2x256xf32>
    %485 = vector.extract_strided_slice %193 {offsets = [0, 18], sizes = [2, 256], strides = [1, 1]} : vector<2x358xf32> to vector<2x256xf32>
    %486 = arith.mulf %485, %142 : vector<2x256xf32>
    %487 = vector.broadcast %63 : f32 to vector<2x256xf32>
    %488 = arith.mulf %486, %487 : vector<2x256xf32>
    %489 = arith.addf %484, %488 : vector<2x256xf32>
    %490 = vector.extract_strided_slice %193 {offsets = [0, 19], sizes = [2, 256], strides = [1, 1]} : vector<2x358xf32> to vector<2x256xf32>
    %491 = arith.mulf %490, %154 : vector<2x256xf32>
    %492 = vector.broadcast %64 : f32 to vector<2x256xf32>
    %493 = arith.mulf %491, %492 : vector<2x256xf32>
    %494 = arith.addf %489, %493 : vector<2x256xf32>
    %495 = vector.extract_strided_slice %193 {offsets = [0, 20], sizes = [2, 256], strides = [1, 1]} : vector<2x358xf32> to vector<2x256xf32>
    %496 = arith.mulf %495, %166 : vector<2x256xf32>
    %497 = vector.broadcast %65 : f32 to vector<2x256xf32>
    %498 = arith.mulf %496, %497 : vector<2x256xf32>
    %499 = arith.addf %494, %498 : vector<2x256xf32>
    %500 = vector.extract_strided_slice %193 {offsets = [0, 21], sizes = [2, 256], strides = [1, 1]} : vector<2x358xf32> to vector<2x256xf32>
    %501 = arith.mulf %500, %178 : vector<2x256xf32>
    %502 = vector.broadcast %66 : f32 to vector<2x256xf32>
    %503 = arith.mulf %501, %502 : vector<2x256xf32>
    %504 = arith.addf %499, %503 : vector<2x256xf32>
    %505 = vector.extract_strided_slice %193 {offsets = [0, 22], sizes = [2, 256], strides = [1, 1]} : vector<2x358xf32> to vector<2x256xf32>
    %506 = arith.mulf %505, %190 : vector<2x256xf32>
    %507 = vector.broadcast %67 : f32 to vector<2x256xf32>
    %508 = arith.mulf %506, %507 : vector<2x256xf32>
    %509 = arith.addf %504, %508 : vector<2x256xf32>
    %510 = vector.extract_strided_slice %193 {offsets = [0, 32], sizes = [2, 256], strides = [1, 1]} : vector<2x358xf32> to vector<2x256xf32>
    %511 = arith.mulf %510, %118 : vector<2x256xf32>
    %512 = vector.broadcast %68 : f32 to vector<2x256xf32>
    %513 = arith.mulf %511, %512 : vector<2x256xf32>
    %514 = arith.addf %509, %513 : vector<2x256xf32>
    %515 = vector.extract_strided_slice %193 {offsets = [0, 33], sizes = [2, 256], strides = [1, 1]} : vector<2x358xf32> to vector<2x256xf32>
    %516 = arith.mulf %515, %130 : vector<2x256xf32>
    %517 = vector.broadcast %69 : f32 to vector<2x256xf32>
    %518 = arith.mulf %516, %517 : vector<2x256xf32>
    %519 = arith.addf %514, %518 : vector<2x256xf32>
    %520 = vector.extract_strided_slice %193 {offsets = [0, 34], sizes = [2, 256], strides = [1, 1]} : vector<2x358xf32> to vector<2x256xf32>
    %521 = arith.mulf %520, %142 : vector<2x256xf32>
    %522 = vector.broadcast %70 : f32 to vector<2x256xf32>
    %523 = arith.mulf %521, %522 : vector<2x256xf32>
    %524 = arith.addf %519, %523 : vector<2x256xf32>
    %525 = vector.extract_strided_slice %193 {offsets = [0, 35], sizes = [2, 256], strides = [1, 1]} : vector<2x358xf32> to vector<2x256xf32>
    %526 = arith.mulf %525, %154 : vector<2x256xf32>
    %527 = vector.broadcast %71 : f32 to vector<2x256xf32>
    %528 = arith.mulf %526, %527 : vector<2x256xf32>
    %529 = arith.addf %524, %528 : vector<2x256xf32>
    %530 = vector.extract_strided_slice %193 {offsets = [0, 36], sizes = [2, 256], strides = [1, 1]} : vector<2x358xf32> to vector<2x256xf32>
    %531 = arith.mulf %530, %166 : vector<2x256xf32>
    %532 = vector.broadcast %72 : f32 to vector<2x256xf32>
    %533 = arith.mulf %531, %532 : vector<2x256xf32>
    %534 = arith.addf %529, %533 : vector<2x256xf32>
    %535 = vector.extract_strided_slice %193 {offsets = [0, 37], sizes = [2, 256], strides = [1, 1]} : vector<2x358xf32> to vector<2x256xf32>
    %536 = arith.mulf %535, %178 : vector<2x256xf32>
    %537 = vector.broadcast %73 : f32 to vector<2x256xf32>
    %538 = arith.mulf %536, %537 : vector<2x256xf32>
    %539 = arith.addf %534, %538 : vector<2x256xf32>
    %540 = vector.extract_strided_slice %193 {offsets = [0, 38], sizes = [2, 256], strides = [1, 1]} : vector<2x358xf32> to vector<2x256xf32>
    %541 = arith.mulf %540, %190 : vector<2x256xf32>
    %542 = vector.broadcast %74 : f32 to vector<2x256xf32>
    %543 = arith.mulf %541, %542 : vector<2x256xf32>
    %544 = arith.addf %539, %543 : vector<2x256xf32>
    %545 = vector.extract_strided_slice %193 {offsets = [0, 48], sizes = [2, 256], strides = [1, 1]} : vector<2x358xf32> to vector<2x256xf32>
    %546 = arith.mulf %545, %118 : vector<2x256xf32>
    %547 = vector.broadcast %75 : f32 to vector<2x256xf32>
    %548 = arith.mulf %546, %547 : vector<2x256xf32>
    %549 = arith.addf %544, %548 : vector<2x256xf32>
    %550 = vector.extract_strided_slice %193 {offsets = [0, 49], sizes = [2, 256], strides = [1, 1]} : vector<2x358xf32> to vector<2x256xf32>
    %551 = arith.mulf %550, %130 : vector<2x256xf32>
    %552 = vector.broadcast %76 : f32 to vector<2x256xf32>
    %553 = arith.mulf %551, %552 : vector<2x256xf32>
    %554 = arith.addf %549, %553 : vector<2x256xf32>
    %555 = vector.extract_strided_slice %193 {offsets = [0, 50], sizes = [2, 256], strides = [1, 1]} : vector<2x358xf32> to vector<2x256xf32>
    %556 = arith.mulf %555, %142 : vector<2x256xf32>
    %557 = vector.broadcast %77 : f32 to vector<2x256xf32>
    %558 = arith.mulf %556, %557 : vector<2x256xf32>
    %559 = arith.addf %554, %558 : vector<2x256xf32>
    %560 = vector.extract_strided_slice %193 {offsets = [0, 51], sizes = [2, 256], strides = [1, 1]} : vector<2x358xf32> to vector<2x256xf32>
    %561 = arith.mulf %560, %154 : vector<2x256xf32>
    %562 = vector.broadcast %78 : f32 to vector<2x256xf32>
    %563 = arith.mulf %561, %562 : vector<2x256xf32>
    %564 = arith.addf %559, %563 : vector<2x256xf32>
    %565 = vector.extract_strided_slice %193 {offsets = [0, 52], sizes = [2, 256], strides = [1, 1]} : vector<2x358xf32> to vector<2x256xf32>
    %566 = arith.mulf %565, %166 : vector<2x256xf32>
    %567 = vector.broadcast %79 : f32 to vector<2x256xf32>
    %568 = arith.mulf %566, %567 : vector<2x256xf32>
    %569 = arith.addf %564, %568 : vector<2x256xf32>
    %570 = vector.extract_strided_slice %193 {offsets = [0, 53], sizes = [2, 256], strides = [1, 1]} : vector<2x358xf32> to vector<2x256xf32>
    %571 = arith.mulf %570, %178 : vector<2x256xf32>
    %572 = vector.broadcast %80 : f32 to vector<2x256xf32>
    %573 = arith.mulf %571, %572 : vector<2x256xf32>
    %574 = arith.addf %569, %573 : vector<2x256xf32>
    %575 = vector.extract_strided_slice %193 {offsets = [0, 54], sizes = [2, 256], strides = [1, 1]} : vector<2x358xf32> to vector<2x256xf32>
    %576 = arith.mulf %575, %190 : vector<2x256xf32>
    %577 = vector.broadcast %81 : f32 to vector<2x256xf32>
    %578 = arith.mulf %576, %577 : vector<2x256xf32>
    %579 = arith.addf %574, %578 : vector<2x256xf32>
    %580 = vector.extract_strided_slice %193 {offsets = [0, 64], sizes = [2, 256], strides = [1, 1]} : vector<2x358xf32> to vector<2x256xf32>
    %581 = arith.mulf %580, %118 : vector<2x256xf32>
    %582 = vector.broadcast %82 : f32 to vector<2x256xf32>
    %583 = arith.mulf %581, %582 : vector<2x256xf32>
    %584 = arith.addf %579, %583 : vector<2x256xf32>
    %585 = vector.extract_strided_slice %193 {offsets = [0, 65], sizes = [2, 256], strides = [1, 1]} : vector<2x358xf32> to vector<2x256xf32>
    %586 = arith.mulf %585, %130 : vector<2x256xf32>
    %587 = vector.broadcast %83 : f32 to vector<2x256xf32>
    %588 = arith.mulf %586, %587 : vector<2x256xf32>
    %589 = arith.addf %584, %588 : vector<2x256xf32>
    %590 = vector.extract_strided_slice %193 {offsets = [0, 66], sizes = [2, 256], strides = [1, 1]} : vector<2x358xf32> to vector<2x256xf32>
    %591 = arith.mulf %590, %142 : vector<2x256xf32>
    %592 = vector.broadcast %84 : f32 to vector<2x256xf32>
    %593 = arith.mulf %591, %592 : vector<2x256xf32>
    %594 = arith.addf %589, %593 : vector<2x256xf32>
    %595 = vector.extract_strided_slice %193 {offsets = [0, 67], sizes = [2, 256], strides = [1, 1]} : vector<2x358xf32> to vector<2x256xf32>
    %596 = arith.mulf %595, %154 : vector<2x256xf32>
    %597 = vector.broadcast %85 : f32 to vector<2x256xf32>
    %598 = arith.mulf %596, %597 : vector<2x256xf32>
    %599 = arith.addf %594, %598 : vector<2x256xf32>
    %600 = vector.extract_strided_slice %193 {offsets = [0, 68], sizes = [2, 256], strides = [1, 1]} : vector<2x358xf32> to vector<2x256xf32>
    %601 = arith.mulf %600, %166 : vector<2x256xf32>
    %602 = vector.broadcast %86 : f32 to vector<2x256xf32>
    %603 = arith.mulf %601, %602 : vector<2x256xf32>
    %604 = arith.addf %599, %603 : vector<2x256xf32>
    %605 = vector.extract_strided_slice %193 {offsets = [0, 69], sizes = [2, 256], strides = [1, 1]} : vector<2x358xf32> to vector<2x256xf32>
    %606 = arith.mulf %605, %178 : vector<2x256xf32>
    %607 = vector.broadcast %87 : f32 to vector<2x256xf32>
    %608 = arith.mulf %606, %607 : vector<2x256xf32>
    %609 = arith.addf %604, %608 : vector<2x256xf32>
    %610 = vector.extract_strided_slice %193 {offsets = [0, 70], sizes = [2, 256], strides = [1, 1]} : vector<2x358xf32> to vector<2x256xf32>
    %611 = arith.mulf %610, %190 : vector<2x256xf32>
    %612 = vector.broadcast %88 : f32 to vector<2x256xf32>
    %613 = arith.mulf %611, %612 : vector<2x256xf32>
    %614 = arith.addf %609, %613 : vector<2x256xf32>
    %615 = vector.extract_strided_slice %193 {offsets = [0, 80], sizes = [2, 256], strides = [1, 1]} : vector<2x358xf32> to vector<2x256xf32>
    %616 = arith.mulf %615, %118 : vector<2x256xf32>
    %617 = vector.broadcast %89 : f32 to vector<2x256xf32>
    %618 = arith.mulf %616, %617 : vector<2x256xf32>
    %619 = arith.addf %614, %618 : vector<2x256xf32>
    %620 = vector.extract_strided_slice %193 {offsets = [0, 81], sizes = [2, 256], strides = [1, 1]} : vector<2x358xf32> to vector<2x256xf32>
    %621 = arith.mulf %620, %130 : vector<2x256xf32>
    %622 = vector.broadcast %90 : f32 to vector<2x256xf32>
    %623 = arith.mulf %621, %622 : vector<2x256xf32>
    %624 = arith.addf %619, %623 : vector<2x256xf32>
    %625 = vector.extract_strided_slice %193 {offsets = [0, 82], sizes = [2, 256], strides = [1, 1]} : vector<2x358xf32> to vector<2x256xf32>
    %626 = arith.mulf %625, %142 : vector<2x256xf32>
    %627 = vector.broadcast %91 : f32 to vector<2x256xf32>
    %628 = arith.mulf %626, %627 : vector<2x256xf32>
    %629 = arith.addf %624, %628 : vector<2x256xf32>
    %630 = vector.extract_strided_slice %193 {offsets = [0, 83], sizes = [2, 256], strides = [1, 1]} : vector<2x358xf32> to vector<2x256xf32>
    %631 = arith.mulf %630, %154 : vector<2x256xf32>
    %632 = vector.broadcast %92 : f32 to vector<2x256xf32>
    %633 = arith.mulf %631, %632 : vector<2x256xf32>
    %634 = arith.addf %629, %633 : vector<2x256xf32>
    %635 = vector.extract_strided_slice %193 {offsets = [0, 84], sizes = [2, 256], strides = [1, 1]} : vector<2x358xf32> to vector<2x256xf32>
    %636 = arith.mulf %635, %166 : vector<2x256xf32>
    %637 = vector.broadcast %93 : f32 to vector<2x256xf32>
    %638 = arith.mulf %636, %637 : vector<2x256xf32>
    %639 = arith.addf %634, %638 : vector<2x256xf32>
    %640 = vector.extract_strided_slice %193 {offsets = [0, 85], sizes = [2, 256], strides = [1, 1]} : vector<2x358xf32> to vector<2x256xf32>
    %641 = arith.mulf %640, %178 : vector<2x256xf32>
    %642 = vector.broadcast %94 : f32 to vector<2x256xf32>
    %643 = arith.mulf %641, %642 : vector<2x256xf32>
    %644 = arith.addf %639, %643 : vector<2x256xf32>
    %645 = vector.extract_strided_slice %193 {offsets = [0, 86], sizes = [2, 256], strides = [1, 1]} : vector<2x358xf32> to vector<2x256xf32>
    %646 = arith.mulf %645, %190 : vector<2x256xf32>
    %647 = vector.broadcast %95 : f32 to vector<2x256xf32>
    %648 = arith.mulf %646, %647 : vector<2x256xf32>
    %649 = arith.addf %644, %648 : vector<2x256xf32>
    %650 = vector.extract_strided_slice %193 {offsets = [0, 96], sizes = [2, 256], strides = [1, 1]} : vector<2x358xf32> to vector<2x256xf32>
    %651 = arith.mulf %650, %118 : vector<2x256xf32>
    %652 = vector.broadcast %96 : f32 to vector<2x256xf32>
    %653 = arith.mulf %651, %652 : vector<2x256xf32>
    %654 = arith.addf %649, %653 : vector<2x256xf32>
    %655 = vector.extract_strided_slice %193 {offsets = [0, 97], sizes = [2, 256], strides = [1, 1]} : vector<2x358xf32> to vector<2x256xf32>
    %656 = arith.mulf %655, %130 : vector<2x256xf32>
    %657 = vector.broadcast %97 : f32 to vector<2x256xf32>
    %658 = arith.mulf %656, %657 : vector<2x256xf32>
    %659 = arith.addf %654, %658 : vector<2x256xf32>
    %660 = vector.extract_strided_slice %193 {offsets = [0, 98], sizes = [2, 256], strides = [1, 1]} : vector<2x358xf32> to vector<2x256xf32>
    %661 = arith.mulf %660, %142 : vector<2x256xf32>
    %662 = vector.broadcast %98 : f32 to vector<2x256xf32>
    %663 = arith.mulf %661, %662 : vector<2x256xf32>
    %664 = arith.addf %659, %663 : vector<2x256xf32>
    %665 = vector.extract_strided_slice %193 {offsets = [0, 99], sizes = [2, 256], strides = [1, 1]} : vector<2x358xf32> to vector<2x256xf32>
    %666 = arith.mulf %665, %154 : vector<2x256xf32>
    %667 = vector.broadcast %99 : f32 to vector<2x256xf32>
    %668 = arith.mulf %666, %667 : vector<2x256xf32>
    %669 = arith.addf %664, %668 : vector<2x256xf32>
    %670 = vector.extract_strided_slice %193 {offsets = [0, 100], sizes = [2, 256], strides = [1, 1]} : vector<2x358xf32> to vector<2x256xf32>
    %671 = arith.mulf %670, %166 : vector<2x256xf32>
    %672 = vector.broadcast %100 : f32 to vector<2x256xf32>
    %673 = arith.mulf %671, %672 : vector<2x256xf32>
    %674 = arith.addf %669, %673 : vector<2x256xf32>
    %675 = vector.extract_strided_slice %193 {offsets = [0, 101], sizes = [2, 256], strides = [1, 1]} : vector<2x358xf32> to vector<2x256xf32>
    %676 = arith.mulf %675, %178 : vector<2x256xf32>
    %677 = vector.broadcast %101 : f32 to vector<2x256xf32>
    %678 = arith.mulf %676, %677 : vector<2x256xf32>
    %679 = arith.addf %674, %678 : vector<2x256xf32>
    %680 = vector.extract_strided_slice %193 {offsets = [0, 102], sizes = [2, 256], strides = [1, 1]} : vector<2x358xf32> to vector<2x256xf32>
    %681 = arith.mulf %680, %190 : vector<2x256xf32>
    %682 = vector.broadcast %102 : f32 to vector<2x256xf32>
    %683 = arith.mulf %681, %682 : vector<2x256xf32>
    %684 = arith.addf %679, %683 : vector<2x256xf32>
    %685 = arith.negf %684 : vector<2x256xf32>
    %686 = math.exp %685 : vector<2x256xf32>
    %cst_41 = arith.constant 1.000000e+00 : f32
    %687 = vector.broadcast %cst_41 : f32 to vector<2x256xf32>
    %688 = arith.addf %687, %686 : vector<2x256xf32>
    %689 = arith.divf %687, %688 : vector<2x256xf32>
    %c0_42 = arith.constant 0 : index
    %c0_43 = arith.constant 0 : index
    %690 = vector.load %arg4[%c0_42, %c0_43] : memref<2x256xf32, #tpu.memory_space<vmem>>, vector<2x256xf32>
    tpu.vector_store %arg4[%c0_42, %c0_43], %689 {strides = array<i32>} : memref<2x256xf32, #tpu.memory_space<vmem>>, vector<2x256xf32>,
    return
  }
  func.func @transform_0(%arg0: i32) -> (i32, i32, i32) {
    %c0_i32 = arith.constant 0 : i32
    %c0_i32_0 = arith.constant 0 : i32
    %c0_i32_1 = arith.constant 0 : i32
    return %arg0, %c0_i32, %c0_i32_0 : i32, i32, i32
  }
  func.func @transform_1(%arg0: i32) -> i32 {
    %c0_i32 = arith.constant 0 : i32
    %c0_i32_0 = arith.constant 0 : i32
    return %c0_i32 : i32
  }
  func.func @transform_2(%arg0: i32) -> i32 {
    %c0_i32 = arith.constant 0 : i32
    %c0_i32_0 = arith.constant 0 : i32
    return %c0_i32 : i32
  }
  func.func @transform_3(%arg0: i32) -> (i32, i32) {
    %c0_i32 = arith.constant 0 : i32
    %c0_i32_0 = arith.constant 0 : i32
    return %arg0, %c0_i32 : i32, i32
  }
}

</mosaic_0001>

<llo_original>
// kernel: tpu_custom_call.1
$region0: #{tpu_custom_call.1}
  #allocation0 [shape = 'u32[]', space=smem, size = 0x4, offset = 0x4, fixed_abs, tag = 'smem constant byte address 0x4 - core index']
  #allocation1 [shape = 'u32[72,128]{1,0:T(1,128)}', space=vmem, size = 0x9000, scoped, tag = 'internal scratch']
  #allocation2 [shape = 'f32[1]{0:T(128)S(6)}', space=smem, size = 0x200, scoped, tag = 'scoped memory for tpu_custom_call.1']
  %s0 = inlined_call_operand.hbm [shape: f32[2,4,256], index: 0, kind: input, shape index: {}]
  %s1 = inlined_call_operand.vmem [shape: f32[98], index: 1, kind: input, shape index: {}]
  %s2 = inlined_call_operand.<no memory space> [shape: f32[1], index: 2, kind: input, shape index: {}]
  %s3 = inlined_call_operand.hbm [shape: f32[2,256], index: 3, kind: output, shape index: {}]
  %s4 = sld [smem:[#allocation0]]
  $region30: #{tpu_custom_call.1} parent=0
    _
  %s6 = ssub.s32 1, %s4
  %s7 = scalar_select 0, %s6, %s4
  %8 = sst [smem:[#allocation2]] %s2
  $region1: #{tpu_custom_call.1} parent=0
    #allocation3 [shape = 'u8[8192]{0}', space=vmem, size = 0x2000, scoped, tag = 'input window, operand 0, single buffered']
    #allocation4 [shape = 's32[1]{0}', space=sflag, size = 0x4, scoped, tag = 'scoped memory for tpu_custom_call.1']
    #allocation5 [shape = 's32[1]{0}', space=sflag, size = 0x4, scoped, tag = 'scoped memory for tpu_custom_call.1']
    #allocation6 [shape = 's32[1]{0}', space=sflag, size = 0x4, scoped, tag = 'scoped memory for tpu_custom_call.1']
    #allocation7 [shape = 'u8[512]{0}', space=smem, size = 0x200, scoped, tag = 'input window, operand 1, single buffered']
    #allocation8 [shape = 'u8[2048]{0}', space=vmem, size = 0x800, scoped, tag = 'output window, operand 0, single buffered']
    %9 = vsyncpa [#allocation4], 0
    %10 = vsyncpa [#allocation6], 0
    %11 = vsyncpa [#allocation5], 0
    // Predicated region
    $region2: #{tpu_custom_call.1} parent=1 // pred_check
      _
    $region3: #{tpu_custom_call.1} parent=1 // pred_check_branch
      %13 = sbr.rel (0) target = $region5
    $region4: #{tpu_custom_call.1} parent=1 // pred_region
      %15 = vsyncadd [#allocation4], 0
      %s16 = sshll.u32 %s0, 4
      %s17 = int_to_ptr.hbm [resolvable:$true] %s16
      %s18 = sshll.u32 [#allocation3], 4
      %s19 = int_to_ptr.vmem [resolvable:$true] %s18
      %24 = dma.hbm_to_vmem [thread:$0]  %s17, 256, %s19, [#allocation4], 128, 128, 8
    $region5: #{tpu_custom_call.1} parent=1 // pred_fallthru
      _
    // Predicated region
    $region6: #{tpu_custom_call.1} parent=1 // pred_check
      _
    $region7: #{tpu_custom_call.1} parent=1 // pred_check_branch
      %26 = sbr.rel (0) target = $region9
    $region8: #{tpu_custom_call.1} parent=1 // pred_region
      %28 = vsyncadd [#allocation6], 0
      %s30 = sshll.u32 %s1, 4
      %s31 = int_to_ptr.vmem [resolvable:$true] %s30
      %33 = dma.vmem_to_smem %s31, 16, [#allocation7], [#allocation6]
    $region9: #{tpu_custom_call.1} parent=1 // pred_fallthru
      _
    // Predicated region
    $region10: #{tpu_custom_call.1} parent=1 // pred_check
      _
    $region11: #{tpu_custom_call.1} parent=1 // pred_check_branch
      %35 = sbr.rel (0) target = $region13
    $region12: #{tpu_custom_call.1} parent=1 // pred_region
      _
    $region13: #{tpu_custom_call.1} parent=1 // pred_fallthru
      _
    // Predicated region
    $region14: #{tpu_custom_call.1} parent=1 // pred_check
      _
    $region15: #{tpu_custom_call.1} parent=1 // pred_check_branch
      %37 = sbr.rel (0) target = $region17
    $region16: #{tpu_custom_call.1} parent=1 // pred_region
      %39 = dma.done [#allocation4], 256
    $region17: #{tpu_custom_call.1} parent=1 // pred_fallthru
      _
    // Predicated region
    $region18: #{tpu_custom_call.1} parent=1 // pred_check
      _
    $region19: #{tpu_custom_call.1} parent=1 // pred_check_branch
      %41 = sbr.rel (0) target = $region21
    $region20: #{tpu_custom_call.1} parent=1 // pred_region
      %43 = dma.done [#allocation6], 16
    $region21: #{tpu_custom_call.1} parent=1 // pred_fallthru
      _
    %44 = sfence
    %v45 = vld [vmem:[#allocation3] sm:$0xff]
    %v46 = vld [vmem:[#allocation3 + $0x8] sm:$0xff]
    %49 = vst [vmem:[#allocation1] ss:$2 sm:$0xff] %v45
    %v50 = vld.sshfl [vmem:[#allocation1] sm:$0xff pattern:$0x75316420]
    %v51 = vld.sshfl [vmem:[#allocation1 + $0x8] sm:$0xff pattern:$0x75316420]
    %s52 = scalar_lea.vmem [#allocation1], 16
    %53 = vst [vmem:[%s52] ss:$2 sm:$0xff] %v46
    %v54 = vld.sshfl [vmem:[#allocation1 + $0x10] sm:$0xff pattern:$0x75316420]
    %v55 = vld.sshfl [vmem:[#allocation1 + $0x18] sm:$0xff pattern:$0x75316420]
    %vm60 = vcmask 1043456
    %v61 = vsel %vm60, %v50, 0.0
    %v62 = vrot.slane %v61, 4
    %v63 = vadd.f32 %v61, %v62
    %v64 = vrot.slane %v63, 2
    %v65 = vadd.f32 %v63, %v64
    %v66 = vrot.slane %v65, 1
    %v67 = vadd.f32 %v65, %v66
    %v68 = vsel %vm60, %v51, 0.0
    %v69 = vrot.slane %v68, 4
    %v70 = vadd.f32 %v68, %v69
    %v71 = vrot.slane %v70, 2
    %v72 = vadd.f32 %v70, %v71
    %v73 = vrot.slane %v72, 1
    %v74 = vadd.f32 %v72, %v73
    %v75 = vsel %vm60, %v54, 0.0
    %v76 = vrot.slane %v75, 4
    %v77 = vadd.f32 %v75, %v76
    %v78 = vrot.slane %v77, 2
    %v79 = vadd.f32 %v77, %v78
    %v80 = vrot.slane %v79, 1
    %v81 = vadd.f32 %v79, %v80
    %v82 = vsel %vm60, %v55, 0.0
    %v83 = vrot.slane %v82, 4
    %v84 = vadd.f32 %v82, %v83
    %v85 = vrot.slane %v84, 2
    %v86 = vadd.f32 %v84, %v85
    %v87 = vrot.slane %v86, 1
    %v88 = vadd.f32 %v86, %v87
    %v89 = vrcp.pop 4.0
    %v90 = vmul.f32 4.0, %v89
    %v91 = vsub.f32 1.0, %v90
    %v92 = vmul.f32 %v89, %v91
    %v93 = vadd.f32 %v89, %v92
    %vm94 = vweird.f32 %v89
    %v95 = vsel %vm94, %v89, %v93
    %v96 = vmul.f32 %v67, %v95
    %v97 = vmul.f32 %v74, %v95
    %v98 = vmul.f32 %v81, %v95
    %v99 = vmul.f32 %v88, %v95
    %100 = vst [vmem:[#allocation1] ss:$2 sm:$0xff] %v45
    %v101 = vld.sshfl [vmem:[#allocation1] sm:$0xff pattern:$0x75316420]
    %v102 = vld.sshfl [vmem:[#allocation1 + $0x8] sm:$0xff pattern:$0x75316420]
    %s103 = scalar_lea.vmem [#allocation1], 16
    %104 = vst [vmem:[%s103] ss:$2 sm:$0xff] %v46
    %v105 = vld.sshfl [vmem:[#allocation1 + $0x10] sm:$0xff pattern:$0x75316420]
    %v106 = vld.sshfl [vmem:[#allocation1 + $0x18] sm:$0xff pattern:$0x75316420]
    %v111 = vsel %vm60, %v101, -inf
    %v112 = vrot.slane %v111, 4
    %v113 = vmax.f32 %v111, %v112
    %v114 = vrot.slane %v113, 2
    %v115 = vmax.f32 %v113, %v114
    %v116 = vrot.slane %v115, 1
    %v117 = vmax.f32 %v115, %v116
    %v118 = vsel %vm60, %v102, -inf
    %v119 = vrot.slane %v118, 4
    %v120 = vmax.f32 %v118, %v119
    %v121 = vrot.slane %v120, 2
    %v122 = vmax.f32 %v120, %v121
    %v123 = vrot.slane %v122, 1
    %v124 = vmax.f32 %v122, %v123
    %v125 = vsel %vm60, %v105, -inf
    %v126 = vrot.slane %v125, 4
    %v127 = vmax.f32 %v125, %v126
    %v128 = vrot.slane %v127, 2
    %v129 = vmax.f32 %v127, %v128
    %v130 = vrot.slane %v129, 1
    %v131 = vmax.f32 %v129, %v130
    %v132 = vsel %vm60, %v106, -inf
    %v133 = vrot.slane %v132, 4
    %v134 = vmax.f32 %v132, %v133
    %v135 = vrot.slane %v134, 2
    %v136 = vmax.f32 %v134, %v135
    %v137 = vrot.slane %v136, 1
    %v138 = vmax.f32 %v136, %v137
    %s139 = sld [smem:[#allocation7]]
    %s140 = sld [smem:[#allocation7 + $0x1]]
    %s141 = sld [smem:[#allocation7 + $0x2]]
    %s142 = sld [smem:[#allocation7 + $0x3]]
    %s143 = sld [smem:[#allocation7 + $0x4]]
    %s144 = sld [smem:[#allocation7 + $0x5]]
    %s145 = sld [smem:[#allocation7 + $0x6]]
    %s146 = sld [smem:[#allocation7 + $0x7]]
    %s147 = sld [smem:[#allocation7 + $0x8]]
    %s148 = sld [smem:[#allocation7 + $0x9]]
    %s149 = sld [smem:[#allocation7 + $0xa]]
    %s150 = sld [smem:[#allocation7 + $0xb]]
    %s151 = sld [smem:[#allocation7 + $0xc]]
    %s152 = sld [smem:[#allocation7 + $0xd]]
    %s153 = sld [smem:[#allocation7 + $0xe]]
    %s154 = sld [smem:[#allocation7 + $0xf]]
    %s155 = sld [smem:[#allocation7 + $0x10]]
    %s156 = sld [smem:[#allocation7 + $0x11]]
    %s157 = sld [smem:[#allocation7 + $0x12]]
    %s158 = sld [smem:[#allocation7 + $0x13]]
    %s159 = sld [smem:[#allocation7 + $0x14]]
    %s160 = sld [smem:[#allocation7 + $0x15]]
    %s161 = sld [smem:[#allocation7 + $0x16]]
    %s162 = sld [smem:[#allocation7 + $0x17]]
    %s163 = sld [smem:[#allocation7 + $0x18]]
    %s164 = sld [smem:[#allocation7 + $0x19]]
    %s165 = sld [smem:[#allocation7 + $0x1a]]
    %s166 = sld [smem:[#allocation7 + $0x1b]]
    %s167 = sld [smem:[#allocation7 + $0x1c]]
    %s168 = sld [smem:[#allocation7 + $0x1d]]
    %s169 = sld [smem:[#allocation7 + $0x1e]]
    %s170 = sld [smem:[#allocation7 + $0x1f]]
    %s171 = sld [smem:[#allocation7 + $0x20]]
    %s172 = sld [smem:[#allocation7 + $0x21]]
    %s173 = sld [smem:[#allocation7 + $0x22]]
    %s174 = sld [smem:[#allocation7 + $0x23]]
    %s175 = sld [smem:[#allocation7 + $0x24]]
    %s176 = sld [smem:[#allocation7 + $0x25]]
    %s177 = sld [smem:[#allocation7 + $0x26]]
    %s178 = sld [smem:[#allocation7 + $0x27]]
    %s179 = sld [smem:[#allocation7 + $0x28]]
    %s180 = sld [smem:[#allocation7 + $0x29]]
    %s181 = sld [smem:[#allocation7 + $0x2a]]
    %s182 = sld [smem:[#allocation7 + $0x2b]]
    %s183 = sld [smem:[#allocation7 + $0x2c]]
    %s184 = sld [smem:[#allocation7 + $0x2d]]
    %s185 = sld [smem:[#allocation7 + $0x2e]]
    %s186 = sld [smem:[#allocation7 + $0x2f]]
    %s187 = sld [smem:[#allocation7 + $0x30]]
    %s188 = sld [smem:[#allocation7 + $0x31]]
    %s189 = sld [smem:[#allocation7 + $0x32]]
    %s190 = sld [smem:[#allocation7 + $0x33]]
    %s191 = sld [smem:[#allocation7 + $0x34]]
    %s192 = sld [smem:[#allocation7 + $0x35]]
    %s193 = sld [smem:[#allocation7 + $0x36]]
    %s194 = sld [smem:[#allocation7 + $0x37]]
    %s195 = sld [smem:[#allocation7 + $0x38]]
    %s196 = sld [smem:[#allocation7 + $0x39]]
    %s197 = sld [smem:[#allocation7 + $0x3a]]
    %s198 = sld [smem:[#allocation7 + $0x3b]]
    %s199 = sld [smem:[#allocation7 + $0x3c]]
    %s200 = sld [smem:[#allocation7 + $0x3d]]
    %s201 = sld [smem:[#allocation7 + $0x3e]]
    %s202 = sld [smem:[#allocation7 + $0x3f]]
    %s203 = sld [smem:[#allocation7 + $0x40]]
    %s204 = sld [smem:[#allocation7 + $0x41]]
    %s205 = sld [smem:[#allocation7 + $0x42]]
    %s206 = sld [smem:[#allocation7 + $0x43]]
    %s207 = sld [smem:[#allocation7 + $0x44]]
    %s208 = sld [smem:[#allocation7 + $0x45]]
    %s209 = sld [smem:[#allocation7 + $0x46]]
    %s210 = sld [smem:[#allocation7 + $0x47]]
    %s211 = sld [smem:[#allocation7 + $0x48]]
    %s212 = sld [smem:[#allocation7 + $0x49]]
    %s213 = sld [smem:[#allocation7 + $0x4a]]
    %s214 = sld [smem:[#allocation7 + $0x4b]]
    %s215 = sld [smem:[#allocation7 + $0x4c]]
    %s216 = sld [smem:[#allocation7 + $0x4d]]
    %s217 = sld [smem:[#allocation7 + $0x4e]]
    %s218 = sld [smem:[#allocation7 + $0x4f]]
    %s219 = sld [smem:[#allocation7 + $0x50]]
    %s220 = sld [smem:[#allocation7 + $0x51]]
    %s221 = sld [smem:[#allocation7 + $0x52]]
    %s222 = sld [smem:[#allocation7 + $0x53]]
    %s223 = sld [smem:[#allocation7 + $0x54]]
    %s224 = sld [smem:[#allocation7 + $0x55]]
    %s225 = sld [smem:[#allocation7 + $0x56]]
    %s226 = sld [smem:[#allocation7 + $0x57]]
    %s227 = sld [smem:[#allocation7 + $0x58]]
    %s228 = sld [smem:[#allocation7 + $0x59]]
    %s229 = sld [smem:[#allocation7 + $0x5a]]
    %s230 = sld [smem:[#allocation7 + $0x5b]]
    %s231 = sld [smem:[#allocation7 + $0x5c]]
    %s232 = sld [smem:[#allocation7 + $0x5d]]
    %s233 = sld [smem:[#allocation7 + $0x5e]]
    %s234 = sld [smem:[#allocation7 + $0x5f]]
    %s235 = sld [smem:[#allocation7 + $0x60]]
    %s236 = sld [smem:[#allocation7 + $0x61]]
    %s237 = sld [smem:[#allocation2]]
    %v238 = vlaneseq
    %v239 = vand.u32 %v238, 127
    %v240 = vadd.s32 %v239, 128
    %v241 = vand.u32 %v239, 15
    %v242 = vand.u32 %v240, 15
    %v243 = vadd.s32 %v241, 4294967293
    %v244 = vadd.s32 %v242, 4294967293
    %vm245 = vcmp.ge.s32.totalorder %v243, 0
    %vm246 = vcmp.ge.s32.totalorder %v244, 0
    %vm247 = vcmp.lt.s32.totalorder %v243, 16
    %vm248 = vcmp.lt.s32.totalorder %v244, 16
    %vm249 = vmand %vm245, %vm247
    %vm250 = vmand %vm246, %vm248
    %v251 = vsel %vm249, 1.0, 0.0
    %v252 = vsel %vm250, 1.0, 0.0
    %v253 = vadd.s32 %v241, 4294967294
    %v254 = vadd.s32 %v242, 4294967294
    %vm255 = vcmp.ge.s32.totalorder %v253, 0
    %vm256 = vcmp.ge.s32.totalorder %v254, 0
    %vm257 = vcmp.lt.s32.totalorder %v253, 16
    %vm258 = vcmp.lt.s32.totalorder %v254, 16
    %vm259 = vmand %vm255, %vm257
    %vm260 = vmand %vm256, %vm258
    %v261 = vsel %vm259, 1.0, 0.0
    %v262 = vsel %vm260, 1.0, 0.0
    %v263 = vadd.s32 %v241, 4294967295
    %v264 = vadd.s32 %v242, 4294967295
    %vm265 = vcmp.ge.s32.totalorder %v263, 0
    %vm266 = vcmp.ge.s32.totalorder %v264, 0
    %vm267 = vcmp.lt.s32.totalorder %v263, 16
    %vm268 = vcmp.lt.s32.totalorder %v264, 16
    %vm269 = vmand %vm265, %vm267
    %vm270 = vmand %vm266, %vm268
    %v271 = vsel %vm269, 1.0, 0.0
    %v272 = vsel %vm270, 1.0, 0.0
    %vm273 = vcmp.ge.s32.totalorder %v241, 0
    %vm274 = vcmp.ge.s32.totalorder %v242, 0
    %vm275 = vcmp.lt.s32.totalorder %v241, 16
    %vm276 = vcmp.lt.s32.totalorder %v242, 16
    %vm277 = vmand %vm273, %vm275
    %vm278 = vmand %vm274, %vm276
    %v279 = vsel %vm277, 1.0, 0.0
    %v280 = vsel %vm278, 1.0, 0.0
    %v281 = vadd.s32 %v241, 1
    %v282 = vadd.s32 %v242, 1
    %vm283 = vcmp.ge.s32.totalorder %v281, 0
    %vm284 = vcmp.ge.s32.totalorder %v282, 0
    %vm285 = vcmp.lt.s32.totalorder %v281, 16
    %vm286 = vcmp.lt.s32.totalorder %v282, 16
    %vm287 = vmand %vm283, %vm285
    %vm288 = vmand %vm284, %vm286
    %v289 = vsel %vm287, 1.0, 0.0
    %v290 = vsel %vm288, 1.0, 0.0
    %v291 = vadd.s32 %v241, 2
    %v292 = vadd.s32 %v242, 2
    %vm293 = vcmp.ge.s32.totalorder %v291, 0
    %vm294 = vcmp.ge.s32.totalorder %v292, 0
    %vm295 = vcmp.lt.s32.totalorder %v291, 16
    %vm296 = vcmp.lt.s32.totalorder %v292, 16
    %vm297 = vmand %vm293, %vm295
    %vm298 = vmand %vm294, %vm296
    %v299 = vsel %vm297, 1.0, 0.0
    %v300 = vsel %vm298, 1.0, 0.0
    %v301 = vadd.s32 %v241, 3
    %v302 = vadd.s32 %v242, 3
    %vm303 = vcmp.ge.s32.totalorder %v301, 0
    %vm304 = vcmp.ge.s32.totalorder %v302, 0
    %vm305 = vcmp.lt.s32.totalorder %v301, 16
    %vm306 = vcmp.lt.s32.totalorder %v302, 16
    %vm307 = vmand %vm303, %vm305
    %vm308 = vmand %vm304, %vm306
    %v309 = vsel %vm307, 1.0, 0.0
    %v310 = vsel %vm308, 1.0, 0.0
    %vm315 = vcmask 1041409
    %v316 = vsel %vm315, %v98, %v96
    %v317 = vsel %vm315, %v99, %v97
    %318 = vrot.lane.b32.xlu0 %v316, 51
    %v319 = vpop.permute.xlu0 %318
    %320 = vrot.lane.b32.xlu0 %v317, 51
    %v321 = vpop.permute.xlu0 %320
    %vm322 = vcmask 416768
    %v323 = vsel %vm322, %v319, %v321
    %v327 = vsel %vm322, 0.0, %v319
    %v328 = vsel %vm322, %v321, 0.0
    %v333 = vsel %vm315, %v131, %v117
    %v334 = vsel %vm315, %v138, %v124
    %335 = vrot.lane.b32.xlu0 %v333, 51
    %v336 = vpop.permute.xlu0 %335
    %337 = vrot.lane.b32.xlu0 %v334, 51
    %v338 = vpop.permute.xlu0 %337
    %v339 = vsel %vm322, %v336, %v338
    %v343 = vsel %vm322, 0.0, %v336
    %v344 = vsel %vm322, %v338, 0.0
    %v345 = vstv %s237
    %v346 = vmul.f32 %v327, %v251
    %v347 = vmul.f32 %v323, %v252
    %v348 = vstv %s139
    %v349 = vmul.f32 %v346, %v348
    %v350 = vmul.f32 %v347, %v348
    %v351 = vadd.f32 %v345, %v349
    %v352 = vadd.f32 %v345, %v350
    %355 = vrot.lane.b32.xlu0 %v261, 1
    %v356 = vpop.permute.xlu0 %355
    %357 = vrot.lane.b32.xlu0 %v262, 1
    %v358 = vpop.permute.xlu0 %357
    %vm359 = vcmask 7168
    %v360 = vsel %vm359, %v356, %v358
    %v364 = vmul.f32 %v327, %v356
    %v365 = vmul.f32 %v323, %v360
    %v366 = vmul.f32 %v328, %v358
    %v367 = vstv %s140
    %v368 = vmul.f32 %v364, %v367
    %v369 = vmul.f32 %v365, %v367
    %v370 = vmul.f32 %v366, %v367
    %374 = vrot.lane.b32.xlu0 %v368, 127
    %v375 = vpop.permute.xlu0 %374
    %376 = vrot.lane.b32.xlu0 %v369, 127
    %v377 = vpop.permute.xlu0 %376
    %378 = vrot.lane.b32.xlu0 %v370, 127
    %v379 = vpop.permute.xlu0 %378
    %vm380 = vcmask 1039360
    %v381 = vsel %vm380, %v375, %v377
    %v382 = vsel %vm380, %v377, %v379
    %v385 = vadd.f32 %v351, %v381
    %v386 = vadd.f32 %v352, %v382
    %389 = vrot.lane.b32.xlu0 %v271, 2
    %v390 = vpop.permute.xlu0 %389
    %391 = vrot.lane.b32.xlu0 %v272, 2
    %v392 = vpop.permute.xlu0 %391
    %vm393 = vcmask 15360
    %v394 = vsel %vm393, %v390, %v392
    %v398 = vmul.f32 %v327, %v390
    %v399 = vmul.f32 %v323, %v394
    %v400 = vmul.f32 %v328, %v392
    %v401 = vstv %s141
    %v402 = vmul.f32 %v398, %v401
    %v403 = vmul.f32 %v399, %v401
    %v404 = vmul.f32 %v400, %v401
    %408 = vrot.lane.b32.xlu0 %v402, 126
    %v409 = vpop.permute.xlu0 %408
    %410 = vrot.lane.b32.xlu0 %v403, 126
    %v411 = vpop.permute.xlu0 %410
    %412 = vrot.lane.b32.xlu0 %v404, 126
    %v413 = vpop.permute.xlu0 %412
    %vm414 = vcmask 1031168
    %v415 = vsel %vm414, %v409, %v411
    %v416 = vsel %vm414, %v411, %v413
    %v419 = vadd.f32 %v385, %v415
    %v420 = vadd.f32 %v386, %v416
    %423 = vrot.lane.b32.xlu0 %v279, 3
    %v424 = vpop.permute.xlu0 %423
    %425 = vrot.lane.b32.xlu0 %v280, 3
    %v426 = vpop.permute.xlu0 %425
    %vm427 = vcmask 23552
    %v428 = vsel %vm427, %v424, %v426
    %v432 = vmul.f32 %v327, %v424
    %v433 = vmul.f32 %v323, %v428
    %v434 = vmul.f32 %v328, %v426
    %v435 = vstv %s142
    %v436 = vmul.f32 %v432, %v435
    %v437 = vmul.f32 %v433, %v435
    %v438 = vmul.f32 %v434, %v435
    %442 = vrot.lane.b32.xlu0 %v436, 125
    %v443 = vpop.permute.xlu0 %442
    %444 = vrot.lane.b32.xlu0 %v437, 125
    %v445 = vpop.permute.xlu0 %444
    %446 = vrot.lane.b32.xlu0 %v438, 125
    %v447 = vpop.permute.xlu0 %446
    %vm448 = vcmask 1022976
    %v449 = vsel %vm448, %v443, %v445
    %v450 = vsel %vm448, %v445, %v447
    %v453 = vadd.f32 %v419, %v449
    %v454 = vadd.f32 %v420, %v450
    %457 = vrot.lane.b32.xlu0 %v289, 4
    %v458 = vpop.permute.xlu0 %457
    %459 = vrot.lane.b32.xlu0 %v290, 4
    %v460 = vpop.permute.xlu0 %459
    %vm461 = vcmask 31744
    %v462 = vsel %vm461, %v458, %v460
    %v466 = vmul.f32 %v327, %v458
    %v467 = vmul.f32 %v323, %v462
    %v468 = vmul.f32 %v328, %v460
    %v469 = vstv %s143
    %v470 = vmul.f32 %v466, %v469
    %v471 = vmul.f32 %v467, %v469
    %v472 = vmul.f32 %v468, %v469
    %476 = vrot.lane.b32.xlu0 %v470, 124
    %v477 = vpop.permute.xlu0 %476
    %478 = vrot.lane.b32.xlu0 %v471, 124
    %v479 = vpop.permute.xlu0 %478
    %480 = vrot.lane.b32.xlu0 %v472, 124
    %v481 = vpop.permute.xlu0 %480
    %vm482 = vcmask 1014784
    %v483 = vsel %vm482, %v477, %v479
    %v484 = vsel %vm482, %v479, %v481
    %v487 = vadd.f32 %v453, %v483
    %v488 = vadd.f32 %v454, %v484
    %491 = vrot.lane.b32.xlu0 %v299, 5
    %v492 = vpop.permute.xlu0 %491
    %493 = vrot.lane.b32.xlu0 %v300, 5
    %v494 = vpop.permute.xlu0 %493
    %vm495 = vcmask 39936
    %v496 = vsel %vm495, %v492, %v494
    %v500 = vmul.f32 %v327, %v492
    %v501 = vmul.f32 %v323, %v496
    %v502 = vmul.f32 %v328, %v494
    %v503 = vstv %s144
    %v504 = vmul.f32 %v500, %v503
    %v505 = vmul.f32 %v501, %v503
    %v506 = vmul.f32 %v502, %v503
    %510 = vrot.lane.b32.xlu0 %v504, 123
    %v511 = vpop.permute.xlu0 %510
    %512 = vrot.lane.b32.xlu0 %v505, 123
    %v513 = vpop.permute.xlu0 %512
    %514 = vrot.lane.b32.xlu0 %v506, 123
    %v515 = vpop.permute.xlu0 %514
    %vm516 = vcmask 1006592
    %v517 = vsel %vm516, %v511, %v513
    %v518 = vsel %vm516, %v513, %v515
    %v521 = vadd.f32 %v487, %v517
    %v522 = vadd.f32 %v488, %v518
    %525 = vrot.lane.b32.xlu0 %v309, 6
    %v526 = vpop.permute.xlu0 %525
    %527 = vrot.lane.b32.xlu0 %v310, 6
    %v528 = vpop.permute.xlu0 %527
    %vm529 = vcmask 48128
    %v530 = vsel %vm529, %v526, %v528
    %v534 = vmul.f32 %v327, %v526
    %v535 = vmul.f32 %v323, %v530
    %v536 = vmul.f32 %v328, %v528
    %v537 = vstv %s145
    %v538 = vmul.f32 %v534, %v537
    %v539 = vmul.f32 %v535, %v537
    %v540 = vmul.f32 %v536, %v537
    %544 = vrot.lane.b32.xlu0 %v538, 122
    %v545 = vpop.permute.xlu0 %544
    %546 = vrot.lane.b32.xlu0 %v539, 122
    %v547 = vpop.permute.xlu0 %546
    %548 = vrot.lane.b32.xlu0 %v540, 122
    %v549 = vpop.permute.xlu0 %548
    %vm550 = vcmask 998400
    %v551 = vsel %vm550, %v545, %v547
    %v552 = vsel %vm550, %v547, %v549
    %v555 = vadd.f32 %v521, %v551
    %v556 = vadd.f32 %v522, %v552
    %559 = vrot.lane.b32.xlu0 %v251, 16
    %v560 = vpop.permute.xlu0 %559
    %561 = vrot.lane.b32.xlu0 %v252, 16
    %v562 = vpop.permute.xlu0 %561
    %vm563 = vcmask 130048
    %v564 = vsel %vm563, %v560, %v562
    %v568 = vmul.f32 %v327, %v560
    %v569 = vmul.f32 %v323, %v564
    %v570 = vmul.f32 %v328, %v562
    %v571 = vstv %s146
    %v572 = vmul.f32 %v568, %v571
    %v573 = vmul.f32 %v569, %v571
    %v574 = vmul.f32 %v570, %v571
    %578 = vrot.lane.b32.xlu0 %v572, 112
    %v579 = vpop.permute.xlu0 %578
    %580 = vrot.lane.b32.xlu0 %v573, 112
    %v581 = vpop.permute.xlu0 %580
    %582 = vrot.lane.b32.xlu0 %v574, 112
    %v583 = vpop.permute.xlu0 %582
    %vm584 = vcmask 916480
    %v585 = vsel %vm584, %v579, %v581
    %v586 = vsel %vm584, %v581, %v583
    %v589 = vadd.f32 %v555, %v585
    %v590 = vadd.f32 %v556, %v586
    %591 = vrot.lane.b32.xlu0 %v261, 17
    %v592 = vpop.permute.xlu0 %591
    %593 = vrot.lane.b32.xlu0 %v262, 17
    %v594 = vpop.permute.xlu0 %593
    %vm595 = vcmask 138240
    %v596 = vsel %vm595, %v592, %v594
    %v600 = vmul.f32 %v327, %v592
    %v601 = vmul.f32 %v323, %v596
    %v602 = vmul.f32 %v328, %v594
    %v603 = vstv %s147
    %v604 = vmul.f32 %v600, %v603
    %v605 = vmul.f32 %v601, %v603
    %v606 = vmul.f32 %v602, %v603
    %610 = vrot.lane.b32.xlu0 %v604, 111
    %v611 = vpop.permute.xlu0 %610
    %612 = vrot.lane.b32.xlu0 %v605, 111
    %v613 = vpop.permute.xlu0 %612
    %614 = vrot.lane.b32.xlu0 %v606, 111
    %v615 = vpop.permute.xlu0 %614
    %vm616 = vcmask 908288
    %v617 = vsel %vm616, %v611, %v613
    %v618 = vsel %vm616, %v613, %v615
    %v621 = vadd.f32 %v589, %v617
    %v622 = vadd.f32 %v590, %v618
    %623 = vrot.lane.b32.xlu0 %v271, 18
    %v624 = vpop.permute.xlu0 %623
    %625 = vrot.lane.b32.xlu0 %v272, 18
    %v626 = vpop.permute.xlu0 %625
    %vm627 = vcmask 146432
    %v628 = vsel %vm627, %v624, %v626
    %v632 = vmul.f32 %v327, %v624
    %v633 = vmul.f32 %v323, %v628
    %v634 = vmul.f32 %v328, %v626
    %v635 = vstv %s148
    %v636 = vmul.f32 %v632, %v635
    %v637 = vmul.f32 %v633, %v635
    %v638 = vmul.f32 %v634, %v635
    %642 = vrot.lane.b32.xlu0 %v636, 110
    %v643 = vpop.permute.xlu0 %642
    %644 = vrot.lane.b32.xlu0 %v637, 110
    %v645 = vpop.permute.xlu0 %644
    %646 = vrot.lane.b32.xlu0 %v638, 110
    %v647 = vpop.permute.xlu0 %646
    %vm648 = vcmask 900096
    %v649 = vsel %vm648, %v643, %v645
    %v650 = vsel %vm648, %v645, %v647
    %v653 = vadd.f32 %v621, %v649
    %v654 = vadd.f32 %v622, %v650
    %655 = vrot.lane.b32.xlu0 %v279, 19
    %v656 = vpop.permute.xlu0 %655
    %657 = vrot.lane.b32.xlu0 %v280, 19
    %v658 = vpop.permute.xlu0 %657
    %vm659 = vcmask 154624
    %v660 = vsel %vm659, %v656, %v658
    %v664 = vmul.f32 %v327, %v656
    %v665 = vmul.f32 %v323, %v660
    %v666 = vmul.f32 %v328, %v658
    %v667 = vstv %s149
    %v668 = vmul.f32 %v664, %v667
    %v669 = vmul.f32 %v665, %v667
    %v670 = vmul.f32 %v666, %v667
    %674 = vrot.lane.b32.xlu0 %v668, 109
    %v675 = vpop.permute.xlu0 %674
    %676 = vrot.lane.b32.xlu0 %v669, 109
    %v677 = vpop.permute.xlu0 %676
    %678 = vrot.lane.b32.xlu0 %v670, 109
    %v679 = vpop.permute.xlu0 %678
    %vm680 = vcmask 891904
    %v681 = vsel %vm680, %v675, %v677
    %v682 = vsel %vm680, %v677, %v679
    %v685 = vadd.f32 %v653, %v681
    %v686 = vadd.f32 %v654, %v682
    %687 = vrot.lane.b32.xlu0 %v289, 20
    %v688 = vpop.permute.xlu0 %687
    %689 = vrot.lane.b32.xlu0 %v290, 20
    %v690 = vpop.permute.xlu0 %689
    %vm691 = vcmask 162816
    %v692 = vsel %vm691, %v688, %v690
    %v696 = vmul.f32 %v327, %v688
    %v697 = vmul.f32 %v323, %v692
    %v698 = vmul.f32 %v328, %v690
    %v699 = vstv %s150
    %v700 = vmul.f32 %v696, %v699
    %v701 = vmul.f32 %v697, %v699
    %v702 = vmul.f32 %v698, %v699
    %706 = vrot.lane.b32.xlu0 %v700, 108
    %v707 = vpop.permute.xlu0 %706
    %708 = vrot.lane.b32.xlu0 %v701, 108
    %v709 = vpop.permute.xlu0 %708
    %710 = vrot.lane.b32.xlu0 %v702, 108
    %v711 = vpop.permute.xlu0 %710
    %vm712 = vcmask 883712
    %v713 = vsel %vm712, %v707, %v709
    %v714 = vsel %vm712, %v709, %v711
    %v717 = vadd.f32 %v685, %v713
    %v718 = vadd.f32 %v686, %v714
    %719 = vrot.lane.b32.xlu0 %v299, 21
    %v720 = vpop.permute.xlu0 %719
    %721 = vrot.lane.b32.xlu0 %v300, 21
    %v722 = vpop.permute.xlu0 %721
    %vm723 = vcmask 171008
    %v724 = vsel %vm723, %v720, %v722
    %v728 = vmul.f32 %v327, %v720
    %v729 = vmul.f32 %v323, %v724
    %v730 = vmul.f32 %v328, %v722
    %v731 = vstv %s151
    %v732 = vmul.f32 %v728, %v731
    %v733 = vmul.f32 %v729, %v731
    %v734 = vmul.f32 %v730, %v731
    %738 = vrot.lane.b32.xlu0 %v732, 107
    %v739 = vpop.permute.xlu0 %738
    %740 = vrot.lane.b32.xlu0 %v733, 107
    %v741 = vpop.permute.xlu0 %740
    %742 = vrot.lane.b32.xlu0 %v734, 107
    %v743 = vpop.permute.xlu0 %742
    %vm744 = vcmask 875520
    %v745 = vsel %vm744, %v739, %v741
    %v746 = vsel %vm744, %v741, %v743
    %v749 = vadd.f32 %v717, %v745
    %v750 = vadd.f32 %v718, %v746
    %751 = vrot.lane.b32.xlu0 %v309, 22
    %v752 = vpop.permute.xlu0 %751
    %753 = vrot.lane.b32.xlu0 %v310, 22
    %v754 = vpop.permute.xlu0 %753
    %vm755 = vcmask 179200
    %v756 = vsel %vm755, %v752, %v754
    %v760 = vmul.f32 %v327, %v752
    %v761 = vmul.f32 %v323, %v756
    %v762 = vmul.f32 %v328, %v754
    %v763 = vstv %s152
    %v764 = vmul.f32 %v760, %v763
    %v765 = vmul.f32 %v761, %v763
    %v766 = vmul.f32 %v762, %v763
    %770 = vrot.lane.b32.xlu0 %v764, 106
    %v771 = vpop.permute.xlu0 %770
    %772 = vrot.lane.b32.xlu0 %v765, 106
    %v773 = vpop.permute.xlu0 %772
    %774 = vrot.lane.b32.xlu0 %v766, 106
    %v775 = vpop.permute.xlu0 %774
    %vm776 = vcmask 867328
    %v777 = vsel %vm776, %v771, %v773
    %v778 = vsel %vm776, %v773, %v775
    %v781 = vadd.f32 %v749, %v777
    %v782 = vadd.f32 %v750, %v778
    %783 = vrot.lane.b32.xlu0 %v251, 32
    %v784 = vpop.permute.xlu0 %783
    %785 = vrot.lane.b32.xlu0 %v252, 32
    %v786 = vpop.permute.xlu0 %785
    %vm787 = vcmask 261120
    %v788 = vsel %vm787, %v784, %v786
    %v792 = vmul.f32 %v327, %v784
    %v793 = vmul.f32 %v323, %v788
    %v794 = vmul.f32 %v328, %v786
    %v795 = vstv %s153
    %v796 = vmul.f32 %v792, %v795
    %v797 = vmul.f32 %v793, %v795
    %v798 = vmul.f32 %v794, %v795
    %802 = vrot.lane.b32.xlu0 %v796, 96
    %v803 = vpop.permute.xlu0 %802
    %804 = vrot.lane.b32.xlu0 %v797, 96
    %v805 = vpop.permute.xlu0 %804
    %806 = vrot.lane.b32.xlu0 %v798, 96
    %v807 = vpop.permute.xlu0 %806
    %vm808 = vcmask 785408
    %v809 = vsel %vm808, %v803, %v805
    %v810 = vsel %vm808, %v805, %v807
    %v813 = vadd.f32 %v781, %v809
    %v814 = vadd.f32 %v782, %v810
    %815 = vrot.lane.b32.xlu0 %v261, 33
    %v816 = vpop.permute.xlu0 %815
    %817 = vrot.lane.b32.xlu0 %v262, 33
    %v818 = vpop.permute.xlu0 %817
    %vm819 = vcmask 269312
    %v820 = vsel %vm819, %v816, %v818
    %v824 = vmul.f32 %v327, %v816
    %v825 = vmul.f32 %v323, %v820
    %v826 = vmul.f32 %v328, %v818
    %v827 = vstv %s154
    %v828 = vmul.f32 %v824, %v827
    %v829 = vmul.f32 %v825, %v827
    %v830 = vmul.f32 %v826, %v827
    %834 = vrot.lane.b32.xlu0 %v828, 95
    %v835 = vpop.permute.xlu0 %834
    %836 = vrot.lane.b32.xlu0 %v829, 95
    %v837 = vpop.permute.xlu0 %836
    %838 = vrot.lane.b32.xlu0 %v830, 95
    %v839 = vpop.permute.xlu0 %838
    %vm840 = vcmask 777216
    %v841 = vsel %vm840, %v835, %v837
    %v842 = vsel %vm840, %v837, %v839
    %v845 = vadd.f32 %v813, %v841
    %v846 = vadd.f32 %v814, %v842
    %847 = vrot.lane.b32.xlu0 %v271, 34
    %v848 = vpop.permute.xlu0 %847
    %849 = vrot.lane.b32.xlu0 %v272, 34
    %v850 = vpop.permute.xlu0 %849
    %vm851 = vcmask 277504
    %v852 = vsel %vm851, %v848, %v850
    %v856 = vmul.f32 %v327, %v848
    %v857 = vmul.f32 %v323, %v852
    %v858 = vmul.f32 %v328, %v850
    %v859 = vstv %s155
    %v860 = vmul.f32 %v856, %v859
    %v861 = vmul.f32 %v857, %v859
    %v862 = vmul.f32 %v858, %v859
    %866 = vrot.lane.b32.xlu0 %v860, 94
    %v867 = vpop.permute.xlu0 %866
    %868 = vrot.lane.b32.xlu0 %v861, 94
    %v869 = vpop.permute.xlu0 %868
    %870 = vrot.lane.b32.xlu0 %v862, 94
    %v871 = vpop.permute.xlu0 %870
    %vm872 = vcmask 769024
    %v873 = vsel %vm872, %v867, %v869
    %v874 = vsel %vm872, %v869, %v871
    %v877 = vadd.f32 %v845, %v873
    %v878 = vadd.f32 %v846, %v874
    %879 = vrot.lane.b32.xlu0 %v279, 35
    %v880 = vpop.permute.xlu0 %879
    %881 = vrot.lane.b32.xlu0 %v280, 35
    %v882 = vpop.permute.xlu0 %881
    %vm883 = vcmask 285696
    %v884 = vsel %vm883, %v880, %v882
    %v888 = vmul.f32 %v327, %v880
    %v889 = vmul.f32 %v323, %v884
    %v890 = vmul.f32 %v328, %v882
    %v891 = vstv %s156
    %v892 = vmul.f32 %v888, %v891
    %v893 = vmul.f32 %v889, %v891
    %v894 = vmul.f32 %v890, %v891
    %898 = vrot.lane.b32.xlu0 %v892, 93
    %v899 = vpop.permute.xlu0 %898
    %900 = vrot.lane.b32.xlu0 %v893, 93
    %v901 = vpop.permute.xlu0 %900
    %902 = vrot.lane.b32.xlu0 %v894, 93
    %v903 = vpop.permute.xlu0 %902
    %vm904 = vcmask 760832
    %v905 = vsel %vm904, %v899, %v901
    %v906 = vsel %vm904, %v901, %v903
    %v909 = vadd.f32 %v877, %v905
    %v910 = vadd.f32 %v878, %v906
    %911 = vrot.lane.b32.xlu0 %v289, 36
    %v912 = vpop.permute.xlu0 %911
    %913 = vrot.lane.b32.xlu0 %v290, 36
    %v914 = vpop.permute.xlu0 %913
    %vm915 = vcmask 293888
    %v916 = vsel %vm915, %v912, %v914
    %v920 = vmul.f32 %v327, %v912
    %v921 = vmul.f32 %v323, %v916
    %v922 = vmul.f32 %v328, %v914
    %v923 = vstv %s157
    %v924 = vmul.f32 %v920, %v923
    %v925 = vmul.f32 %v921, %v923
    %v926 = vmul.f32 %v922, %v923
    %930 = vrot.lane.b32.xlu0 %v924, 92
    %v931 = vpop.permute.xlu0 %930
    %932 = vrot.lane.b32.xlu0 %v925, 92
    %v933 = vpop.permute.xlu0 %932
    %934 = vrot.lane.b32.xlu0 %v926, 92
    %v935 = vpop.permute.xlu0 %934
    %vm936 = vcmask 752640
    %v937 = vsel %vm936, %v931, %v933
    %v938 = vsel %vm936, %v933, %v935
    %v941 = vadd.f32 %v909, %v937
    %v942 = vadd.f32 %v910, %v938
    %943 = vrot.lane.b32.xlu0 %v299, 37
    %v944 = vpop.permute.xlu0 %943
    %945 = vrot.lane.b32.xlu0 %v300, 37
    %v946 = vpop.permute.xlu0 %945
    %vm947 = vcmask 302080
    %v948 = vsel %vm947, %v944, %v946
    %v952 = vmul.f32 %v327, %v944
    %v953 = vmul.f32 %v323, %v948
    %v954 = vmul.f32 %v328, %v946
    %v955 = vstv %s158
    %v956 = vmul.f32 %v952, %v955
    %v957 = vmul.f32 %v953, %v955
    %v958 = vmul.f32 %v954, %v955
    %962 = vrot.lane.b32.xlu0 %v956, 91
    %v963 = vpop.permute.xlu0 %962
    %964 = vrot.lane.b32.xlu0 %v957, 91
    %v965 = vpop.permute.xlu0 %964
    %966 = vrot.lane.b32.xlu0 %v958, 91
    %v967 = vpop.permute.xlu0 %966
    %vm968 = vcmask 744448
    %v969 = vsel %vm968, %v963, %v965
    %v970 = vsel %vm968, %v965, %v967
    %v973 = vadd.f32 %v941, %v969
    %v974 = vadd.f32 %v942, %v970
    %975 = vrot.lane.b32.xlu0 %v309, 38
    %v976 = vpop.permute.xlu0 %975
    %977 = vrot.lane.b32.xlu0 %v310, 38
    %v978 = vpop.permute.xlu0 %977
    %vm979 = vcmask 310272
    %v980 = vsel %vm979, %v976, %v978
    %v984 = vmul.f32 %v327, %v976
    %v985 = vmul.f32 %v323, %v980
    %v986 = vmul.f32 %v328, %v978
    %v987 = vstv %s159
    %v988 = vmul.f32 %v984, %v987
    %v989 = vmul.f32 %v985, %v987
    %v990 = vmul.f32 %v986, %v987
    %994 = vrot.lane.b32.xlu0 %v988, 90
    %v995 = vpop.permute.xlu0 %994
    %996 = vrot.lane.b32.xlu0 %v989, 90
    %v997 = vpop.permute.xlu0 %996
    %998 = vrot.lane.b32.xlu0 %v990, 90
    %v999 = vpop.permute.xlu0 %998
    %vm1000 = vcmask 736256
    %v1001 = vsel %vm1000, %v995, %v997
    %v1002 = vsel %vm1000, %v997, %v999
    %v1005 = vadd.f32 %v973, %v1001
    %v1006 = vadd.f32 %v974, %v1002
    %1007 = vrot.lane.b32.xlu0 %v251, 48
    %v1008 = vpop.permute.xlu0 %1007
    %1009 = vrot.lane.b32.xlu0 %v252, 48
    %v1010 = vpop.permute.xlu0 %1009
    %vm1011 = vcmask 392192
    %v1012 = vsel %vm1011, %v1008, %v1010
    %v1016 = vmul.f32 %v327, %v1008
    %v1017 = vmul.f32 %v323, %v1012
    %v1018 = vmul.f32 %v328, %v1010
    %v1019 = vstv %s160
    %v1020 = vmul.f32 %v1016, %v1019
    %v1021 = vmul.f32 %v1017, %v1019
    %v1022 = vmul.f32 %v1018, %v1019
    %1026 = vrot.lane.b32.xlu0 %v1020, 80
    %v1027 = vpop.permute.xlu0 %1026
    %1028 = vrot.lane.b32.xlu0 %v1021, 80
    %v1029 = vpop.permute.xlu0 %1028
    %1030 = vrot.lane.b32.xlu0 %v1022, 80
    %v1031 = vpop.permute.xlu0 %1030
    %vm1032 = vcmask 654336
    %v1033 = vsel %vm1032, %v1027, %v1029
    %v1034 = vsel %vm1032, %v1029, %v1031
    %v1037 = vadd.f32 %v1005, %v1033
    %v1038 = vadd.f32 %v1006, %v1034
    %1039 = vrot.lane.b32.xlu0 %v261, 49
    %v1040 = vpop.permute.xlu0 %1039
    %1041 = vrot.lane.b32.xlu0 %v262, 49
    %v1042 = vpop.permute.xlu0 %1041
    %vm1043 = vcmask 400384
    %v1044 = vsel %vm1043, %v1040, %v1042
    %v1048 = vmul.f32 %v327, %v1040
    %v1049 = vmul.f32 %v323, %v1044
    %v1050 = vmul.f32 %v328, %v1042
    %v1051 = vstv %s161
    %v1052 = vmul.f32 %v1048, %v1051
    %v1053 = vmul.f32 %v1049, %v1051
    %v1054 = vmul.f32 %v1050, %v1051
    %1058 = vrot.lane.b32.xlu0 %v1052, 79
    %v1059 = vpop.permute.xlu0 %1058
    %1060 = vrot.lane.b32.xlu0 %v1053, 79
    %v1061 = vpop.permute.xlu0 %1060
    %1062 = vrot.lane.b32.xlu0 %v1054, 79
    %v1063 = vpop.permute.xlu0 %1062
    %vm1064 = vcmask 646144
    %v1065 = vsel %vm1064, %v1059, %v1061
    %v1066 = vsel %vm1064, %v1061, %v1063
    %v1069 = vadd.f32 %v1037, %v1065
    %v1070 = vadd.f32 %v1038, %v1066
    %1071 = vrot.lane.b32.xlu0 %v271, 50
    %v1072 = vpop.permute.xlu0 %1071
    %1073 = vrot.lane.b32.xlu0 %v272, 50
    %v1074 = vpop.permute.xlu0 %1073
    %vm1075 = vcmask 408576
    %v1076 = vsel %vm1075, %v1072, %v1074
    %v1080 = vmul.f32 %v327, %v1072
    %v1081 = vmul.f32 %v323, %v1076
    %v1082 = vmul.f32 %v328, %v1074
    %v1083 = vstv %s162
    %v1084 = vmul.f32 %v1080, %v1083
    %v1085 = vmul.f32 %v1081, %v1083
    %v1086 = vmul.f32 %v1082, %v1083
    %1090 = vrot.lane.b32.xlu0 %v1084, 78
    %v1091 = vpop.permute.xlu0 %1090
    %1092 = vrot.lane.b32.xlu0 %v1085, 78
    %v1093 = vpop.permute.xlu0 %1092
    %1094 = vrot.lane.b32.xlu0 %v1086, 78
    %v1095 = vpop.permute.xlu0 %1094
    %vm1096 = vcmask 637952
    %v1097 = vsel %vm1096, %v1091, %v1093
    %v1098 = vsel %vm1096, %v1093, %v1095
    %v1101 = vadd.f32 %v1069, %v1097
    %v1102 = vadd.f32 %v1070, %v1098
    %1103 = vrot.lane.b32.xlu0 %v279, 51
    %v1104 = vpop.permute.xlu0 %1103
    %1105 = vrot.lane.b32.xlu0 %v280, 51
    %v1106 = vpop.permute.xlu0 %1105
    %v1107 = vsel %vm322, %v1104, %v1106
    %v1111 = vmul.f32 %v327, %v1104
    %v1112 = vmul.f32 %v323, %v1107
    %v1113 = vmul.f32 %v328, %v1106
    %v1114 = vstv %s163
    %v1115 = vmul.f32 %v1111, %v1114
    %v1116 = vmul.f32 %v1112, %v1114
    %v1117 = vmul.f32 %v1113, %v1114
    %1121 = vrot.lane.b32.xlu0 %v1115, 77
    %v1122 = vpop.permute.xlu0 %1121
    %1123 = vrot.lane.b32.xlu0 %v1116, 77
    %v1124 = vpop.permute.xlu0 %1123
    %1125 = vrot.lane.b32.xlu0 %v1117, 77
    %v1126 = vpop.permute.xlu0 %1125
    %vm1127 = vcmask 629760
    %v1128 = vsel %vm1127, %v1122, %v1124
    %v1129 = vsel %vm1127, %v1124, %v1126
    %v1132 = vadd.f32 %v1101, %v1128
    %v1133 = vadd.f32 %v1102, %v1129
    %1134 = vrot.lane.b32.xlu0 %v289, 52
    %v1135 = vpop.permute.xlu0 %1134
    %1136 = vrot.lane.b32.xlu0 %v290, 52
    %v1137 = vpop.permute.xlu0 %1136
    %vm1138 = vcmask 424960
    %v1139 = vsel %vm1138, %v1135, %v1137
    %v1143 = vmul.f32 %v327, %v1135
    %v1144 = vmul.f32 %v323, %v1139
    %v1145 = vmul.f32 %v328, %v1137
    %v1146 = vstv %s164
    %v1147 = vmul.f32 %v1143, %v1146
    %v1148 = vmul.f32 %v1144, %v1146
    %v1149 = vmul.f32 %v1145, %v1146
    %1153 = vrot.lane.b32.xlu0 %v1147, 76
    %v1154 = vpop.permute.xlu0 %1153
    %1155 = vrot.lane.b32.xlu0 %v1148, 76
    %v1156 = vpop.permute.xlu0 %1155
    %1157 = vrot.lane.b32.xlu0 %v1149, 76
    %v1158 = vpop.permute.xlu0 %1157
    %vm1159 = vcmask 621568
    %v1160 = vsel %vm1159, %v1154, %v1156
    %v1161 = vsel %vm1159, %v1156, %v1158
    %v1164 = vadd.f32 %v1132, %v1160
    %v1165 = vadd.f32 %v1133, %v1161
    %1166 = vrot.lane.b32.xlu0 %v299, 53
    %v1167 = vpop.permute.xlu0 %1166
    %1168 = vrot.lane.b32.xlu0 %v300, 53
    %v1169 = vpop.permute.xlu0 %1168
    %vm1170 = vcmask 433152
    %v1171 = vsel %vm1170, %v1167, %v1169
    %v1175 = vmul.f32 %v327, %v1167
    %v1176 = vmul.f32 %v323, %v1171
    %v1177 = vmul.f32 %v328, %v1169
    %v1178 = vstv %s165
    %v1179 = vmul.f32 %v1175, %v1178
    %v1180 = vmul.f32 %v1176, %v1178
    %v1181 = vmul.f32 %v1177, %v1178
    %1185 = vrot.lane.b32.xlu0 %v1179, 75
    %v1186 = vpop.permute.xlu0 %1185
    %1187 = vrot.lane.b32.xlu0 %v1180, 75
    %v1188 = vpop.permute.xlu0 %1187
    %1189 = vrot.lane.b32.xlu0 %v1181, 75
    %v1190 = vpop.permute.xlu0 %1189
    %vm1191 = vcmask 613376
    %v1192 = vsel %vm1191, %v1186, %v1188
    %v1193 = vsel %vm1191, %v1188, %v1190
    %v1196 = vadd.f32 %v1164, %v1192
    %v1197 = vadd.f32 %v1165, %v1193
    %1198 = vrot.lane.b32.xlu0 %v309, 54
    %v1199 = vpop.permute.xlu0 %1198
    %1200 = vrot.lane.b32.xlu0 %v310, 54
    %v1201 = vpop.permute.xlu0 %1200
    %vm1202 = vcmask 441344
    %v1203 = vsel %vm1202, %v1199, %v1201
    %v1207 = vmul.f32 %v327, %v1199
    %v1208 = vmul.f32 %v323, %v1203
    %v1209 = vmul.f32 %v328, %v1201
    %v1210 = vstv %s166
    %v1211 = vmul.f32 %v1207, %v1210
    %v1212 = vmul.f32 %v1208, %v1210
    %v1213 = vmul.f32 %v1209, %v1210
    %1217 = vrot.lane.b32.xlu0 %v1211, 74
    %v1218 = vpop.permute.xlu0 %1217
    %1219 = vrot.lane.b32.xlu0 %v1212, 74
    %v1220 = vpop.permute.xlu0 %1219
    %1221 = vrot.lane.b32.xlu0 %v1213, 74
    %v1222 = vpop.permute.xlu0 %1221
    %vm1223 = vcmask 605184
    %v1224 = vsel %vm1223, %v1218, %v1220
    %v1225 = vsel %vm1223, %v1220, %v1222
    %v1228 = vadd.f32 %v1196, %v1224
    %v1229 = vadd.f32 %v1197, %v1225
    %1230 = vrot.lane.b32.xlu0 %v251, 64
    %v1231 = vpop.permute.xlu0 %1230
    %1232 = vrot.lane.b32.xlu0 %v252, 64
    %v1233 = vpop.permute.xlu0 %1232
    %vm1234 = vcmask 523264
    %v1235 = vsel %vm1234, %v1231, %v1233
    %v1239 = vmul.f32 %v327, %v1231
    %v1240 = vmul.f32 %v323, %v1235
    %v1241 = vmul.f32 %v328, %v1233
    %v1242 = vstv %s167
    %v1243 = vmul.f32 %v1239, %v1242
    %v1244 = vmul.f32 %v1240, %v1242
    %v1245 = vmul.f32 %v1241, %v1242
    %1249 = vrot.lane.b32.xlu0 %v1243, 64
    %v1250 = vpop.permute.xlu0 %1249
    %1251 = vrot.lane.b32.xlu0 %v1244, 64
    %v1252 = vpop.permute.xlu0 %1251
    %1253 = vrot.lane.b32.xlu0 %v1245, 64
    %v1254 = vpop.permute.xlu0 %1253
    %v1255 = vsel %vm1234, %v1250, %v1252
    %v1256 = vsel %vm1234, %v1252, %v1254
    %v1259 = vadd.f32 %v1228, %v1255
    %v1260 = vadd.f32 %v1229, %v1256
    %1261 = vrot.lane.b32.xlu0 %v261, 65
    %v1262 = vpop.permute.xlu0 %1261
    %1263 = vrot.lane.b32.xlu0 %v262, 65
    %v1264 = vpop.permute.xlu0 %1263
    %vm1265 = vcmask 531456
    %v1266 = vsel %vm1265, %v1262, %v1264
    %v1270 = vmul.f32 %v327, %v1262
    %v1271 = vmul.f32 %v323, %v1266
    %v1272 = vmul.f32 %v328, %v1264
    %v1273 = vstv %s168
    %v1274 = vmul.f32 %v1270, %v1273
    %v1275 = vmul.f32 %v1271, %v1273
    %v1276 = vmul.f32 %v1272, %v1273
    %1280 = vrot.lane.b32.xlu0 %v1274, 63
    %v1281 = vpop.permute.xlu0 %1280
    %1282 = vrot.lane.b32.xlu0 %v1275, 63
    %v1283 = vpop.permute.xlu0 %1282
    %1284 = vrot.lane.b32.xlu0 %v1276, 63
    %v1285 = vpop.permute.xlu0 %1284
    %vm1286 = vcmask 515072
    %v1287 = vsel %vm1286, %v1281, %v1283
    %v1288 = vsel %vm1286, %v1283, %v1285
    %v1291 = vadd.f32 %v1259, %v1287
    %v1292 = vadd.f32 %v1260, %v1288
    %1293 = vrot.lane.b32.xlu0 %v271, 66
    %v1294 = vpop.permute.xlu0 %1293
    %1295 = vrot.lane.b32.xlu0 %v272, 66
    %v1296 = vpop.permute.xlu0 %1295
    %vm1297 = vcmask 539648
    %v1298 = vsel %vm1297, %v1294, %v1296
    %v1302 = vmul.f32 %v327, %v1294
    %v1303 = vmul.f32 %v323, %v1298
    %v1304 = vmul.f32 %v328, %v1296
    %v1305 = vstv %s169
    %v1306 = vmul.f32 %v1302, %v1305
    %v1307 = vmul.f32 %v1303, %v1305
    %v1308 = vmul.f32 %v1304, %v1305
    %1312 = vrot.lane.b32.xlu0 %v1306, 62
    %v1313 = vpop.permute.xlu0 %1312
    %1314 = vrot.lane.b32.xlu0 %v1307, 62
    %v1315 = vpop.permute.xlu0 %1314
    %1316 = vrot.lane.b32.xlu0 %v1308, 62
    %v1317 = vpop.permute.xlu0 %1316
    %vm1318 = vcmask 506880
    %v1319 = vsel %vm1318, %v1313, %v1315
    %v1320 = vsel %vm1318, %v1315, %v1317
    %v1323 = vadd.f32 %v1291, %v1319
    %v1324 = vadd.f32 %v1292, %v1320
    %1325 = vrot.lane.b32.xlu0 %v279, 67
    %v1326 = vpop.permute.xlu0 %1325
    %1327 = vrot.lane.b32.xlu0 %v280, 67
    %v1328 = vpop.permute.xlu0 %1327
    %vm1329 = vcmask 547840
    %v1330 = vsel %vm1329, %v1326, %v1328
    %v1334 = vmul.f32 %v327, %v1326
    %v1335 = vmul.f32 %v323, %v1330
    %v1336 = vmul.f32 %v328, %v1328
    %v1337 = vstv %s170
    %v1338 = vmul.f32 %v1334, %v1337
    %v1339 = vmul.f32 %v1335, %v1337
    %v1340 = vmul.f32 %v1336, %v1337
    %1344 = vrot.lane.b32.xlu0 %v1338, 61
    %v1345 = vpop.permute.xlu0 %1344
    %1346 = vrot.lane.b32.xlu0 %v1339, 61
    %v1347 = vpop.permute.xlu0 %1346
    %1348 = vrot.lane.b32.xlu0 %v1340, 61
    %v1349 = vpop.permute.xlu0 %1348
    %vm1350 = vcmask 498688
    %v1351 = vsel %vm1350, %v1345, %v1347
    %v1352 = vsel %vm1350, %v1347, %v1349
    %v1355 = vadd.f32 %v1323, %v1351
    %v1356 = vadd.f32 %v1324, %v1352
    %1357 = vrot.lane.b32.xlu0 %v289, 68
    %v1358 = vpop.permute.xlu0 %1357
    %1359 = vrot.lane.b32.xlu0 %v290, 68
    %v1360 = vpop.permute.xlu0 %1359
    %vm1361 = vcmask 556032
    %v1362 = vsel %vm1361, %v1358, %v1360
    %v1366 = vmul.f32 %v327, %v1358
    %v1367 = vmul.f32 %v323, %v1362
    %v1368 = vmul.f32 %v328, %v1360
    %v1369 = vstv %s171
    %v1370 = vmul.f32 %v1366, %v1369
    %v1371 = vmul.f32 %v1367, %v1369
    %v1372 = vmul.f32 %v1368, %v1369
    %1376 = vrot.lane.b32.xlu0 %v1370, 60
    %v1377 = vpop.permute.xlu0 %1376
    %1378 = vrot.lane.b32.xlu0 %v1371, 60
    %v1379 = vpop.permute.xlu0 %1378
    %1380 = vrot.lane.b32.xlu0 %v1372, 60
    %v1381 = vpop.permute.xlu0 %1380
    %vm1382 = vcmask 490496
    %v1383 = vsel %vm1382, %v1377, %v1379
    %v1384 = vsel %vm1382, %v1379, %v1381
    %v1387 = vadd.f32 %v1355, %v1383
    %v1388 = vadd.f32 %v1356, %v1384
    %1389 = vrot.lane.b32.xlu0 %v299, 69
    %v1390 = vpop.permute.xlu0 %1389
    %1391 = vrot.lane.b32.xlu0 %v300, 69
    %v1392 = vpop.permute.xlu0 %1391
    %vm1393 = vcmask 564224
    %v1394 = vsel %vm1393, %v1390, %v1392
    %v1398 = vmul.f32 %v327, %v1390
    %v1399 = vmul.f32 %v323, %v1394
    %v1400 = vmul.f32 %v328, %v1392
    %v1401 = vstv %s172
    %v1402 = vmul.f32 %v1398, %v1401
    %v1403 = vmul.f32 %v1399, %v1401
    %v1404 = vmul.f32 %v1400, %v1401
    %1408 = vrot.lane.b32.xlu0 %v1402, 59
    %v1409 = vpop.permute.xlu0 %1408
    %1410 = vrot.lane.b32.xlu0 %v1403, 59
    %v1411 = vpop.permute.xlu0 %1410
    %1412 = vrot.lane.b32.xlu0 %v1404, 59
    %v1413 = vpop.permute.xlu0 %1412
    %vm1414 = vcmask 482304
    %v1415 = vsel %vm1414, %v1409, %v1411
    %v1416 = vsel %vm1414, %v1411, %v1413
    %v1419 = vadd.f32 %v1387, %v1415
    %v1420 = vadd.f32 %v1388, %v1416
    %1421 = vrot.lane.b32.xlu0 %v309, 70
    %v1422 = vpop.permute.xlu0 %1421
    %1423 = vrot.lane.b32.xlu0 %v310, 70
    %v1424 = vpop.permute.xlu0 %1423
    %vm1425 = vcmask 572416
    %v1426 = vsel %vm1425, %v1422, %v1424
    %v1430 = vmul.f32 %v327, %v1422
    %v1431 = vmul.f32 %v323, %v1426
    %v1432 = vmul.f32 %v328, %v1424
    %v1433 = vstv %s173
    %v1434 = vmul.f32 %v1430, %v1433
    %v1435 = vmul.f32 %v1431, %v1433
    %v1436 = vmul.f32 %v1432, %v1433
    %1440 = vrot.lane.b32.xlu0 %v1434, 58
    %v1441 = vpop.permute.xlu0 %1440
    %1442 = vrot.lane.b32.xlu0 %v1435, 58
    %v1443 = vpop.permute.xlu0 %1442
    %1444 = vrot.lane.b32.xlu0 %v1436, 58
    %v1445 = vpop.permute.xlu0 %1444
    %vm1446 = vcmask 474112
    %v1447 = vsel %vm1446, %v1441, %v1443
    %v1448 = vsel %vm1446, %v1443, %v1445
    %v1451 = vadd.f32 %v1419, %v1447
    %v1452 = vadd.f32 %v1420, %v1448
    %1453 = vrot.lane.b32.xlu0 %v251, 80
    %v1454 = vpop.permute.xlu0 %1453
    %1455 = vrot.lane.b32.xlu0 %v252, 80
    %v1456 = vpop.permute.xlu0 %1455
    %v1457 = vsel %vm1032, %v1454, %v1456
    %v1461 = vmul.f32 %v327, %v1454
    %v1462 = vmul.f32 %v323, %v1457
    %v1463 = vmul.f32 %v328, %v1456
    %v1464 = vstv %s174
    %v1465 = vmul.f32 %v1461, %v1464
    %v1466 = vmul.f32 %v1462, %v1464
    %v1467 = vmul.f32 %v1463, %v1464
    %1471 = vrot.lane.b32.xlu0 %v1465, 48
    %v1472 = vpop.permute.xlu0 %1471
    %1473 = vrot.lane.b32.xlu0 %v1466, 48
    %v1474 = vpop.permute.xlu0 %1473
    %1475 = vrot.lane.b32.xlu0 %v1467, 48
    %v1476 = vpop.permute.xlu0 %1475
    %v1477 = vsel %vm1011, %v1472, %v1474
    %v1478 = vsel %vm1011, %v1474, %v1476
    %v1481 = vadd.f32 %v1451, %v1477
    %v1482 = vadd.f32 %v1452, %v1478
    %1483 = vrot.lane.b32.xlu0 %v261, 81
    %v1484 = vpop.permute.xlu0 %1483
    %1485 = vrot.lane.b32.xlu0 %v262, 81
    %v1486 = vpop.permute.xlu0 %1485
    %vm1487 = vcmask 662528
    %v1488 = vsel %vm1487, %v1484, %v1486
    %v1492 = vmul.f32 %v327, %v1484
    %v1493 = vmul.f32 %v323, %v1488
    %v1494 = vmul.f32 %v328, %v1486
    %v1495 = vstv %s175
    %v1496 = vmul.f32 %v1492, %v1495
    %v1497 = vmul.f32 %v1493, %v1495
    %v1498 = vmul.f32 %v1494, %v1495
    %1502 = vrot.lane.b32.xlu0 %v1496, 47
    %v1503 = vpop.permute.xlu0 %1502
    %1504 = vrot.lane.b32.xlu0 %v1497, 47
    %v1505 = vpop.permute.xlu0 %1504
    %1506 = vrot.lane.b32.xlu0 %v1498, 47
    %v1507 = vpop.permute.xlu0 %1506
    %vm1508 = vcmask 384000
    %v1509 = vsel %vm1508, %v1503, %v1505
    %v1510 = vsel %vm1508, %v1505, %v1507
    %v1513 = vadd.f32 %v1481, %v1509
    %v1514 = vadd.f32 %v1482, %v1510
    %1515 = vrot.lane.b32.xlu0 %v271, 82
    %v1516 = vpop.permute.xlu0 %1515
    %1517 = vrot.lane.b32.xlu0 %v272, 82
    %v1518 = vpop.permute.xlu0 %1517
    %vm1519 = vcmask 670720
    %v1520 = vsel %vm1519, %v1516, %v1518
    %v1524 = vmul.f32 %v327, %v1516
    %v1525 = vmul.f32 %v323, %v1520
    %v1526 = vmul.f32 %v328, %v1518
    %v1527 = vstv %s176
    %v1528 = vmul.f32 %v1524, %v1527
    %v1529 = vmul.f32 %v1525, %v1527
    %v1530 = vmul.f32 %v1526, %v1527
    %1534 = vrot.lane.b32.xlu0 %v1528, 46
    %v1535 = vpop.permute.xlu0 %1534
    %1536 = vrot.lane.b32.xlu0 %v1529, 46
    %v1537 = vpop.permute.xlu0 %1536
    %1538 = vrot.lane.b32.xlu0 %v1530, 46
    %v1539 = vpop.permute.xlu0 %1538
    %vm1540 = vcmask 375808
    %v1541 = vsel %vm1540, %v1535, %v1537
    %v1542 = vsel %vm1540, %v1537, %v1539
    %v1545 = vadd.f32 %v1513, %v1541
    %v1546 = vadd.f32 %v1514, %v1542
    %1547 = vrot.lane.b32.xlu0 %v279, 83
    %v1548 = vpop.permute.xlu0 %1547
    %1549 = vrot.lane.b32.xlu0 %v280, 83
    %v1550 = vpop.permute.xlu0 %1549
    %vm1551 = vcmask 678912
    %v1552 = vsel %vm1551, %v1548, %v1550
    %v1556 = vmul.f32 %v327, %v1548
    %v1557 = vmul.f32 %v323, %v1552
    %v1558 = vmul.f32 %v328, %v1550
    %v1559 = vstv %s177
    %v1560 = vmul.f32 %v1556, %v1559
    %v1561 = vmul.f32 %v1557, %v1559
    %v1562 = vmul.f32 %v1558, %v1559
    %1566 = vrot.lane.b32.xlu0 %v1560, 45
    %v1567 = vpop.permute.xlu0 %1566
    %1568 = vrot.lane.b32.xlu0 %v1561, 45
    %v1569 = vpop.permute.xlu0 %1568
    %1570 = vrot.lane.b32.xlu0 %v1562, 45
    %v1571 = vpop.permute.xlu0 %1570
    %vm1572 = vcmask 367616
    %v1573 = vsel %vm1572, %v1567, %v1569
    %v1574 = vsel %vm1572, %v1569, %v1571
    %v1577 = vadd.f32 %v1545, %v1573
    %v1578 = vadd.f32 %v1546, %v1574
    %1579 = vrot.lane.b32.xlu0 %v289, 84
    %v1580 = vpop.permute.xlu0 %1579
    %1581 = vrot.lane.b32.xlu0 %v290, 84
    %v1582 = vpop.permute.xlu0 %1581
    %vm1583 = vcmask 687104
    %v1584 = vsel %vm1583, %v1580, %v1582
    %v1588 = vmul.f32 %v327, %v1580
    %v1589 = vmul.f32 %v323, %v1584
    %v1590 = vmul.f32 %v328, %v1582
    %v1591 = vstv %s178
    %v1592 = vmul.f32 %v1588, %v1591
    %v1593 = vmul.f32 %v1589, %v1591
    %v1594 = vmul.f32 %v1590, %v1591
    %1598 = vrot.lane.b32.xlu0 %v1592, 44
    %v1599 = vpop.permute.xlu0 %1598
    %1600 = vrot.lane.b32.xlu0 %v1593, 44
    %v1601 = vpop.permute.xlu0 %1600
    %1602 = vrot.lane.b32.xlu0 %v1594, 44
    %v1603 = vpop.permute.xlu0 %1602
    %vm1604 = vcmask 359424
    %v1605 = vsel %vm1604, %v1599, %v1601
    %v1606 = vsel %vm1604, %v1601, %v1603
    %v1609 = vadd.f32 %v1577, %v1605
    %v1610 = vadd.f32 %v1578, %v1606
    %1611 = vrot.lane.b32.xlu0 %v299, 85
    %v1612 = vpop.permute.xlu0 %1611
    %1613 = vrot.lane.b32.xlu0 %v300, 85
    %v1614 = vpop.permute.xlu0 %1613
    %vm1615 = vcmask 695296
    %v1616 = vsel %vm1615, %v1612, %v1614
    %v1620 = vmul.f32 %v327, %v1612
    %v1621 = vmul.f32 %v323, %v1616
    %v1622 = vmul.f32 %v328, %v1614
    %v1623 = vstv %s179
    %v1624 = vmul.f32 %v1620, %v1623
    %v1625 = vmul.f32 %v1621, %v1623
    %v1626 = vmul.f32 %v1622, %v1623
    %1630 = vrot.lane.b32.xlu0 %v1624, 43
    %v1631 = vpop.permute.xlu0 %1630
    %1632 = vrot.lane.b32.xlu0 %v1625, 43
    %v1633 = vpop.permute.xlu0 %1632
    %1634 = vrot.lane.b32.xlu0 %v1626, 43
    %v1635 = vpop.permute.xlu0 %1634
    %vm1636 = vcmask 351232
    %v1637 = vsel %vm1636, %v1631, %v1633
    %v1638 = vsel %vm1636, %v1633, %v1635
    %v1641 = vadd.f32 %v1609, %v1637
    %v1642 = vadd.f32 %v1610, %v1638
    %1643 = vrot.lane.b32.xlu0 %v309, 86
    %v1644 = vpop.permute.xlu0 %1643
    %1645 = vrot.lane.b32.xlu0 %v310, 86
    %v1646 = vpop.permute.xlu0 %1645
    %vm1647 = vcmask 703488
    %v1648 = vsel %vm1647, %v1644, %v1646
    %v1652 = vmul.f32 %v327, %v1644
    %v1653 = vmul.f32 %v323, %v1648
    %v1654 = vmul.f32 %v328, %v1646
    %v1655 = vstv %s180
    %v1656 = vmul.f32 %v1652, %v1655
    %v1657 = vmul.f32 %v1653, %v1655
    %v1658 = vmul.f32 %v1654, %v1655
    %1662 = vrot.lane.b32.xlu0 %v1656, 42
    %v1663 = vpop.permute.xlu0 %1662
    %1664 = vrot.lane.b32.xlu0 %v1657, 42
    %v1665 = vpop.permute.xlu0 %1664
    %1666 = vrot.lane.b32.xlu0 %v1658, 42
    %v1667 = vpop.permute.xlu0 %1666
    %vm1668 = vcmask 343040
    %v1669 = vsel %vm1668, %v1663, %v1665
    %v1670 = vsel %vm1668, %v1665, %v1667
    %v1673 = vadd.f32 %v1641, %v1669
    %v1674 = vadd.f32 %v1642, %v1670
    %1675 = vrot.lane.b32.xlu0 %v251, 96
    %v1676 = vpop.permute.xlu0 %1675
    %1677 = vrot.lane.b32.xlu0 %v252, 96
    %v1678 = vpop.permute.xlu0 %1677
    %v1679 = vsel %vm808, %v1676, %v1678
    %v1683 = vmul.f32 %v327, %v1676
    %v1684 = vmul.f32 %v323, %v1679
    %v1685 = vmul.f32 %v328, %v1678
    %v1686 = vstv %s181
    %v1687 = vmul.f32 %v1683, %v1686
    %v1688 = vmul.f32 %v1684, %v1686
    %v1689 = vmul.f32 %v1685, %v1686
    %1693 = vrot.lane.b32.xlu0 %v1687, 32
    %v1694 = vpop.permute.xlu0 %1693
    %1695 = vrot.lane.b32.xlu0 %v1688, 32
    %v1696 = vpop.permute.xlu0 %1695
    %1697 = vrot.lane.b32.xlu0 %v1689, 32
    %v1698 = vpop.permute.xlu0 %1697
    %v1699 = vsel %vm787, %v1694, %v1696
    %v1700 = vsel %vm787, %v1696, %v1698
    %v1703 = vadd.f32 %v1673, %v1699
    %v1704 = vadd.f32 %v1674, %v1700
    %1705 = vrot.lane.b32.xlu0 %v261, 97
    %v1706 = vpop.permute.xlu0 %1705
    %1707 = vrot.lane.b32.xlu0 %v262, 97
    %v1708 = vpop.permute.xlu0 %1707
    %vm1709 = vcmask 793600
    %v1710 = vsel %vm1709, %v1706, %v1708
    %v1714 = vmul.f32 %v327, %v1706
    %v1715 = vmul.f32 %v323, %v1710
    %v1716 = vmul.f32 %v328, %v1708
    %v1717 = vstv %s182
    %v1718 = vmul.f32 %v1714, %v1717
    %v1719 = vmul.f32 %v1715, %v1717
    %v1720 = vmul.f32 %v1716, %v1717
    %1724 = vrot.lane.b32.xlu0 %v1718, 31
    %v1725 = vpop.permute.xlu0 %1724
    %1726 = vrot.lane.b32.xlu0 %v1719, 31
    %v1727 = vpop.permute.xlu0 %1726
    %1728 = vrot.lane.b32.xlu0 %v1720, 31
    %v1729 = vpop.permute.xlu0 %1728
    %vm1730 = vcmask 252928
    %v1731 = vsel %vm1730, %v1725, %v1727
    %v1732 = vsel %vm1730, %v1727, %v1729
    %v1735 = vadd.f32 %v1703, %v1731
    %v1736 = vadd.f32 %v1704, %v1732
    %1737 = vrot.lane.b32.xlu0 %v271, 98
    %v1738 = vpop.permute.xlu0 %1737
    %1739 = vrot.lane.b32.xlu0 %v272, 98
    %v1740 = vpop.permute.xlu0 %1739
    %vm1741 = vcmask 801792
    %v1742 = vsel %vm1741, %v1738, %v1740
    %v1746 = vmul.f32 %v327, %v1738
    %v1747 = vmul.f32 %v323, %v1742
    %v1748 = vmul.f32 %v328, %v1740
    %v1749 = vstv %s183
    %v1750 = vmul.f32 %v1746, %v1749
    %v1751 = vmul.f32 %v1747, %v1749
    %v1752 = vmul.f32 %v1748, %v1749
    %1756 = vrot.lane.b32.xlu0 %v1750, 30
    %v1757 = vpop.permute.xlu0 %1756
    %1758 = vrot.lane.b32.xlu0 %v1751, 30
    %v1759 = vpop.permute.xlu0 %1758
    %1760 = vrot.lane.b32.xlu0 %v1752, 30
    %v1761 = vpop.permute.xlu0 %1760
    %vm1762 = vcmask 244736
    %v1763 = vsel %vm1762, %v1757, %v1759
    %v1764 = vsel %vm1762, %v1759, %v1761
    %v1767 = vadd.f32 %v1735, %v1763
    %v1768 = vadd.f32 %v1736, %v1764
    %1769 = vrot.lane.b32.xlu0 %v279, 99
    %v1770 = vpop.permute.xlu0 %1769
    %1771 = vrot.lane.b32.xlu0 %v280, 99
    %v1772 = vpop.permute.xlu0 %1771
    %vm1773 = vcmask 809984
    %v1774 = vsel %vm1773, %v1770, %v1772
    %v1778 = vmul.f32 %v327, %v1770
    %v1779 = vmul.f32 %v323, %v1774
    %v1780 = vmul.f32 %v328, %v1772
    %v1781 = vstv %s184
    %v1782 = vmul.f32 %v1778, %v1781
    %v1783 = vmul.f32 %v1779, %v1781
    %v1784 = vmul.f32 %v1780, %v1781
    %1788 = vrot.lane.b32.xlu0 %v1782, 29
    %v1789 = vpop.permute.xlu0 %1788
    %1790 = vrot.lane.b32.xlu0 %v1783, 29
    %v1791 = vpop.permute.xlu0 %1790
    %1792 = vrot.lane.b32.xlu0 %v1784, 29
    %v1793 = vpop.permute.xlu0 %1792
    %vm1794 = vcmask 236544
    %v1795 = vsel %vm1794, %v1789, %v1791
    %v1796 = vsel %vm1794, %v1791, %v1793
    %v1799 = vadd.f32 %v1767, %v1795
    %v1800 = vadd.f32 %v1768, %v1796
    %1801 = vrot.lane.b32.xlu0 %v289, 100
    %v1802 = vpop.permute.xlu0 %1801
    %1803 = vrot.lane.b32.xlu0 %v290, 100
    %v1804 = vpop.permute.xlu0 %1803
    %vm1805 = vcmask 818176
    %v1806 = vsel %vm1805, %v1802, %v1804
    %v1810 = vmul.f32 %v327, %v1802
    %v1811 = vmul.f32 %v323, %v1806
    %v1812 = vmul.f32 %v328, %v1804
    %v1813 = vstv %s185
    %v1814 = vmul.f32 %v1810, %v1813
    %v1815 = vmul.f32 %v1811, %v1813
    %v1816 = vmul.f32 %v1812, %v1813
    %1820 = vrot.lane.b32.xlu0 %v1814, 28
    %v1821 = vpop.permute.xlu0 %1820
    %1822 = vrot.lane.b32.xlu0 %v1815, 28
    %v1823 = vpop.permute.xlu0 %1822
    %1824 = vrot.lane.b32.xlu0 %v1816, 28
    %v1825 = vpop.permute.xlu0 %1824
    %vm1826 = vcmask 228352
    %v1827 = vsel %vm1826, %v1821, %v1823
    %v1828 = vsel %vm1826, %v1823, %v1825
    %v1831 = vadd.f32 %v1799, %v1827
    %v1832 = vadd.f32 %v1800, %v1828
    %1833 = vrot.lane.b32.xlu0 %v299, 101
    %v1834 = vpop.permute.xlu0 %1833
    %1835 = vrot.lane.b32.xlu0 %v300, 101
    %v1836 = vpop.permute.xlu0 %1835
    %vm1837 = vcmask 826368
    %v1838 = vsel %vm1837, %v1834, %v1836
    %v1842 = vmul.f32 %v327, %v1834
    %v1843 = vmul.f32 %v323, %v1838
    %v1844 = vmul.f32 %v328, %v1836
    %v1845 = vstv %s186
    %v1846 = vmul.f32 %v1842, %v1845
    %v1847 = vmul.f32 %v1843, %v1845
    %v1848 = vmul.f32 %v1844, %v1845
    %1852 = vrot.lane.b32.xlu0 %v1846, 27
    %v1853 = vpop.permute.xlu0 %1852
    %1854 = vrot.lane.b32.xlu0 %v1847, 27
    %v1855 = vpop.permute.xlu0 %1854
    %1856 = vrot.lane.b32.xlu0 %v1848, 27
    %v1857 = vpop.permute.xlu0 %1856
    %vm1858 = vcmask 220160
    %v1859 = vsel %vm1858, %v1853, %v1855
    %v1860 = vsel %vm1858, %v1855, %v1857
    %v1863 = vadd.f32 %v1831, %v1859
    %v1864 = vadd.f32 %v1832, %v1860
    %1865 = vrot.lane.b32.xlu0 %v309, 102
    %v1866 = vpop.permute.xlu0 %1865
    %1867 = vrot.lane.b32.xlu0 %v310, 102
    %v1868 = vpop.permute.xlu0 %1867
    %vm1869 = vcmask 834560
    %v1870 = vsel %vm1869, %v1866, %v1868
    %v1874 = vmul.f32 %v327, %v1866
    %v1875 = vmul.f32 %v323, %v1870
    %v1876 = vmul.f32 %v328, %v1868
    %v1877 = vstv %s187
    %v1878 = vmul.f32 %v1874, %v1877
    %v1879 = vmul.f32 %v1875, %v1877
    %v1880 = vmul.f32 %v1876, %v1877
    %1884 = vrot.lane.b32.xlu0 %v1878, 26
    %v1885 = vpop.permute.xlu0 %1884
    %1886 = vrot.lane.b32.xlu0 %v1879, 26
    %v1887 = vpop.permute.xlu0 %1886
    %1888 = vrot.lane.b32.xlu0 %v1880, 26
    %v1889 = vpop.permute.xlu0 %1888
    %vm1890 = vcmask 211968
    %v1891 = vsel %vm1890, %v1885, %v1887
    %v1892 = vsel %vm1890, %v1887, %v1889
    %v1895 = vadd.f32 %v1863, %v1891
    %v1896 = vadd.f32 %v1864, %v1892
    %v1897 = vmul.f32 %v343, %v251
    %v1898 = vmul.f32 %v339, %v252
    %v1899 = vstv %s188
    %v1900 = vmul.f32 %v1897, %v1899
    %v1901 = vmul.f32 %v1898, %v1899
    %v1902 = vadd.f32 %v1895, %v1900
    %v1903 = vadd.f32 %v1896, %v1901
    %v1904 = vmul.f32 %v343, %v356
    %v1905 = vmul.f32 %v339, %v360
    %v1906 = vmul.f32 %v344, %v358
    %v1907 = vstv %s189
    %v1908 = vmul.f32 %v1904, %v1907
    %v1909 = vmul.f32 %v1905, %v1907
    %v1910 = vmul.f32 %v1906, %v1907
    %1914 = vrot.lane.b32.xlu0 %v1908, 127
    %v1915 = vpop.permute.xlu0 %1914
    %1916 = vrot.lane.b32.xlu0 %v1909, 127
    %v1917 = vpop.permute.xlu0 %1916
    %1918 = vrot.lane.b32.xlu0 %v1910, 127
    %v1919 = vpop.permute.xlu0 %1918
    %v1920 = vsel %vm380, %v1915, %v1917
    %v1921 = vsel %vm380, %v1917, %v1919
    %v1924 = vadd.f32 %v1902, %v1920
    %v1925 = vadd.f32 %v1903, %v1921
    %v1926 = vmul.f32 %v343, %v390
    %v1927 = vmul.f32 %v339, %v394
    %v1928 = vmul.f32 %v344, %v392
    %v1929 = vstv %s190
    %v1930 = vmul.f32 %v1926, %v1929
    %v1931 = vmul.f32 %v1927, %v1929
    %v1932 = vmul.f32 %v1928, %v1929
    %1936 = vrot.lane.b32.xlu0 %v1930, 126
    %v1937 = vpop.permute.xlu0 %1936
    %1938 = vrot.lane.b32.xlu0 %v1931, 126
    %v1939 = vpop.permute.xlu0 %1938
    %1940 = vrot.lane.b32.xlu0 %v1932, 126
    %v1941 = vpop.permute.xlu0 %1940
    %v1942 = vsel %vm414, %v1937, %v1939
    %v1943 = vsel %vm414, %v1939, %v1941
    %v1946 = vadd.f32 %v1924, %v1942
    %v1947 = vadd.f32 %v1925, %v1943
    %v1948 = vmul.f32 %v343, %v424
    %v1949 = vmul.f32 %v339, %v428
    %v1950 = vmul.f32 %v344, %v426
    %v1951 = vstv %s191
    %v1952 = vmul.f32 %v1948, %v1951
    %v1953 = vmul.f32 %v1949, %v1951
    %v1954 = vmul.f32 %v1950, %v1951
    %1958 = vrot.lane.b32.xlu0 %v1952, 125
    %v1959 = vpop.permute.xlu0 %1958
    %1960 = vrot.lane.b32.xlu0 %v1953, 125
    %v1961 = vpop.permute.xlu0 %1960
    %1962 = vrot.lane.b32.xlu0 %v1954, 125
    %v1963 = vpop.permute.xlu0 %1962
    %v1964 = vsel %vm448, %v1959, %v1961
    %v1965 = vsel %vm448, %v1961, %v1963
    %v1968 = vadd.f32 %v1946, %v1964
    %v1969 = vadd.f32 %v1947, %v1965
    %v1970 = vmul.f32 %v343, %v458
    %v1971 = vmul.f32 %v339, %v462
    %v1972 = vmul.f32 %v344, %v460
    %v1973 = vstv %s192
    %v1974 = vmul.f32 %v1970, %v1973
    %v1975 = vmul.f32 %v1971, %v1973
    %v1976 = vmul.f32 %v1972, %v1973
    %1980 = vrot.lane.b32.xlu0 %v1974, 124
    %v1981 = vpop.permute.xlu0 %1980
    %1982 = vrot.lane.b32.xlu0 %v1975, 124
    %v1983 = vpop.permute.xlu0 %1982
    %1984 = vrot.lane.b32.xlu0 %v1976, 124
    %v1985 = vpop.permute.xlu0 %1984
    %v1986 = vsel %vm482, %v1981, %v1983
    %v1987 = vsel %vm482, %v1983, %v1985
    %v1990 = vadd.f32 %v1968, %v1986
    %v1991 = vadd.f32 %v1969, %v1987
    %v1992 = vmul.f32 %v343, %v492
    %v1993 = vmul.f32 %v339, %v496
    %v1994 = vmul.f32 %v344, %v494
    %v1995 = vstv %s193
    %v1996 = vmul.f32 %v1992, %v1995
    %v1997 = vmul.f32 %v1993, %v1995
    %v1998 = vmul.f32 %v1994, %v1995
    %2002 = vrot.lane.b32.xlu0 %v1996, 123
    %v2003 = vpop.permute.xlu0 %2002
    %2004 = vrot.lane.b32.xlu0 %v1997, 123
    %v2005 = vpop.permute.xlu0 %2004
    %2006 = vrot.lane.b32.xlu0 %v1998, 123
    %v2007 = vpop.permute.xlu0 %2006
    %v2008 = vsel %vm516, %v2003, %v2005
    %v2009 = vsel %vm516, %v2005, %v2007
    %v2012 = vadd.f32 %v1990, %v2008
    %v2013 = vadd.f32 %v1991, %v2009
    %v2014 = vmul.f32 %v343, %v526
    %v2015 = vmul.f32 %v339, %v530
    %v2016 = vmul.f32 %v344, %v528
    %v2017 = vstv %s194
    %v2018 = vmul.f32 %v2014, %v2017
    %v2019 = vmul.f32 %v2015, %v2017
    %v2020 = vmul.f32 %v2016, %v2017
    %2024 = vrot.lane.b32.xlu0 %v2018, 122
    %v2025 = vpop.permute.xlu0 %2024
    %2026 = vrot.lane.b32.xlu0 %v2019, 122
    %v2027 = vpop.permute.xlu0 %2026
    %2028 = vrot.lane.b32.xlu0 %v2020, 122
    %v2029 = vpop.permute.xlu0 %2028
    %v2030 = vsel %vm550, %v2025, %v2027
    %v2031 = vsel %vm550, %v2027, %v2029
    %v2034 = vadd.f32 %v2012, %v2030
    %v2035 = vadd.f32 %v2013, %v2031
    %v2036 = vmul.f32 %v343, %v560
    %v2037 = vmul.f32 %v339, %v564
    %v2038 = vmul.f32 %v344, %v562
    %v2039 = vstv %s195
    %v2040 = vmul.f32 %v2036, %v2039
    %v2041 = vmul.f32 %v2037, %v2039
    %v2042 = vmul.f32 %v2038, %v2039
    %2046 = vrot.lane.b32.xlu0 %v2040, 112
    %v2047 = vpop.permute.xlu0 %2046
    %2048 = vrot.lane.b32.xlu0 %v2041, 112
    %v2049 = vpop.permute.xlu0 %2048
    %2050 = vrot.lane.b32.xlu0 %v2042, 112
    %v2051 = vpop.permute.xlu0 %2050
    %v2052 = vsel %vm584, %v2047, %v2049
    %v2053 = vsel %vm584, %v2049, %v2051
    %v2056 = vadd.f32 %v2034, %v2052
    %v2057 = vadd.f32 %v2035, %v2053
    %v2058 = vmul.f32 %v343, %v592
    %v2059 = vmul.f32 %v339, %v596
    %v2060 = vmul.f32 %v344, %v594
    %v2061 = vstv %s196
    %v2062 = vmul.f32 %v2058, %v2061
    %v2063 = vmul.f32 %v2059, %v2061
    %v2064 = vmul.f32 %v2060, %v2061
    %2068 = vrot.lane.b32.xlu0 %v2062, 111
    %v2069 = vpop.permute.xlu0 %2068
    %2070 = vrot.lane.b32.xlu0 %v2063, 111
    %v2071 = vpop.permute.xlu0 %2070
    %2072 = vrot.lane.b32.xlu0 %v2064, 111
    %v2073 = vpop.permute.xlu0 %2072
    %v2074 = vsel %vm616, %v2069, %v2071
    %v2075 = vsel %vm616, %v2071, %v2073
    %v2078 = vadd.f32 %v2056, %v2074
    %v2079 = vadd.f32 %v2057, %v2075
    %v2080 = vmul.f32 %v343, %v624
    %v2081 = vmul.f32 %v339, %v628
    %v2082 = vmul.f32 %v344, %v626
    %v2083 = vstv %s197
    %v2084 = vmul.f32 %v2080, %v2083
    %v2085 = vmul.f32 %v2081, %v2083
    %v2086 = vmul.f32 %v2082, %v2083
    %2090 = vrot.lane.b32.xlu0 %v2084, 110
    %v2091 = vpop.permute.xlu0 %2090
    %2092 = vrot.lane.b32.xlu0 %v2085, 110
    %v2093 = vpop.permute.xlu0 %2092
    %2094 = vrot.lane.b32.xlu0 %v2086, 110
    %v2095 = vpop.permute.xlu0 %2094
    %v2096 = vsel %vm648, %v2091, %v2093
    %v2097 = vsel %vm648, %v2093, %v2095
    %v2100 = vadd.f32 %v2078, %v2096
    %v2101 = vadd.f32 %v2079, %v2097
    %v2102 = vmul.f32 %v343, %v656
    %v2103 = vmul.f32 %v339, %v660
    %v2104 = vmul.f32 %v344, %v658
    %v2105 = vstv %s198
    %v2106 = vmul.f32 %v2102, %v2105
    %v2107 = vmul.f32 %v2103, %v2105
    %v2108 = vmul.f32 %v2104, %v2105
    %2112 = vrot.lane.b32.xlu0 %v2106, 109
    %v2113 = vpop.permute.xlu0 %2112
    %2114 = vrot.lane.b32.xlu0 %v2107, 109
    %v2115 = vpop.permute.xlu0 %2114
    %2116 = vrot.lane.b32.xlu0 %v2108, 109
    %v2117 = vpop.permute.xlu0 %2116
    %v2118 = vsel %vm680, %v2113, %v2115
    %v2119 = vsel %vm680, %v2115, %v2117
    %v2122 = vadd.f32 %v2100, %v2118
    %v2123 = vadd.f32 %v2101, %v2119
    %v2124 = vmul.f32 %v343, %v688
    %v2125 = vmul.f32 %v339, %v692
    %v2126 = vmul.f32 %v344, %v690
    %v2127 = vstv %s199
    %v2128 = vmul.f32 %v2124, %v2127
    %v2129 = vmul.f32 %v2125, %v2127
    %v2130 = vmul.f32 %v2126, %v2127
    %2134 = vrot.lane.b32.xlu0 %v2128, 108
    %v2135 = vpop.permute.xlu0 %2134
    %2136 = vrot.lane.b32.xlu0 %v2129, 108
    %v2137 = vpop.permute.xlu0 %2136
    %2138 = vrot.lane.b32.xlu0 %v2130, 108
    %v2139 = vpop.permute.xlu0 %2138
    %v2140 = vsel %vm712, %v2135, %v2137
    %v2141 = vsel %vm712, %v2137, %v2139
    %v2144 = vadd.f32 %v2122, %v2140
    %v2145 = vadd.f32 %v2123, %v2141
    %v2146 = vmul.f32 %v343, %v720
    %v2147 = vmul.f32 %v339, %v724
    %v2148 = vmul.f32 %v344, %v722
    %v2149 = vstv %s200
    %v2150 = vmul.f32 %v2146, %v2149
    %v2151 = vmul.f32 %v2147, %v2149
    %v2152 = vmul.f32 %v2148, %v2149
    %2156 = vrot.lane.b32.xlu0 %v2150, 107
    %v2157 = vpop.permute.xlu0 %2156
    %2158 = vrot.lane.b32.xlu0 %v2151, 107
    %v2159 = vpop.permute.xlu0 %2158
    %2160 = vrot.lane.b32.xlu0 %v2152, 107
    %v2161 = vpop.permute.xlu0 %2160
    %v2162 = vsel %vm744, %v2157, %v2159
    %v2163 = vsel %vm744, %v2159, %v2161
    %v2166 = vadd.f32 %v2144, %v2162
    %v2167 = vadd.f32 %v2145, %v2163
    %v2168 = vmul.f32 %v343, %v752
    %v2169 = vmul.f32 %v339, %v756
    %v2170 = vmul.f32 %v344, %v754
    %v2171 = vstv %s201
    %v2172 = vmul.f32 %v2168, %v2171
    %v2173 = vmul.f32 %v2169, %v2171
    %v2174 = vmul.f32 %v2170, %v2171
    %2178 = vrot.lane.b32.xlu0 %v2172, 106
    %v2179 = vpop.permute.xlu0 %2178
    %2180 = vrot.lane.b32.xlu0 %v2173, 106
    %v2181 = vpop.permute.xlu0 %2180
    %2182 = vrot.lane.b32.xlu0 %v2174, 106
    %v2183 = vpop.permute.xlu0 %2182
    %v2184 = vsel %vm776, %v2179, %v2181
    %v2185 = vsel %vm776, %v2181, %v2183
    %v2188 = vadd.f32 %v2166, %v2184
    %v2189 = vadd.f32 %v2167, %v2185
    %v2190 = vmul.f32 %v343, %v784
    %v2191 = vmul.f32 %v339, %v788
    %v2192 = vmul.f32 %v344, %v786
    %v2193 = vstv %s202
    %v2194 = vmul.f32 %v2190, %v2193
    %v2195 = vmul.f32 %v2191, %v2193
    %v2196 = vmul.f32 %v2192, %v2193
    %2200 = vrot.lane.b32.xlu0 %v2194, 96
    %v2201 = vpop.permute.xlu0 %2200
    %2202 = vrot.lane.b32.xlu0 %v2195, 96
    %v2203 = vpop.permute.xlu0 %2202
    %2204 = vrot.lane.b32.xlu0 %v2196, 96
    %v2205 = vpop.permute.xlu0 %2204
    %v2206 = vsel %vm808, %v2201, %v2203
    %v2207 = vsel %vm808, %v2203, %v2205
    %v2210 = vadd.f32 %v2188, %v2206
    %v2211 = vadd.f32 %v2189, %v2207
    %v2212 = vmul.f32 %v343, %v816
    %v2213 = vmul.f32 %v339, %v820
    %v2214 = vmul.f32 %v344, %v818
    %v2215 = vstv %s203
    %v2216 = vmul.f32 %v2212, %v2215
    %v2217 = vmul.f32 %v2213, %v2215
    %v2218 = vmul.f32 %v2214, %v2215
    %2222 = vrot.lane.b32.xlu0 %v2216, 95
    %v2223 = vpop.permute.xlu0 %2222
    %2224 = vrot.lane.b32.xlu0 %v2217, 95
    %v2225 = vpop.permute.xlu0 %2224
    %2226 = vrot.lane.b32.xlu0 %v2218, 95
    %v2227 = vpop.permute.xlu0 %2226
    %v2228 = vsel %vm840, %v2223, %v2225
    %v2229 = vsel %vm840, %v2225, %v2227
    %v2232 = vadd.f32 %v2210, %v2228
    %v2233 = vadd.f32 %v2211, %v2229
    %v2234 = vmul.f32 %v343, %v848
    %v2235 = vmul.f32 %v339, %v852
    %v2236 = vmul.f32 %v344, %v850
    %v2237 = vstv %s204
    %v2238 = vmul.f32 %v2234, %v2237
    %v2239 = vmul.f32 %v2235, %v2237
    %v2240 = vmul.f32 %v2236, %v2237
    %2244 = vrot.lane.b32.xlu0 %v2238, 94
    %v2245 = vpop.permute.xlu0 %2244
    %2246 = vrot.lane.b32.xlu0 %v2239, 94
    %v2247 = vpop.permute.xlu0 %2246
    %2248 = vrot.lane.b32.xlu0 %v2240, 94
    %v2249 = vpop.permute.xlu0 %2248
    %v2250 = vsel %vm872, %v2245, %v2247
    %v2251 = vsel %vm872, %v2247, %v2249
    %v2254 = vadd.f32 %v2232, %v2250
    %v2255 = vadd.f32 %v2233, %v2251
    %v2256 = vmul.f32 %v343, %v880
    %v2257 = vmul.f32 %v339, %v884
    %v2258 = vmul.f32 %v344, %v882
    %v2259 = vstv %s205
    %v2260 = vmul.f32 %v2256, %v2259
    %v2261 = vmul.f32 %v2257, %v2259
    %v2262 = vmul.f32 %v2258, %v2259
    %2266 = vrot.lane.b32.xlu0 %v2260, 93
    %v2267 = vpop.permute.xlu0 %2266
    %2268 = vrot.lane.b32.xlu0 %v2261, 93
    %v2269 = vpop.permute.xlu0 %2268
    %2270 = vrot.lane.b32.xlu0 %v2262, 93
    %v2271 = vpop.permute.xlu0 %2270
    %v2272 = vsel %vm904, %v2267, %v2269
    %v2273 = vsel %vm904, %v2269, %v2271
    %v2276 = vadd.f32 %v2254, %v2272
    %v2277 = vadd.f32 %v2255, %v2273
    %v2278 = vmul.f32 %v343, %v912
    %v2279 = vmul.f32 %v339, %v916
    %v2280 = vmul.f32 %v344, %v914
    %v2281 = vstv %s206
    %v2282 = vmul.f32 %v2278, %v2281
    %v2283 = vmul.f32 %v2279, %v2281
    %v2284 = vmul.f32 %v2280, %v2281
    %2288 = vrot.lane.b32.xlu0 %v2282, 92
    %v2289 = vpop.permute.xlu0 %2288
    %2290 = vrot.lane.b32.xlu0 %v2283, 92
    %v2291 = vpop.permute.xlu0 %2290
    %2292 = vrot.lane.b32.xlu0 %v2284, 92
    %v2293 = vpop.permute.xlu0 %2292
    %v2294 = vsel %vm936, %v2289, %v2291
    %v2295 = vsel %vm936, %v2291, %v2293
    %v2298 = vadd.f32 %v2276, %v2294
    %v2299 = vadd.f32 %v2277, %v2295
    %v2300 = vmul.f32 %v343, %v944
    %v2301 = vmul.f32 %v339, %v948
    %v2302 = vmul.f32 %v344, %v946
    %v2303 = vstv %s207
    %v2304 = vmul.f32 %v2300, %v2303
    %v2305 = vmul.f32 %v2301, %v2303
    %v2306 = vmul.f32 %v2302, %v2303
    %2310 = vrot.lane.b32.xlu0 %v2304, 91
    %v2311 = vpop.permute.xlu0 %2310
    %2312 = vrot.lane.b32.xlu0 %v2305, 91
    %v2313 = vpop.permute.xlu0 %2312
    %2314 = vrot.lane.b32.xlu0 %v2306, 91
    %v2315 = vpop.permute.xlu0 %2314
    %v2316 = vsel %vm968, %v2311, %v2313
    %v2317 = vsel %vm968, %v2313, %v2315
    %v2320 = vadd.f32 %v2298, %v2316
    %v2321 = vadd.f32 %v2299, %v2317
    %v2322 = vmul.f32 %v343, %v976
    %v2323 = vmul.f32 %v339, %v980
    %v2324 = vmul.f32 %v344, %v978
    %v2325 = vstv %s208
    %v2326 = vmul.f32 %v2322, %v2325
    %v2327 = vmul.f32 %v2323, %v2325
    %v2328 = vmul.f32 %v2324, %v2325
    %2332 = vrot.lane.b32.xlu0 %v2326, 90
    %v2333 = vpop.permute.xlu0 %2332
    %2334 = vrot.lane.b32.xlu0 %v2327, 90
    %v2335 = vpop.permute.xlu0 %2334
    %2336 = vrot.lane.b32.xlu0 %v2328, 90
    %v2337 = vpop.permute.xlu0 %2336
    %v2338 = vsel %vm1000, %v2333, %v2335
    %v2339 = vsel %vm1000, %v2335, %v2337
    %v2342 = vadd.f32 %v2320, %v2338
    %v2343 = vadd.f32 %v2321, %v2339
    %v2344 = vmul.f32 %v343, %v1008
    %v2345 = vmul.f32 %v339, %v1012
    %v2346 = vmul.f32 %v344, %v1010
    %v2347 = vstv %s209
    %v2348 = vmul.f32 %v2344, %v2347
    %v2349 = vmul.f32 %v2345, %v2347
    %v2350 = vmul.f32 %v2346, %v2347
    %2354 = vrot.lane.b32.xlu0 %v2348, 80
    %v2355 = vpop.permute.xlu0 %2354
    %2356 = vrot.lane.b32.xlu0 %v2349, 80
    %v2357 = vpop.permute.xlu0 %2356
    %2358 = vrot.lane.b32.xlu0 %v2350, 80
    %v2359 = vpop.permute.xlu0 %2358
    %v2360 = vsel %vm1032, %v2355, %v2357
    %v2361 = vsel %vm1032, %v2357, %v2359
    %v2364 = vadd.f32 %v2342, %v2360
    %v2365 = vadd.f32 %v2343, %v2361
    %v2366 = vmul.f32 %v343, %v1040
    %v2367 = vmul.f32 %v339, %v1044
    %v2368 = vmul.f32 %v344, %v1042
    %v2369 = vstv %s210
    %v2370 = vmul.f32 %v2366, %v2369
    %v2371 = vmul.f32 %v2367, %v2369
    %v2372 = vmul.f32 %v2368, %v2369
    %2376 = vrot.lane.b32.xlu0 %v2370, 79
    %v2377 = vpop.permute.xlu0 %2376
    %2378 = vrot.lane.b32.xlu0 %v2371, 79
    %v2379 = vpop.permute.xlu0 %2378
    %2380 = vrot.lane.b32.xlu0 %v2372, 79
    %v2381 = vpop.permute.xlu0 %2380
    %v2382 = vsel %vm1064, %v2377, %v2379
    %v2383 = vsel %vm1064, %v2379, %v2381
    %v2386 = vadd.f32 %v2364, %v2382
    %v2387 = vadd.f32 %v2365, %v2383
    %v2388 = vmul.f32 %v343, %v1072
    %v2389 = vmul.f32 %v339, %v1076
    %v2390 = vmul.f32 %v344, %v1074
    %v2391 = vstv %s211
    %v2392 = vmul.f32 %v2388, %v2391
    %v2393 = vmul.f32 %v2389, %v2391
    %v2394 = vmul.f32 %v2390, %v2391
    %2398 = vrot.lane.b32.xlu0 %v2392, 78
    %v2399 = vpop.permute.xlu0 %2398
    %2400 = vrot.lane.b32.xlu0 %v2393, 78
    %v2401 = vpop.permute.xlu0 %2400
    %2402 = vrot.lane.b32.xlu0 %v2394, 78
    %v2403 = vpop.permute.xlu0 %2402
    %v2404 = vsel %vm1096, %v2399, %v2401
    %v2405 = vsel %vm1096, %v2401, %v2403
    %v2408 = vadd.f32 %v2386, %v2404
    %v2409 = vadd.f32 %v2387, %v2405
    %v2410 = vmul.f32 %v343, %v1104
    %v2411 = vmul.f32 %v339, %v1107
    %v2412 = vmul.f32 %v344, %v1106
    %v2413 = vstv %s212
    %v2414 = vmul.f32 %v2410, %v2413
    %v2415 = vmul.f32 %v2411, %v2413
    %v2416 = vmul.f32 %v2412, %v2413
    %2420 = vrot.lane.b32.xlu0 %v2414, 77
    %v2421 = vpop.permute.xlu0 %2420
    %2422 = vrot.lane.b32.xlu0 %v2415, 77
    %v2423 = vpop.permute.xlu0 %2422
    %2424 = vrot.lane.b32.xlu0 %v2416, 77
    %v2425 = vpop.permute.xlu0 %2424
    %v2426 = vsel %vm1127, %v2421, %v2423
    %v2427 = vsel %vm1127, %v2423, %v2425
    %v2430 = vadd.f32 %v2408, %v2426
    %v2431 = vadd.f32 %v2409, %v2427
    %v2432 = vmul.f32 %v343, %v1135
    %v2433 = vmul.f32 %v339, %v1139
    %v2434 = vmul.f32 %v344, %v1137
    %v2435 = vstv %s213
    %v2436 = vmul.f32 %v2432, %v2435
    %v2437 = vmul.f32 %v2433, %v2435
    %v2438 = vmul.f32 %v2434, %v2435
    %2442 = vrot.lane.b32.xlu0 %v2436, 76
    %v2443 = vpop.permute.xlu0 %2442
    %2444 = vrot.lane.b32.xlu0 %v2437, 76
    %v2445 = vpop.permute.xlu0 %2444
    %2446 = vrot.lane.b32.xlu0 %v2438, 76
    %v2447 = vpop.permute.xlu0 %2446
    %v2448 = vsel %vm1159, %v2443, %v2445
    %v2449 = vsel %vm1159, %v2445, %v2447
    %v2452 = vadd.f32 %v2430, %v2448
    %v2453 = vadd.f32 %v2431, %v2449
    %v2454 = vmul.f32 %v343, %v1167
    %v2455 = vmul.f32 %v339, %v1171
    %v2456 = vmul.f32 %v344, %v1169
    %v2457 = vstv %s214
    %v2458 = vmul.f32 %v2454, %v2457
    %v2459 = vmul.f32 %v2455, %v2457
    %v2460 = vmul.f32 %v2456, %v2457
    %2464 = vrot.lane.b32.xlu0 %v2458, 75
    %v2465 = vpop.permute.xlu0 %2464
    %2466 = vrot.lane.b32.xlu0 %v2459, 75
    %v2467 = vpop.permute.xlu0 %2466
    %2468 = vrot.lane.b32.xlu0 %v2460, 75
    %v2469 = vpop.permute.xlu0 %2468
    %v2470 = vsel %vm1191, %v2465, %v2467
    %v2471 = vsel %vm1191, %v2467, %v2469
    %v2474 = vadd.f32 %v2452, %v2470
    %v2475 = vadd.f32 %v2453, %v2471
    %v2476 = vmul.f32 %v343, %v1199
    %v2477 = vmul.f32 %v339, %v1203
    %v2478 = vmul.f32 %v344, %v1201
    %v2479 = vstv %s215
    %v2480 = vmul.f32 %v2476, %v2479
    %v2481 = vmul.f32 %v2477, %v2479
    %v2482 = vmul.f32 %v2478, %v2479
    %2486 = vrot.lane.b32.xlu0 %v2480, 74
    %v2487 = vpop.permute.xlu0 %2486
    %2488 = vrot.lane.b32.xlu0 %v2481, 74
    %v2489 = vpop.permute.xlu0 %2488
    %2490 = vrot.lane.b32.xlu0 %v2482, 74
    %v2491 = vpop.permute.xlu0 %2490
    %v2492 = vsel %vm1223, %v2487, %v2489
    %v2493 = vsel %vm1223, %v2489, %v2491
    %v2496 = vadd.f32 %v2474, %v2492
    %v2497 = vadd.f32 %v2475, %v2493
    %v2498 = vmul.f32 %v343, %v1231
    %v2499 = vmul.f32 %v339, %v1235
    %v2500 = vmul.f32 %v344, %v1233
    %v2501 = vstv %s216
    %v2502 = vmul.f32 %v2498, %v2501
    %v2503 = vmul.f32 %v2499, %v2501
    %v2504 = vmul.f32 %v2500, %v2501
    %2508 = vrot.lane.b32.xlu0 %v2502, 64
    %v2509 = vpop.permute.xlu0 %2508
    %2510 = vrot.lane.b32.xlu0 %v2503, 64
    %v2511 = vpop.permute.xlu0 %2510
    %2512 = vrot.lane.b32.xlu0 %v2504, 64
    %v2513 = vpop.permute.xlu0 %2512
    %v2514 = vsel %vm1234, %v2509, %v2511
    %v2515 = vsel %vm1234, %v2511, %v2513
    %v2518 = vadd.f32 %v2496, %v2514
    %v2519 = vadd.f32 %v2497, %v2515
    %v2520 = vmul.f32 %v343, %v1262
    %v2521 = vmul.f32 %v339, %v1266
    %v2522 = vmul.f32 %v344, %v1264
    %v2523 = vstv %s217
    %v2524 = vmul.f32 %v2520, %v2523
    %v2525 = vmul.f32 %v2521, %v2523
    %v2526 = vmul.f32 %v2522, %v2523
    %2530 = vrot.lane.b32.xlu0 %v2524, 63
    %v2531 = vpop.permute.xlu0 %2530
    %2532 = vrot.lane.b32.xlu0 %v2525, 63
    %v2533 = vpop.permute.xlu0 %2532
    %2534 = vrot.lane.b32.xlu0 %v2526, 63
    %v2535 = vpop.permute.xlu0 %2534
    %v2536 = vsel %vm1286, %v2531, %v2533
    %v2537 = vsel %vm1286, %v2533, %v2535
    %v2540 = vadd.f32 %v2518, %v2536
    %v2541 = vadd.f32 %v2519, %v2537
    %v2542 = vmul.f32 %v343, %v1294
    %v2543 = vmul.f32 %v339, %v1298
    %v2544 = vmul.f32 %v344, %v1296
    %v2545 = vstv %s218
    %v2546 = vmul.f32 %v2542, %v2545
    %v2547 = vmul.f32 %v2543, %v2545
    %v2548 = vmul.f32 %v2544, %v2545
    %2552 = vrot.lane.b32.xlu0 %v2546, 62
    %v2553 = vpop.permute.xlu0 %2552
    %2554 = vrot.lane.b32.xlu0 %v2547, 62
    %v2555 = vpop.permute.xlu0 %2554
    %2556 = vrot.lane.b32.xlu0 %v2548, 62
    %v2557 = vpop.permute.xlu0 %2556
    %v2558 = vsel %vm1318, %v2553, %v2555
    %v2559 = vsel %vm1318, %v2555, %v2557
    %v2562 = vadd.f32 %v2540, %v2558
    %v2563 = vadd.f32 %v2541, %v2559
    %v2564 = vmul.f32 %v343, %v1326
    %v2565 = vmul.f32 %v339, %v1330
    %v2566 = vmul.f32 %v344, %v1328
    %v2567 = vstv %s219
    %v2568 = vmul.f32 %v2564, %v2567
    %v2569 = vmul.f32 %v2565, %v2567
    %v2570 = vmul.f32 %v2566, %v2567
    %2574 = vrot.lane.b32.xlu0 %v2568, 61
    %v2575 = vpop.permute.xlu0 %2574
    %2576 = vrot.lane.b32.xlu0 %v2569, 61
    %v2577 = vpop.permute.xlu0 %2576
    %2578 = vrot.lane.b32.xlu0 %v2570, 61
    %v2579 = vpop.permute.xlu0 %2578
    %v2580 = vsel %vm1350, %v2575, %v2577
    %v2581 = vsel %vm1350, %v2577, %v2579
    %v2584 = vadd.f32 %v2562, %v2580
    %v2585 = vadd.f32 %v2563, %v2581
    %v2586 = vmul.f32 %v343, %v1358
    %v2587 = vmul.f32 %v339, %v1362
    %v2588 = vmul.f32 %v344, %v1360
    %v2589 = vstv %s220
    %v2590 = vmul.f32 %v2586, %v2589
    %v2591 = vmul.f32 %v2587, %v2589
    %v2592 = vmul.f32 %v2588, %v2589
    %2596 = vrot.lane.b32.xlu0 %v2590, 60
    %v2597 = vpop.permute.xlu0 %2596
    %2598 = vrot.lane.b32.xlu0 %v2591, 60
    %v2599 = vpop.permute.xlu0 %2598
    %2600 = vrot.lane.b32.xlu0 %v2592, 60
    %v2601 = vpop.permute.xlu0 %2600
    %v2602 = vsel %vm1382, %v2597, %v2599
    %v2603 = vsel %vm1382, %v2599, %v2601
    %v2606 = vadd.f32 %v2584, %v2602
    %v2607 = vadd.f32 %v2585, %v2603
    %v2608 = vmul.f32 %v343, %v1390
    %v2609 = vmul.f32 %v339, %v1394
    %v2610 = vmul.f32 %v344, %v1392
    %v2611 = vstv %s221
    %v2612 = vmul.f32 %v2608, %v2611
    %v2613 = vmul.f32 %v2609, %v2611
    %v2614 = vmul.f32 %v2610, %v2611
    %2618 = vrot.lane.b32.xlu0 %v2612, 59
    %v2619 = vpop.permute.xlu0 %2618
    %2620 = vrot.lane.b32.xlu0 %v2613, 59
    %v2621 = vpop.permute.xlu0 %2620
    %2622 = vrot.lane.b32.xlu0 %v2614, 59
    %v2623 = vpop.permute.xlu0 %2622
    %v2624 = vsel %vm1414, %v2619, %v2621
    %v2625 = vsel %vm1414, %v2621, %v2623
    %v2628 = vadd.f32 %v2606, %v2624
    %v2629 = vadd.f32 %v2607, %v2625
    %v2630 = vmul.f32 %v343, %v1422
    %v2631 = vmul.f32 %v339, %v1426
    %v2632 = vmul.f32 %v344, %v1424
    %v2633 = vstv %s222
    %v2634 = vmul.f32 %v2630, %v2633
    %v2635 = vmul.f32 %v2631, %v2633
    %v2636 = vmul.f32 %v2632, %v2633
    %2640 = vrot.lane.b32.xlu0 %v2634, 58
    %v2641 = vpop.permute.xlu0 %2640
    %2642 = vrot.lane.b32.xlu0 %v2635, 58
    %v2643 = vpop.permute.xlu0 %2642
    %2644 = vrot.lane.b32.xlu0 %v2636, 58
    %v2645 = vpop.permute.xlu0 %2644
    %v2646 = vsel %vm1446, %v2641, %v2643
    %v2647 = vsel %vm1446, %v2643, %v2645
    %v2650 = vadd.f32 %v2628, %v2646
    %v2651 = vadd.f32 %v2629, %v2647
    %v2652 = vmul.f32 %v343, %v1454
    %v2653 = vmul.f32 %v339, %v1457
    %v2654 = vmul.f32 %v344, %v1456
    %v2655 = vstv %s223
    %v2656 = vmul.f32 %v2652, %v2655
    %v2657 = vmul.f32 %v2653, %v2655
    %v2658 = vmul.f32 %v2654, %v2655
    %2662 = vrot.lane.b32.xlu0 %v2656, 48
    %v2663 = vpop.permute.xlu0 %2662
    %2664 = vrot.lane.b32.xlu0 %v2657, 48
    %v2665 = vpop.permute.xlu0 %2664
    %2666 = vrot.lane.b32.xlu0 %v2658, 48
    %v2667 = vpop.permute.xlu0 %2666
    %v2668 = vsel %vm1011, %v2663, %v2665
    %v2669 = vsel %vm1011, %v2665, %v2667
    %v2672 = vadd.f32 %v2650, %v2668
    %v2673 = vadd.f32 %v2651, %v2669
    %v2674 = vmul.f32 %v343, %v1484
    %v2675 = vmul.f32 %v339, %v1488
    %v2676 = vmul.f32 %v344, %v1486
    %v2677 = vstv %s224
    %v2678 = vmul.f32 %v2674, %v2677
    %v2679 = vmul.f32 %v2675, %v2677
    %v2680 = vmul.f32 %v2676, %v2677
    %2684 = vrot.lane.b32.xlu0 %v2678, 47
    %v2685 = vpop.permute.xlu0 %2684
    %2686 = vrot.lane.b32.xlu0 %v2679, 47
    %v2687 = vpop.permute.xlu0 %2686
    %2688 = vrot.lane.b32.xlu0 %v2680, 47
    %v2689 = vpop.permute.xlu0 %2688
    %v2690 = vsel %vm1508, %v2685, %v2687
    %v2691 = vsel %vm1508, %v2687, %v2689
    %v2694 = vadd.f32 %v2672, %v2690
    %v2695 = vadd.f32 %v2673, %v2691
    %v2696 = vmul.f32 %v343, %v1516
    %v2697 = vmul.f32 %v339, %v1520
    %v2698 = vmul.f32 %v344, %v1518
    %v2699 = vstv %s225
    %v2700 = vmul.f32 %v2696, %v2699
    %v2701 = vmul.f32 %v2697, %v2699
    %v2702 = vmul.f32 %v2698, %v2699
    %2706 = vrot.lane.b32.xlu0 %v2700, 46
    %v2707 = vpop.permute.xlu0 %2706
    %2708 = vrot.lane.b32.xlu0 %v2701, 46
    %v2709 = vpop.permute.xlu0 %2708
    %2710 = vrot.lane.b32.xlu0 %v2702, 46
    %v2711 = vpop.permute.xlu0 %2710
    %v2712 = vsel %vm1540, %v2707, %v2709
    %v2713 = vsel %vm1540, %v2709, %v2711
    %v2716 = vadd.f32 %v2694, %v2712
    %v2717 = vadd.f32 %v2695, %v2713
    %v2718 = vmul.f32 %v343, %v1548
    %v2719 = vmul.f32 %v339, %v1552
    %v2720 = vmul.f32 %v344, %v1550
    %v2721 = vstv %s226
    %v2722 = vmul.f32 %v2718, %v2721
    %v2723 = vmul.f32 %v2719, %v2721
    %v2724 = vmul.f32 %v2720, %v2721
    %2728 = vrot.lane.b32.xlu0 %v2722, 45
    %v2729 = vpop.permute.xlu0 %2728
    %2730 = vrot.lane.b32.xlu0 %v2723, 45
    %v2731 = vpop.permute.xlu0 %2730
    %2732 = vrot.lane.b32.xlu0 %v2724, 45
    %v2733 = vpop.permute.xlu0 %2732
    %v2734 = vsel %vm1572, %v2729, %v2731
    %v2735 = vsel %vm1572, %v2731, %v2733
    %v2738 = vadd.f32 %v2716, %v2734
    %v2739 = vadd.f32 %v2717, %v2735
    %v2740 = vmul.f32 %v343, %v1580
    %v2741 = vmul.f32 %v339, %v1584
    %v2742 = vmul.f32 %v344, %v1582
    %v2743 = vstv %s227
    %v2744 = vmul.f32 %v2740, %v2743
    %v2745 = vmul.f32 %v2741, %v2743
    %v2746 = vmul.f32 %v2742, %v2743
    %2750 = vrot.lane.b32.xlu0 %v2744, 44
    %v2751 = vpop.permute.xlu0 %2750
    %2752 = vrot.lane.b32.xlu0 %v2745, 44
    %v2753 = vpop.permute.xlu0 %2752
    %2754 = vrot.lane.b32.xlu0 %v2746, 44
    %v2755 = vpop.permute.xlu0 %2754
    %v2756 = vsel %vm1604, %v2751, %v2753
    %v2757 = vsel %vm1604, %v2753, %v2755
    %v2760 = vadd.f32 %v2738, %v2756
    %v2761 = vadd.f32 %v2739, %v2757
    %v2762 = vmul.f32 %v343, %v1612
    %v2763 = vmul.f32 %v339, %v1616
    %v2764 = vmul.f32 %v344, %v1614
    %v2765 = vstv %s228
    %v2766 = vmul.f32 %v2762, %v2765
    %v2767 = vmul.f32 %v2763, %v2765
    %v2768 = vmul.f32 %v2764, %v2765
    %2772 = vrot.lane.b32.xlu0 %v2766, 43
    %v2773 = vpop.permute.xlu0 %2772
    %2774 = vrot.lane.b32.xlu0 %v2767, 43
    %v2775 = vpop.permute.xlu0 %2774
    %2776 = vrot.lane.b32.xlu0 %v2768, 43
    %v2777 = vpop.permute.xlu0 %2776
    %v2778 = vsel %vm1636, %v2773, %v2775
    %v2779 = vsel %vm1636, %v2775, %v2777
    %v2782 = vadd.f32 %v2760, %v2778
    %v2783 = vadd.f32 %v2761, %v2779
    %v2784 = vmul.f32 %v343, %v1644
    %v2785 = vmul.f32 %v339, %v1648
    %v2786 = vmul.f32 %v344, %v1646
    %v2787 = vstv %s229
    %v2788 = vmul.f32 %v2784, %v2787
    %v2789 = vmul.f32 %v2785, %v2787
    %v2790 = vmul.f32 %v2786, %v2787
    %2794 = vrot.lane.b32.xlu0 %v2788, 42
    %v2795 = vpop.permute.xlu0 %2794
    %2796 = vrot.lane.b32.xlu0 %v2789, 42
    %v2797 = vpop.permute.xlu0 %2796
    %2798 = vrot.lane.b32.xlu0 %v2790, 42
    %v2799 = vpop.permute.xlu0 %2798
    %v2800 = vsel %vm1668, %v2795, %v2797
    %v2801 = vsel %vm1668, %v2797, %v2799
    %v2804 = vadd.f32 %v2782, %v2800
    %v2805 = vadd.f32 %v2783, %v2801
    %v2806 = vmul.f32 %v343, %v1676
    %v2807 = vmul.f32 %v339, %v1679
    %v2808 = vmul.f32 %v344, %v1678
    %v2809 = vstv %s230
    %v2810 = vmul.f32 %v2806, %v2809
    %v2811 = vmul.f32 %v2807, %v2809
    %v2812 = vmul.f32 %v2808, %v2809
    %2816 = vrot.lane.b32.xlu0 %v2810, 32
    %v2817 = vpop.permute.xlu0 %2816
    %2818 = vrot.lane.b32.xlu0 %v2811, 32
    %v2819 = vpop.permute.xlu0 %2818
    %2820 = vrot.lane.b32.xlu0 %v2812, 32
    %v2821 = vpop.permute.xlu0 %2820
    %v2822 = vsel %vm787, %v2817, %v2819
    %v2823 = vsel %vm787, %v2819, %v2821
    %v2826 = vadd.f32 %v2804, %v2822
    %v2827 = vadd.f32 %v2805, %v2823
    %v2828 = vmul.f32 %v343, %v1706
    %v2829 = vmul.f32 %v339, %v1710
    %v2830 = vmul.f32 %v344, %v1708
    %v2831 = vstv %s231
    %v2832 = vmul.f32 %v2828, %v2831
    %v2833 = vmul.f32 %v2829, %v2831
    %v2834 = vmul.f32 %v2830, %v2831
    %2838 = vrot.lane.b32.xlu0 %v2832, 31
    %v2839 = vpop.permute.xlu0 %2838
    %2840 = vrot.lane.b32.xlu0 %v2833, 31
    %v2841 = vpop.permute.xlu0 %2840
    %2842 = vrot.lane.b32.xlu0 %v2834, 31
    %v2843 = vpop.permute.xlu0 %2842
    %v2844 = vsel %vm1730, %v2839, %v2841
    %v2845 = vsel %vm1730, %v2841, %v2843
    %v2848 = vadd.f32 %v2826, %v2844
    %v2849 = vadd.f32 %v2827, %v2845
    %v2850 = vmul.f32 %v343, %v1738
    %v2851 = vmul.f32 %v339, %v1742
    %v2852 = vmul.f32 %v344, %v1740
    %v2853 = vstv %s232
    %v2854 = vmul.f32 %v2850, %v2853
    %v2855 = vmul.f32 %v2851, %v2853
    %v2856 = vmul.f32 %v2852, %v2853
    %2860 = vrot.lane.b32.xlu0 %v2854, 30
    %v2861 = vpop.permute.xlu0 %2860
    %2862 = vrot.lane.b32.xlu0 %v2855, 30
    %v2863 = vpop.permute.xlu0 %2862
    %2864 = vrot.lane.b32.xlu0 %v2856, 30
    %v2865 = vpop.permute.xlu0 %2864
    %v2866 = vsel %vm1762, %v2861, %v2863
    %v2867 = vsel %vm1762, %v2863, %v2865
    %v2870 = vadd.f32 %v2848, %v2866
    %v2871 = vadd.f32 %v2849, %v2867
    %v2872 = vmul.f32 %v343, %v1770
    %v2873 = vmul.f32 %v339, %v1774
    %v2874 = vmul.f32 %v344, %v1772
    %v2875 = vstv %s233
    %v2876 = vmul.f32 %v2872, %v2875
    %v2877 = vmul.f32 %v2873, %v2875
    %v2878 = vmul.f32 %v2874, %v2875
    %2882 = vrot.lane.b32.xlu0 %v2876, 29
    %v2883 = vpop.permute.xlu0 %2882
    %2884 = vrot.lane.b32.xlu0 %v2877, 29
    %v2885 = vpop.permute.xlu0 %2884
    %2886 = vrot.lane.b32.xlu0 %v2878, 29
    %v2887 = vpop.permute.xlu0 %2886
    %v2888 = vsel %vm1794, %v2883, %v2885
    %v2889 = vsel %vm1794, %v2885, %v2887
    %v2892 = vadd.f32 %v2870, %v2888
    %v2893 = vadd.f32 %v2871, %v2889
    %v2894 = vmul.f32 %v343, %v1802
    %v2895 = vmul.f32 %v339, %v1806
    %v2896 = vmul.f32 %v344, %v1804
    %v2897 = vstv %s234
    %v2898 = vmul.f32 %v2894, %v2897
    %v2899 = vmul.f32 %v2895, %v2897
    %v2900 = vmul.f32 %v2896, %v2897
    %2904 = vrot.lane.b32.xlu0 %v2898, 28
    %v2905 = vpop.permute.xlu0 %2904
    %2906 = vrot.lane.b32.xlu0 %v2899, 28
    %v2907 = vpop.permute.xlu0 %2906
    %2908 = vrot.lane.b32.xlu0 %v2900, 28
    %v2909 = vpop.permute.xlu0 %2908
    %v2910 = vsel %vm1826, %v2905, %v2907
    %v2911 = vsel %vm1826, %v2907, %v2909
    %v2914 = vadd.f32 %v2892, %v2910
    %v2915 = vadd.f32 %v2893, %v2911
    %v2916 = vmul.f32 %v343, %v1834
    %v2917 = vmul.f32 %v339, %v1838
    %v2918 = vmul.f32 %v344, %v1836
    %v2919 = vstv %s235
    %v2920 = vmul.f32 %v2916, %v2919
    %v2921 = vmul.f32 %v2917, %v2919
    %v2922 = vmul.f32 %v2918, %v2919
    %2926 = vrot.lane.b32.xlu0 %v2920, 27
    %v2927 = vpop.permute.xlu0 %2926
    %2928 = vrot.lane.b32.xlu0 %v2921, 27
    %v2929 = vpop.permute.xlu0 %2928
    %2930 = vrot.lane.b32.xlu0 %v2922, 27
    %v2931 = vpop.permute.xlu0 %2930
    %v2932 = vsel %vm1858, %v2927, %v2929
    %v2933 = vsel %vm1858, %v2929, %v2931
    %v2936 = vadd.f32 %v2914, %v2932
    %v2937 = vadd.f32 %v2915, %v2933
    %v2938 = vmul.f32 %v343, %v1866
    %v2939 = vmul.f32 %v339, %v1870
    %v2940 = vmul.f32 %v344, %v1868
    %v2941 = vstv %s236
    %v2942 = vmul.f32 %v2938, %v2941
    %v2943 = vmul.f32 %v2939, %v2941
    %v2944 = vmul.f32 %v2940, %v2941
    %2948 = vrot.lane.b32.xlu0 %v2942, 26
    %v2949 = vpop.permute.xlu0 %2948
    %2950 = vrot.lane.b32.xlu0 %v2943, 26
    %v2951 = vpop.permute.xlu0 %2950
    %2952 = vrot.lane.b32.xlu0 %v2944, 26
    %v2953 = vpop.permute.xlu0 %2952
    %v2954 = vsel %vm1890, %v2949, %v2951
    %v2955 = vsel %vm1890, %v2951, %v2953
    %v2958 = vadd.f32 %v2936, %v2954
    %v2959 = vadd.f32 %v2937, %v2955
    %v2960 = vxor.u32 %v2958, 2147483648
    %v2961 = vxor.u32 %v2959, 2147483648
    %v2962 = vmul.f32 %v2960, 1.442695
    %v2963 = vpow.pop %v2962
    %v2964 = vmul.f32 %v2961, 1.442695
    %v2965 = vpow.pop %v2964
    %v2966 = vadd.f32 %v2963, 1.0
    %v2967 = vadd.f32 %v2965, 1.0
    %v2968 = vrcp.pop %v2966
    %v2969 = vmul.f32 %v2966, %v2968
    %v2970 = vsub.f32 1.0, %v2969
    %v2971 = vmul.f32 %v2968, %v2970
    %v2972 = vadd.f32 %v2968, %v2971
    %vm2973 = vweird.f32 %v2966
    %vm2974 = vweird.f32 %v2968
    %vm2975 = vmor %vm2973, %vm2974
    %v2976 = vsel %vm2975, %v2968, %v2972
    %v2977 = vand.u32 2147483647, %v2966
    %vm2978 = vcmp.eq.f32.partialorder %v2977, 8.507059e+37
    %v2979 = vand.u32 %v2966, 2147483648
    %v2980 = vor.u32 1.1754944e-38, %v2979
    %v2981 = vsel %vm2978, %v2980, %v2976
    %v2982 = vmul.f32 1.0, %v2981
    %v2983 = vrcp.pop %v2967
    %v2984 = vmul.f32 %v2967, %v2983
    %v2985 = vsub.f32 1.0, %v2984
    %v2986 = vmul.f32 %v2983, %v2985
    %v2987 = vadd.f32 %v2983, %v2986
    %vm2988 = vweird.f32 %v2967
    %vm2989 = vweird.f32 %v2983
    %vm2990 = vmor %vm2988, %vm2989
    %v2991 = vsel %vm2990, %v2983, %v2987
    %v2992 = vand.u32 2147483647, %v2967
    %vm2993 = vcmp.eq.f32.partialorder %v2992, 8.507059e+37
    %v2994 = vand.u32 %v2967, 2147483648
    %v2995 = vor.u32 1.1754944e-38, %v2994
    %v2996 = vsel %vm2993, %v2995, %v2991
    %v2997 = vmul.f32 1.0, %v2996
    %v3000 = vrot.slane %v2997, 6
    %vm3001 = vcmask 1041408
    %v3002 = vsel %vm3001, %v2982, %v3000
    %3004 = vst [vmem:[#allocation8] sm:$0xf] %v3002
    // Predicated region
    $region22: #{tpu_custom_call.1} parent=1 // pred_check
      _
    $region23: #{tpu_custom_call.1} parent=1 // pred_check_branch
      %3006 = sbr.rel (0) target = $region25
    $region24: #{tpu_custom_call.1} parent=1 // pred_region
      %3008 = vsyncadd [#allocation5], 0
      %s3010 = sshll.u32 [#allocation8], 4
      %s3011 = int_to_ptr.vmem [resolvable:$true] %s3010
      %s3012 = sshll.u32 %s3, 4
      %s3013 = int_to_ptr.hbm [resolvable:$true] %s3012
      %3015 = dma.vmem_to_hbm [thread:$0]  %s3011, 64, %s3013, [#allocation5]
    $region25: #{tpu_custom_call.1} parent=1 // pred_fallthru
      _
    // Predicated region
    $region26: #{tpu_custom_call.1} parent=1 // pred_check
      _
    $region27: #{tpu_custom_call.1} parent=1 // pred_check_branch
      %3017 = sbr.rel (0) target = $region29
    $region28: #{tpu_custom_call.1} parent=1 // pred_region
      %3019 = dma.done [#allocation5], 64
    $region29: #{tpu_custom_call.1} parent=1 // pred_fallthru
      _
    %3020 = vsyncpa [#allocation4], 1
    %3021 = vsyncpa [#allocation5], 1
    %3022 = vsyncpa [#allocation6], 1

</llo_original>
